<compile_context>
chip_gen: v5e
topology: v5e:2x2
jax: 0.10.0
libtpu: 0.0.40
codegen_flags: <defaults>
</compile_context>

<pallas_src>
import functools

import jax
import jax.numpy as jnp
from jax.experimental import pallas as pl
from jax.experimental.pallas import tpu as pltpu


# ----------------------------------------------------------------------------
# In-kernel helpers
# ----------------------------------------------------------------------------
def _edge_masks(rows, H):
    """(rows, 1) bool masks for the first / last row of each image in a block."""
    r = jax.lax.broadcasted_iota(jnp.int32, (rows, 1), 0)
    h = r % H
    return h == 0, h == H - 1


def _conv3x3_banded(src_f32, band_ref, is_top, is_bot):
    """3x3 'SAME' conv of one lane-dense (rows, W*C) block.

    dx taps + W-direction zero padding live in the banded weight
    band_ref: (3*W*C, W*C) bf16.  dy taps are sublane rotations of the block
    (blocks are image-aligned, so the wrapped / cross-image rows are exactly
    the masked zero-padded ones); all three taps are fused into one
    K = 3*W*C MXU matmul with bf16 operands and f32 accumulation.
    """
    rows = src_f32.shape[0]
    # Roll/mask in f32 (native 32-bit XLU sublane rotate; also the preferred
    # order on v5e, which has no bf16 VPU), cast to bf16 only at the MXU input.
    # TODO(synk): on v6e/v7x roll the bf16 copy instead to halve sublane traffic.
    up = jnp.where(is_top, 0.0, pltpu.roll(src_f32, shift=1, axis=0))        # r -> r-1
    dn = jnp.where(is_bot, 0.0, pltpu.roll(src_f32, shift=rows - 1, axis=0))  # r -> r+1
    lhs = jnp.concatenate(
        [up.astype(jnp.bfloat16),
         src_f32.astype(jnp.bfloat16),
         dn.astype(jnp.bfloat16)], axis=1)                                    # (rows, 3*W*C)
    return jnp.dot(lhs, band_ref[...], preferred_element_type=jnp.float32)


def _write_stats(stats_ref, y):
    """Per-block lane sums: row 0 = sum(y), row 1 = sum(y*y)."""
    s1 = jnp.sum(y, axis=0, keepdims=True)
    s2 = jnp.sum(y * y, axis=0, keepdims=True)
    stats_ref[...] = jnp.concatenate([s1, s2], axis=0).reshape(stats_ref.shape)


# ----------------------------------------------------------------------------
# Kernels (one grid step == one image-aligned row block)
# ----------------------------------------------------------------------------
def _conv_stats_kernel(x_ref, band_ref, y_ref, stats_ref, *, H):
    is_top, is_bot = _edge_masks(x_ref.shape[0], H)
    y = _conv3x3_banded(x_ref[...], band_ref, is_top, is_bot)
    y_ref[...] = y
    _write_stats(stats_ref, y)


def _bn_relu_conv_stats_kernel(y1_ref, scale_ref, shift_ref, band_ref,
                               y2_ref, stats_ref, *, H):
    is_top, is_bot = _edge_masks(y1_ref.shape[0], H)
    h1 = jnp.maximum(y1_ref[...] * scale_ref[...] + shift_ref[...], 0.0)
    y2 = _conv3x3_banded(h1, band_ref, is_top, is_bot)
    y2_ref[...] = y2
    _write_stats(stats_ref, y2)


def _bn_skip_relu_kernel(y2_ref, x_ref, scale_ref, shift_ref, out_ref):
    out_ref[...] = jnp.maximum(
        y2_ref[...] * scale_ref[...] + shift_ref[...] + x_ref[...], 0.0)


# ----------------------------------------------------------------------------
# Wrapper-side helpers (tiny tensors / layout plumbing only)
# ----------------------------------------------------------------------------
def _band_weights(w_hwio, W):
    """(3, 3, Cin, Cout) HWIO weight -> (3*W*Cin, W*Cout) banded matrix.

    B[ky*W*Cin + wi*Cin + ci, wo*Cout + co] = w[ky, kx, ci, co] where
    wi == wo + kx - 1; entries with wi outside [0, W) are absent, which is
    exactly the conv's zero padding along W.
    """
    KH, KW, Cin, Cout = w_hwio.shape
    wi = jnp.arange(W)
    wo = jnp.arange(W)
    dx = jnp.arange(KW)
    sel = (wi[None, :, None] == (wo[None, None, :] + dx[:, None, None] - 1))
    sel = sel.astype(w_hwio.dtype)                           # (KW, W, W)
    band = jnp.einsum("xio,yxcf->yicof", sel, w_hwio)        # (KH, W, Cin, W, Cout)
    return band.reshape(KH * W * Cin, W * Cout)


def _fold_bn(partial_stats, gamma, beta, W, C, count, eps=1e-5):
    """Per-block (sum, sumsq) partials -> lane-tiled (1, W*C) scale / shift."""
    s = jnp.sum(partial_stats, axis=0)                       # (2, W*C)
    per_c = s.reshape(2, W, C).sum(axis=1)                   # (2, C)
    mean = per_c[0] / count
    var = jnp.maximum(per_c[1] / count - mean * mean, 0.0)   # clamp cancellation
    scale = gamma * jax.lax.rsqrt(var + eps)
    shift = beta - mean * scale                              # mean folded into shift
    return (jnp.tile(scale, W).reshape(1, W * C),
            jnp.tile(shift, W).reshape(1, W * C))


def _vmem_limit_bytes():
    """Generation-aware scoped-VMEM budget (64 MiB phys on v7x, 128 on v5e/v6e)."""
    try:
        cap = int(pltpu.get_tpu_info().vmem_capacity_bytes)
    except Exception:
        cap = 64 * 1024 * 1024
    return int(min(max(cap // 2, 32 * 1024 * 1024), 96 * 1024 * 1024))


# ----------------------------------------------------------------------------
# Forward pass
# ----------------------------------------------------------------------------
def basic_block(x, w1, g1, b1, w2, g2, b2, *, rows_per_block_target=256):
    """x: (N, H, W, C) f32 NHWC; w1/w2: (3, 3, C, C) HWIO; g/b: (C,).

    Matches PyTorch BasicBlock(C, C, stride=1, downsample=None).forward with
    BatchNorm in its default (training) mode: batch statistics, biased var.
    """
    N, H, W, C = x.shape
    assert w1.shape == (3, 3, C, C) and w2.shape == (3, 3, C, C), \
        "identity skip requires in_channels == out_channels and 3x3 kernels"
    WC = W * C
    assert WC % 128 == 0, "lane-dense layout needs W*C to be a multiple of 128"
    rows = N * H

    # Image-aligned row blocks; >= rows_per_block_target rows when possible
    # keeps the per-dot M large and amortizes the per-grid-step overhead.
    ipb = max(1, min(N, max(1, rows_per_block_target // H)))
    while N % ipb:
        ipb -= 1
    block_rows = ipb * H
    assert block_rows % 8 == 0, "row block must be sublane-aligned"
    num_blocks = N // ipb

    x2 = x.reshape(rows, WC)                                  # lane-dense view
    band1 = _band_weights(w1, W).astype(jnp.bfloat16)         # (3*WC, WC)
    band2 = _band_weights(w2, W).astype(jnp.bfloat16)
    # TODO(synk): for production channel counts (C >= 32) switch to per-tap
    # K=C dots — the band is only ~3/W dense, so most MXU FLOPs are zeros.

    act_spec = pl.BlockSpec((block_rows, WC), lambda i: (i, 0))

    def _full(arr):                                           # whole-array, every step
        nd = arr.ndim
        return pl.BlockSpec(tuple(arr.shape), lambda i: (0,) * nd)

    act_shape = jax.ShapeDtypeStruct((rows, WC), jnp.float32)
    stats_shape = jax.ShapeDtypeStruct((num_blocks, 2, WC), jnp.float32)
    stats_spec = pl.BlockSpec((1, 2, WC), lambda i: (i, 0, 0))
    cparams = pltpu.CompilerParams(
        dimension_semantics=("parallel",),        # v7x: both TensorCores split blocks
        vmem_limit_bytes=_vmem_limit_bytes())
    count = float(rows * W)                       # N*H*W elements per channel

    # Pass 1: conv1 + per-block channel statistics.
    y1, st1 = pl.pallas_call(
        functools.partial(_conv_stats_kernel, H=H),
        grid=(num_blocks,),
        in_specs=[act_spec, _full(band1)],
        out_specs=(act_spec, stats_spec),
        out_shape=(act_shape, stats_shape),
        compiler_params=cparams,
    )(x2, band1)
    scale1, shift1 = _fold_bn(st1, g1, b1, W, C, count)

    # Pass 2: BN1 apply + ReLU + conv2 + per-block channel statistics.
    y2, st2 = pl.pallas_call(
        functools.partial(_bn_relu_conv_stats_kernel, H=H),
        grid=(num_blocks,),
        in_specs=[act_spec, _full(scale1), _full(shift1), _full(band2)],
        out_specs=(act_spec, stats_spec),
        out_shape=(act_shape, stats_shape),
        compiler_params=cparams,
    )(y1, scale1, shift1, band2)
    scale2, shift2 = _fold_bn(st2, g2, b2, W, C, count)

    # Pass 3: BN2 apply + identity skip + ReLU.
    out2 = pl.pallas_call(
        _bn_skip_relu_kernel,
        grid=(num_blocks,),
        in_specs=[act_spec, act_spec, _full(scale2), _full(shift2)],
        out_specs=act_spec,
        out_shape=act_shape,
        compiler_params=cparams,
    )(y2, x2, scale2, shift2)

    return out2.reshape(N, H, W, C)


# ----------------------------------------------------------------------------
# Pure-JAX reference mirroring the PyTorch forward
# ----------------------------------------------------------------------------
def basic_block_reference(x, w1, g1, b1, w2, g2, b2):
    def conv(h, w):
        return jax.lax.conv_general_dilated(
            h, w, window_strides=(1, 1), padding="SAME",
            dimension_numbers=("NHWC", "HWIO", "NHWC"),
            precision=jax.lax.Precision.HIGHEST)

    def bn(h, g, b):
        m = jnp.mean(h, axis=(0, 1, 2), keepdims=True)
        v = jnp.mean((h - m) ** 2, axis=(0, 1, 2), keepdims=True)
        return (h - m) * jax.lax.rsqrt(v + 1e-5) * g + b

    out = jax.nn.relu(bn(conv(x, w1), g1, b1))
    out = bn(conv(out, w2), g2, b2)
    return jax.nn.relu(out + x)


if __name__ == "__main__":
    # NHWC (32, 16, 16, 8)  ==  PyTorch NCHW input (32, 8, 16, 16).
    # W*C = 128 (lane-dense) and the grid has two 256-row blocks, so the
    # gridded / partial-statistics path is actually exercised.
    N, H, W, C = 32, 16, 16, 8

    key = jax.random.PRNGKey(0)
    kx, kw1, kw2, kb1, kb2 = jax.random.split(key, 5)
    x = jax.random.normal(kx, (N, H, W, C), jnp.float32)
    w1 = 0.1 * jax.random.normal(kw1, (3, 3, C, C), jnp.float32)
    w2 = 0.1 * jax.random.normal(kw2, (3, 3, C, C), jnp.float32)
    g1 = 1.0 + 0.1 * jnp.arange(C, dtype=jnp.float32)
    b1 = 0.05 * jax.random.normal(kb1, (C,), jnp.float32)
    g2 = 1.0 - 0.05 * jnp.arange(C, dtype=jnp.float32) / C
    b2 = 0.05 * jax.random.normal(kb2, (C,), jnp.float32)

    fwd = jax.jit(basic_block)
    out = jax.block_until_ready(fwd(x, w1, g1, b1, w2, g2, b2))

    ref = basic_block_reference(x, w1, g1, b1, w2, g2, b2)
    assert out.shape == (N, H, W, C)
    err = float(jnp.max(jnp.abs(out - ref)))
    # bf16 MXU operands (f32 accumulation, f32 BN/skip math) vs f32 reference.
    assert jnp.allclose(out, ref, atol=5e-2, rtol=5e-2), f"max abs err = {err}"
    print("KERNEL_OK")
</pallas_src>

<mosaic_0001>
module attributes {stable_mosaic.version = 11 : i64} {
  func.func @_conv_stats_kernel(%arg0: i32, %arg1: memref<256x128xf32, #tpu.memory_space<vmem>>, %arg2: memref<384x128xbf16, #tpu.memory_space<vmem>>, %arg3: memref<256x128xf32, #tpu.memory_space<vmem>>, %arg4: memref<1x2x128xf32, #tpu.memory_space<vmem>>) attributes {dimension_semantics = [#tpu.dimension_semantics<parallel>], iteration_bounds = array<i64: 2>, scalar_prefetch = 0 : i64, scratch_operands = 0 : i64, tpu.core_type = #tpu.core_type<tc>, window_params = [{transform_indices = @transform_0, window_bounds = array<i64: 256, 128>}, {pipeline_mode = #tpu.pipeline_mode<synchronous>, transform_indices = @transform_1, window_bounds = array<i64: 384, 128>}, {transform_indices = @transform_2, window_bounds = array<i64: 256, 128>}, {transform_indices = @transform_3, window_bounds = array<i64: 1, 2, 128>}]} {
    %0 = tpu.iota {dimensions = array<i32: 0>} : vector<256x1xi32>
    %c16_i32 = arith.constant 16 : i32
    %c0_i32 = arith.constant 0 : i32
    %1 = arith.cmpi eq, %c16_i32, %c0_i32 : i32
    %c1_i32 = arith.constant 1 : i32
    %2 = arith.select %1, %c1_i32, %c16_i32 : i32
    %3 = vector.broadcast %2 : i32 to vector<256x1xi32>
    %4 = arith.remsi %0, %3 : vector<256x1xi32>
    %c0_i32_0 = arith.constant 0 : i32
    %5 = vector.broadcast %c0_i32_0 : i32 to vector<256x1xi32>
    %6 = arith.cmpi ne, %4, %5 : vector<256x1xi32>
    %c0_i32_1 = arith.constant 0 : i32
    %7 = vector.broadcast %c0_i32_1 : i32 to vector<256x1xi32>
    %8 = arith.cmpi slt, %4, %7 : vector<256x1xi32>
    %c0_i32_2 = arith.constant 0 : i32
    %9 = arith.cmpi slt, %2, %c0_i32_2 : i32
    %10 = vector.broadcast %9 : i1 to vector<256x1xi1>
    %11 = vector.broadcast %10 : vector<256x1xi1> to vector<256x1xi1>
    %12 = arith.xori %8, %11 : vector<256x1xi1>
    %13 = arith.andi %12, %6 : vector<256x1xi1>
    %14 = vector.broadcast %2 : i32 to vector<256x1xi32>
    %15 = arith.addi %4, %14 : vector<256x1xi32>
    %16 = arith.select %13, %15, %4 : vector<256x1xi1>, vector<256x1xi32>
    %c0_i32_3 = arith.constant 0 : i32
    %17 = vector.broadcast %c0_i32_3 : i32 to vector<256x1xi32>
    %18 = arith.cmpi eq, %16, %17 : vector<256x1xi32>
    %c15_i32 = arith.constant 15 : i32
    %19 = vector.broadcast %c15_i32 : i32 to vector<256x1xi32>
    %20 = arith.cmpi eq, %16, %19 : vector<256x1xi32>
    %c0 = arith.constant 0 : index
    %c0_4 = arith.constant 0 : index
    %21 = vector.load %arg1[%c0, %c0_4] : memref<256x128xf32, #tpu.memory_space<vmem>>, vector<256x128xf32>
    %c1_i32_5 = arith.constant 1 : i32
    %22 = tpu.dynamic_rotate %21 by %c1_i32_5 dim 0 : vector<256x128xf32>, i32 -> vector<256x128xf32>
    %cst = arith.constant 0.000000e+00 : f32
    %23 = vector.shape_cast %18 : vector<256x1xi1> to vector<256x1xi1>
    %24 = vector.broadcast %23 : vector<256x1xi1> to vector<256x128xi1>
    %25 = vector.broadcast %cst : f32 to vector<256x128xf32>
    %26 = arith.select %24, %25, %22 : vector<256x128xi1>, vector<256x128xf32>
    %c255_i32 = arith.constant 255 : i32
    %27 = tpu.dynamic_rotate %21 by %c255_i32 dim 0 : vector<256x128xf32>, i32 -> vector<256x128xf32>
    %cst_6 = arith.constant 0.000000e+00 : f32
    %28 = vector.shape_cast %20 : vector<256x1xi1> to vector<256x1xi1>
    %29 = vector.broadcast %28 : vector<256x1xi1> to vector<256x128xi1>
    %30 = vector.broadcast %cst_6 : f32 to vector<256x128xf32>
    %31 = arith.select %29, %30, %27 : vector<256x128xi1>, vector<256x128xf32>
    %32 = arith.truncf %26 : vector<256x128xf32> to vector<256x128xbf16>
    %33 = arith.truncf %21 : vector<256x128xf32> to vector<256x128xbf16>
    %34 = arith.truncf %31 : vector<256x128xf32> to vector<256x128xbf16>
    %35 = tpu.concatenate %32, %33, %34 in 1 : vector<256x128xbf16>, vector<256x128xbf16>, vector<256x128xbf16> -> vector<256x384xbf16>
    %c0_7 = arith.constant 0 : index
    %c0_8 = arith.constant 0 : index
    %36 = vector.load %arg2[%c0_7, %c0_8] : memref<384x128xbf16, #tpu.memory_space<vmem>>, vector<384x128xbf16>
    %cst_9 = arith.constant dense<0.000000e+00> : vector<256x128xf32>
    %37 = tpu.matmul %35, %36, %cst_9 {dimension_numbers = #tpu.dot_dimension_numbers<[1], [0], [0], [1], [0, 0, 1, 1], [], []>} : vector<256x384xbf16>, vector<384x128xbf16>, vector<256x128xf32> -> vector<256x128xf32>
    %c0_10 = arith.constant 0 : index
    %c0_11 = arith.constant 0 : index
    %38 = vector.load %arg3[%c0_10, %c0_11] : memref<256x128xf32, #tpu.memory_space<vmem>>, vector<256x128xf32>
    tpu.vector_store %arg3[%c0_10, %c0_11], %37 {strides = array<i32>} : memref<256x128xf32, #tpu.memory_space<vmem>>, vector<256x128xf32>,
    %cst_12 = arith.constant dense<0.000000e+00> : vector<128xf32>
    %39 = vector.multi_reduction <add>, %37, %cst_12 [0] : vector<256x128xf32> to vector<128xf32>
    %40 = vector.shape_cast %39 : vector<128xf32> to vector<1x128xf32>
    %41 = arith.mulf %37, %37 : vector<256x128xf32>
    %cst_13 = arith.constant dense<0.000000e+00> : vector<128xf32>
    %42 = vector.multi_reduction <add>, %41, %cst_13 [0] : vector<256x128xf32> to vector<128xf32>
    %43 = vector.shape_cast %42 : vector<128xf32> to vector<1x128xf32>
    %44 = tpu.concatenate %40, %43 in 0 : vector<1x128xf32>, vector<1x128xf32> -> vector<2x128xf32>
    %45 = vector.shape_cast %44 : vector<2x128xf32> to vector<1x2x128xf32>
    %c0_14 = arith.constant 0 : index
    %c0_15 = arith.constant 0 : index
    %c0_16 = arith.constant 0 : index
    %46 = vector.load %arg4[%c0_14, %c0_15, %c0_16] : memref<1x2x128xf32, #tpu.memory_space<vmem>>, vector<1x2x128xf32>
    tpu.vector_store %arg4[%c0_14, %c0_15, %c0_16], %45 {strides = array<i32>} : memref<1x2x128xf32, #tpu.memory_space<vmem>>, vector<1x2x128xf32>,
    return
  }
  func.func @transform_0(%arg0: i32) -> (i32, i32) {
    %c0_i32 = arith.constant 0 : i32
    %c0_i32_0 = arith.constant 0 : i32
    return %arg0, %c0_i32 : i32, i32
  }
  func.func @transform_1(%arg0: i32) -> (i32, i32) {
    %c0_i32 = arith.constant 0 : i32
    %c0_i32_0 = arith.constant 0 : i32
    %c0_i32_1 = arith.constant 0 : i32
    return %c0_i32, %c0_i32_0 : i32, i32
  }
  func.func @transform_2(%arg0: i32) -> (i32, i32) {
    %c0_i32 = arith.constant 0 : i32
    %c0_i32_0 = arith.constant 0 : i32
    return %arg0, %c0_i32 : i32, i32
  }
  func.func @transform_3(%arg0: i32) -> (i32, i32, i32) {
    %c0_i32 = arith.constant 0 : i32
    %c0_i32_0 = arith.constant 0 : i32
    %c0_i32_1 = arith.constant 0 : i32
    return %arg0, %c0_i32, %c0_i32_0 : i32, i32, i32
  }
}

module attributes {stable_mosaic.version = 11 : i64} {
  func.func @_bn_relu_conv_stats_kernel(%arg0: i32, %arg1: memref<256x128xf32, #tpu.memory_space<vmem>>, %arg2: memref<1x128xf32, #tpu.memory_space<vmem>>, %arg3: memref<1x128xf32, #tpu.memory_space<vmem>>, %arg4: memref<384x128xbf16, #tpu.memory_space<vmem>>, %arg5: memref<256x128xf32, #tpu.memory_space<vmem>>, %arg6: memref<1x2x128xf32, #tpu.memory_space<vmem>>) attributes {dimension_semantics = [#tpu.dimension_semantics<parallel>], iteration_bounds = array<i64: 2>, scalar_prefetch = 0 : i64, scratch_operands = 0 : i64, tpu.core_type = #tpu.core_type<tc>, window_params = [{transform_indices = @transform_0, window_bounds = array<i64: 256, 128>}, {pipeline_mode = #tpu.pipeline_mode<synchronous>, transform_indices = @transform_1, window_bounds = array<i64: 1, 128>}, {pipeline_mode = #tpu.pipeline_mode<synchronous>, transform_indices = @transform_2, window_bounds = array<i64: 1, 128>}, {pipeline_mode = #tpu.pipeline_mode<synchronous>, transform_indices = @transform_3, window_bounds = array<i64: 384, 128>}, {transform_indices = @transform_4, window_bounds = array<i64: 256, 128>}, {transform_indices = @transform_5, window_bounds = array<i64: 1, 2, 128>}]} {
    %0 = tpu.iota {dimensions = array<i32: 0>} : vector<256x1xi32>
    %c16_i32 = arith.constant 16 : i32
    %c0_i32 = arith.constant 0 : i32
    %1 = arith.cmpi eq, %c16_i32, %c0_i32 : i32
    %c1_i32 = arith.constant 1 : i32
    %2 = arith.select %1, %c1_i32, %c16_i32 : i32
    %3 = vector.broadcast %2 : i32 to vector<256x1xi32>
    %4 = arith.remsi %0, %3 : vector<256x1xi32>
    %c0_i32_0 = arith.constant 0 : i32
    %5 = vector.broadcast %c0_i32_0 : i32 to vector<256x1xi32>
    %6 = arith.cmpi ne, %4, %5 : vector<256x1xi32>
    %c0_i32_1 = arith.constant 0 : i32
    %7 = vector.broadcast %c0_i32_1 : i32 to vector<256x1xi32>
    %8 = arith.cmpi slt, %4, %7 : vector<256x1xi32>
    %c0_i32_2 = arith.constant 0 : i32
    %9 = arith.cmpi slt, %2, %c0_i32_2 : i32
    %10 = vector.broadcast %9 : i1 to vector<256x1xi1>
    %11 = vector.broadcast %10 : vector<256x1xi1> to vector<256x1xi1>
    %12 = arith.xori %8, %11 : vector<256x1xi1>
    %13 = arith.andi %12, %6 : vector<256x1xi1>
    %14 = vector.broadcast %2 : i32 to vector<256x1xi32>
    %15 = arith.addi %4, %14 : vector<256x1xi32>
    %16 = arith.select %13, %15, %4 : vector<256x1xi1>, vector<256x1xi32>
    %c0_i32_3 = arith.constant 0 : i32
    %17 = vector.broadcast %c0_i32_3 : i32 to vector<256x1xi32>
    %18 = arith.cmpi eq, %16, %17 : vector<256x1xi32>
    %c15_i32 = arith.constant 15 : i32
    %19 = vector.broadcast %c15_i32 : i32 to vector<256x1xi32>
    %20 = arith.cmpi eq, %16, %19 : vector<256x1xi32>
    %c0 = arith.constant 0 : index
    %c0_4 = arith.constant 0 : index
    %21 = vector.load %arg1[%c0, %c0_4] : memref<256x128xf32, #tpu.memory_space<vmem>>, vector<256x128xf32>
    %c0_5 = arith.constant 0 : index
    %c0_6 = arith.constant 0 : index
    %22 = vector.load %arg2[%c0_5, %c0_6] : memref<1x128xf32, #tpu.memory_space<vmem>>, vector<1x128xf32>
    %23 = vector.broadcast %22 : vector<1x128xf32> to vector<256x128xf32>
    %24 = arith.mulf %21, %23 : vector<256x128xf32>
    %c0_7 = arith.constant 0 : index
    %c0_8 = arith.constant 0 : index
    %25 = vector.load %arg3[%c0_7, %c0_8] : memref<1x128xf32, #tpu.memory_space<vmem>>, vector<1x128xf32>
    %26 = vector.broadcast %25 : vector<1x128xf32> to vector<256x128xf32>
    %27 = arith.addf %24, %26 : vector<256x128xf32>
    %cst = arith.constant 0.000000e+00 : f32
    %28 = vector.broadcast %cst : f32 to vector<256x128xf32>
    %29 = arith.maximumf %27, %28 : vector<256x128xf32>
    %c1_i32_9 = arith.constant 1 : i32
    %30 = tpu.dynamic_rotate %29 by %c1_i32_9 dim 0 : vector<256x128xf32>, i32 -> vector<256x128xf32>
    %cst_10 = arith.constant 0.000000e+00 : f32
    %31 = vector.shape_cast %18 : vector<256x1xi1> to vector<256x1xi1>
    %32 = vector.broadcast %31 : vector<256x1xi1> to vector<256x128xi1>
    %33 = vector.broadcast %cst_10 : f32 to vector<256x128xf32>
    %34 = arith.select %32, %33, %30 : vector<256x128xi1>, vector<256x128xf32>
    %c255_i32 = arith.constant 255 : i32
    %35 = tpu.dynamic_rotate %29 by %c255_i32 dim 0 : vector<256x128xf32>, i32 -> vector<256x128xf32>
    %cst_11 = arith.constant 0.000000e+00 : f32
    %36 = vector.shape_cast %20 : vector<256x1xi1> to vector<256x1xi1>
    %37 = vector.broadcast %36 : vector<256x1xi1> to vector<256x128xi1>
    %38 = vector.broadcast %cst_11 : f32 to vector<256x128xf32>
    %39 = arith.select %37, %38, %35 : vector<256x128xi1>, vector<256x128xf32>
    %40 = arith.truncf %34 : vector<256x128xf32> to vector<256x128xbf16>
    %41 = arith.truncf %29 : vector<256x128xf32> to vector<256x128xbf16>
    %42 = arith.truncf %39 : vector<256x128xf32> to vector<256x128xbf16>
    %43 = tpu.concatenate %40, %41, %42 in 1 : vector<256x128xbf16>, vector<256x128xbf16>, vector<256x128xbf16> -> vector<256x384xbf16>
    %c0_12 = arith.constant 0 : index
    %c0_13 = arith.constant 0 : index
    %44 = vector.load %arg4[%c0_12, %c0_13] : memref<384x128xbf16, #tpu.memory_space<vmem>>, vector<384x128xbf16>
    %cst_14 = arith.constant dense<0.000000e+00> : vector<256x128xf32>
    %45 = tpu.matmul %43, %44, %cst_14 {dimension_numbers = #tpu.dot_dimension_numbers<[1], [0], [0], [1], [0, 0, 1, 1], [], []>} : vector<256x384xbf16>, vector<384x128xbf16>, vector<256x128xf32> -> vector<256x128xf32>
    %c0_15 = arith.constant 0 : index
    %c0_16 = arith.constant 0 : index
    %46 = vector.load %arg5[%c0_15, %c0_16] : memref<256x128xf32, #tpu.memory_space<vmem>>, vector<256x128xf32>
    tpu.vector_store %arg5[%c0_15, %c0_16], %45 {strides = array<i32>} : memref<256x128xf32, #tpu.memory_space<vmem>>, vector<256x128xf32>,
    %cst_17 = arith.constant dense<0.000000e+00> : vector<128xf32>
    %47 = vector.multi_reduction <add>, %45, %cst_17 [0] : vector<256x128xf32> to vector<128xf32>
    %48 = vector.shape_cast %47 : vector<128xf32> to vector<1x128xf32>
    %49 = arith.mulf %45, %45 : vector<256x128xf32>
    %cst_18 = arith.constant dense<0.000000e+00> : vector<128xf32>
    %50 = vector.multi_reduction <add>, %49, %cst_18 [0] : vector<256x128xf32> to vector<128xf32>
    %51 = vector.shape_cast %50 : vector<128xf32> to vector<1x128xf32>
    %52 = tpu.concatenate %48, %51 in 0 : vector<1x128xf32>, vector<1x128xf32> -> vector<2x128xf32>
    %53 = vector.shape_cast %52 : vector<2x128xf32> to vector<1x2x128xf32>
    %c0_19 = arith.constant 0 : index
    %c0_20 = arith.constant 0 : index
    %c0_21 = arith.constant 0 : index
    %54 = vector.load %arg6[%c0_19, %c0_20, %c0_21] : memref<1x2x128xf32, #tpu.memory_space<vmem>>, vector<1x2x128xf32>
    tpu.vector_store %arg6[%c0_19, %c0_20, %c0_21], %53 {strides = array<i32>} : memref<1x2x128xf32, #tpu.memory_space<vmem>>, vector<1x2x128xf32>,
    return
  }
  func.func @transform_0(%arg0: i32) -> (i32, i32) {
    %c0_i32 = arith.constant 0 : i32
    %c0_i32_0 = arith.constant 0 : i32
    return %arg0, %c0_i32 : i32, i32
  }
  func.func @transform_1(%arg0: i32) -> (i32, i32) {
    %c0_i32 = arith.constant 0 : i32
    %c0_i32_0 = arith.constant 0 : i32
    %c0_i32_1 = arith.constant 0 : i32
    return %c0_i32, %c0_i32_0 : i32, i32
  }
  func.func @transform_2(%arg0: i32) -> (i32, i32) {
    %c0_i32 = arith.constant 0 : i32
    %c0_i32_0 = arith.constant 0 : i32
    %c0_i32_1 = arith.constant 0 : i32
    return %c0_i32, %c0_i32_0 : i32, i32
  }
  func.func @transform_3(%arg0: i32) -> (i32, i32) {
    %c0_i32 = arith.constant 0 : i32
    %c0_i32_0 = arith.constant 0 : i32
    %c0_i32_1 = arith.constant 0 : i32
    return %c0_i32, %c0_i32_0 : i32, i32
  }
  func.func @transform_4(%arg0: i32) -> (i32, i32) {
    %c0_i32 = arith.constant 0 : i32
    %c0_i32_0 = arith.constant 0 : i32
    return %arg0, %c0_i32 : i32, i32
  }
  func.func @transform_5(%arg0: i32) -> (i32, i32, i32) {
    %c0_i32 = arith.constant 0 : i32
    %c0_i32_0 = arith.constant 0 : i32
    %c0_i32_1 = arith.constant 0 : i32
    return %arg0, %c0_i32, %c0_i32_0 : i32, i32, i32
  }
}

module attributes {stable_mosaic.version = 11 : i64} {
  func.func @_bn_skip_relu_kernel(%arg0: i32, %arg1: memref<256x128xf32, #tpu.memory_space<vmem>>, %arg2: memref<256x128xf32, #tpu.memory_space<vmem>>, %arg3: memref<1x128xf32, #tpu.memory_space<vmem>>, %arg4: memref<1x128xf32, #tpu.memory_space<vmem>>, %arg5: memref<256x128xf32, #tpu.memory_space<vmem>>) attributes {dimension_semantics = [#tpu.dimension_semantics<parallel>], iteration_bounds = array<i64: 2>, scalar_prefetch = 0 : i64, scratch_operands = 0 : i64, tpu.core_type = #tpu.core_type<tc>, window_params = [{transform_indices = @transform_0, window_bounds = array<i64: 256, 128>}, {transform_indices = @transform_1, window_bounds = array<i64: 256, 128>}, {pipeline_mode = #tpu.pipeline_mode<synchronous>, transform_indices = @transform_2, window_bounds = array<i64: 1, 128>}, {pipeline_mode = #tpu.pipeline_mode<synchronous>, transform_indices = @transform_3, window_bounds = array<i64: 1, 128>}, {transform_indices = @transform_4, window_bounds = array<i64: 256, 128>}]} {
    %c0 = arith.constant 0 : index
    %c0_0 = arith.constant 0 : index
    %0 = vector.load %arg1[%c0, %c0_0] : memref<256x128xf32, #tpu.memory_space<vmem>>, vector<256x128xf32>
    %c0_1 = arith.constant 0 : index
    %c0_2 = arith.constant 0 : index
    %1 = vector.load %arg3[%c0_1, %c0_2] : memref<1x128xf32, #tpu.memory_space<vmem>>, vector<1x128xf32>
    %2 = vector.broadcast %1 : vector<1x128xf32> to vector<256x128xf32>
    %3 = arith.mulf %0, %2 : vector<256x128xf32>
    %c0_3 = arith.constant 0 : index
    %c0_4 = arith.constant 0 : index
    %4 = vector.load %arg4[%c0_3, %c0_4] : memref<1x128xf32, #tpu.memory_space<vmem>>, vector<1x128xf32>
    %5 = vector.broadcast %4 : vector<1x128xf32> to vector<256x128xf32>
    %6 = arith.addf %3, %5 : vector<256x128xf32>
    %c0_5 = arith.constant 0 : index
    %c0_6 = arith.constant 0 : index
    %7 = vector.load %arg2[%c0_5, %c0_6] : memref<256x128xf32, #tpu.memory_space<vmem>>, vector<256x128xf32>
    %8 = arith.addf %6, %7 : vector<256x128xf32>
    %cst = arith.constant 0.000000e+00 : f32
    %9 = vector.broadcast %cst : f32 to vector<256x128xf32>
    %10 = arith.maximumf %8, %9 : vector<256x128xf32>
    %c0_7 = arith.constant 0 : index
    %c0_8 = arith.constant 0 : index
    %11 = vector.load %arg5[%c0_7, %c0_8] : memref<256x128xf32, #tpu.memory_space<vmem>>, vector<256x128xf32>
    tpu.vector_store %arg5[%c0_7, %c0_8], %10 {strides = array<i32>} : memref<256x128xf32, #tpu.memory_space<vmem>>, vector<256x128xf32>,
    return
  }
  func.func @transform_0(%arg0: i32) -> (i32, i32) {
    %c0_i32 = arith.constant 0 : i32
    %c0_i32_0 = arith.constant 0 : i32
    return %arg0, %c0_i32 : i32, i32
  }
  func.func @transform_1(%arg0: i32) -> (i32, i32) {
    %c0_i32 = arith.constant 0 : i32
    %c0_i32_0 = arith.constant 0 : i32
    return %arg0, %c0_i32 : i32, i32
  }
  func.func @transform_2(%arg0: i32) -> (i32, i32) {
    %c0_i32 = arith.constant 0 : i32
    %c0_i32_0 = arith.constant 0 : i32
    %c0_i32_1 = arith.constant 0 : i32
    return %c0_i32, %c0_i32_0 : i32, i32
  }
  func.func @transform_3(%arg0: i32) -> (i32, i32) {
    %c0_i32 = arith.constant 0 : i32
    %c0_i32_0 = arith.constant 0 : i32
    %c0_i32_1 = arith.constant 0 : i32
    return %c0_i32, %c0_i32_0 : i32, i32
  }
  func.func @transform_4(%arg0: i32) -> (i32, i32) {
    %c0_i32 = arith.constant 0 : i32
    %c0_i32_0 = arith.constant 0 : i32
    return %arg0, %c0_i32 : i32, i32
  }
}

</mosaic_0001>

<llo_original>
// kernel: basic_block.3
$region0: #{basic_block.3}
  #allocation0 [shape = 'u32[]', space=smem, size = 0x4, offset = 0x4, fixed_abs, tag = 'smem constant byte address 0x4 - core index']
  #allocation1 [shape = 'u32[72,128]{1,0:T(1,128)}', space=vmem, size = 0x9000, scoped, tag = 'internal scratch']
  %s0 = inlined_call_operand.vmem [shape: f32[512,128], index: 0, kind: input, shape index: {}]
  %s1 = inlined_call_operand.vmem [shape: bf16[384,128], index: 1, kind: input, shape index: {}]
  %s2 = inlined_call_operand.vmem [shape: f32[512,128], index: 2, kind: output, shape index: {0}]
  %s3 = inlined_call_operand.vmem [shape: f32[2,2,128], index: 3, kind: output, shape index: {1}]
  %4 = xla_tuple %s2, %s3
  %s5 = sld [smem:[#allocation0]]
  $region49: #{basic_block.3} parent=0
    _
  %s7 = ssub.s32 1, %s5
  %s8 = scalar_select 0, %s7, %s5
  loop: start=0, step=1, limit=4
  $region2: #{basic_block.3} parent=0 // loop_pre_header
    _
  $region3: #{basic_block.3} parent=0 // loop_header
    %s10 = sphi 0, %s14
    %p11 = scmp.ge.s32.totalorder %s10, 4
    %s20 = sphi 0, %s22
    %s23 = sphi 0, %s20
    %s24 = sphi 0, %s23
    %s40 = sphi 0, %s24
    %s44 = sphi 0, %s44
    %s46 = sphi 0, %s44
    %s47 = sphi 0, %s46
    %s61 = sphi 0, %s47
    %s67 = sphi 0, %s69
    %s70 = sphi 0, %s67
    %s71 = sphi 0, %s70
    %s87 = sphi 0, %s71
    %s93 = sphi 0, %s95
    %s96 = sphi 0, %s93
    %s97 = sphi 0, %s96
    %s113 = sphi 0, %s97
  $region4: #{basic_block.3} parent=0 // loop_header_branch
    %13 = sbr.rel (%p11) target = $region8
  $region5: #{basic_block.3} parent=0 // loop_body
    %s15 = ssub.s32 %s10, 1
    %s16 = ssub.s32 %s10, 2
    %s17 = sadd.s32 %s10, 1
    %s18 = ssub.s32 %s10, %s17
    %p19 = scmp.eq.s32.totalorder %s18, 0
    %s21 = sadd.s32 %s20, 1
    %s22 = scalar_select %p19, %s20, %s21
    %p25 = pneg %p19
    %p26 = scmp.eq.s32.totalorder %s10, 1
    %p27 = por %p25, %p26
    %p28 = scmp.ne.s32.totalorder %s20, %s23
    %p29 = scmp.eq.s32.totalorder %s10, 0
    %p30 = por %p28, %p29
    %p31 = scmp.ne.s32.totalorder %s20, %s23
    %p32 = scmp.eq.s32.totalorder %s15, 1
    %p33 = por %p31, %p32
    %p34 = scmp.ne.s32.totalorder %s23, %s24
    %p35 = scmp.eq.s32.totalorder %s15, 0
    %p36 = por %p34, %p35
    %p37 = scmp.ne.s32.totalorder %s23, %s24
    %p38 = scmp.eq.s32.totalorder %s16, 1
    %p39 = por %p37, %p38
    %p41 = scmp.ne.s32.totalorder %s24, %s40
    %p42 = scmp.eq.s32.totalorder %s16, 0
    %p43 = por %p41, %p42
    %s45 = sadd.s32 %s44, 1
    %p48 = scmp.eq.s32.totalorder %s10, 1
    %p49 = scmp.ne.s32.totalorder %s44, %s46
    %p50 = scmp.eq.s32.totalorder %s10, 0
    %p51 = por %p49, %p50
    %p52 = scmp.ne.s32.totalorder %s44, %s46
    %p53 = scmp.eq.s32.totalorder %s15, 1
    %p54 = por %p52, %p53
    %p55 = scmp.ne.s32.totalorder %s46, %s47
    %p56 = scmp.eq.s32.totalorder %s15, 0
    %p57 = por %p55, %p56
    %p58 = scmp.ne.s32.totalorder %s46, %s47
    %p59 = scmp.eq.s32.totalorder %s16, 1
    %p60 = por %p58, %p59
    %p62 = scmp.ne.s32.totalorder %s47, %s61
    %p63 = scmp.eq.s32.totalorder %s16, 0
    %p64 = por %p62, %p63
    %s65 = ssub.s32 %s10, %s17
    %p66 = scmp.eq.s32.totalorder %s65, 0
    %s68 = sadd.s32 %s67, 1
    %s69 = scalar_select %p66, %s67, %s68
    %p72 = pneg %p66
    %p73 = scmp.eq.s32.totalorder %s10, 1
    %p74 = por %p72, %p73
    %p75 = scmp.ne.s32.totalorder %s67, %s70
    %p76 = scmp.eq.s32.totalorder %s10, 0
    %p77 = por %p75, %p76
    %p78 = scmp.ne.s32.totalorder %s67, %s70
    %p79 = scmp.eq.s32.totalorder %s15, 1
    %p80 = por %p78, %p79
    %p81 = scmp.ne.s32.totalorder %s70, %s71
    %p82 = scmp.eq.s32.totalorder %s15, 0
    %p83 = por %p81, %p82
    %p84 = scmp.ne.s32.totalorder %s70, %s71
    %p85 = scmp.eq.s32.totalorder %s16, 1
    %p86 = por %p84, %p85
    %p88 = scmp.ne.s32.totalorder %s71, %s87
    %p89 = scmp.eq.s32.totalorder %s16, 0
    %p90 = por %p88, %p89
    %s91 = ssub.s32 %s10, %s17
    %p92 = scmp.eq.s32.totalorder %s91, 0
    %s94 = sadd.s32 %s93, 1
    %s95 = scalar_select %p92, %s93, %s94
    %p98 = pneg %p92
    %p99 = scmp.eq.s32.totalorder %s10, 1
    %p100 = por %p98, %p99
    %p101 = scmp.ne.s32.totalorder %s93, %s96
    %p102 = scmp.eq.s32.totalorder %s10, 0
    %p103 = por %p101, %p102
    %p104 = scmp.ne.s32.totalorder %s93, %s96
    %p105 = scmp.eq.s32.totalorder %s15, 1
    %p106 = por %p104, %p105
    %p107 = scmp.ne.s32.totalorder %s96, %s97
    %p108 = scmp.eq.s32.totalorder %s15, 0
    %p109 = por %p107, %p108
    %p110 = scmp.ne.s32.totalorder %s96, %s97
    %p111 = scmp.eq.s32.totalorder %s16, 1
    %p112 = por %p110, %p111
    %p114 = scmp.ne.s32.totalorder %s97, %s113
    %p115 = scmp.eq.s32.totalorder %s16, 0
    %p116 = por %p114, %p115
    %p117 = scmp.le.s32.totalorder 1, %s10
    %p118 = scmp.lt.s32.totalorder %s10, 3
    %p119 = pnand %p117, %p118
    %p120 = pneg %p119
    // Predicated region
    $region9: #{basic_block.3} parent=5 // pred_check
      _
    $region10: #{basic_block.3} parent=5 // pred_check_branch
      %122 = sbr.rel (%p119) target = $region12
    $region11: #{basic_block.3} parent=5 // pred_region
      %s123 = ssub.s32 %s10, 1
      // Predicated region
      $region13: #{basic_block.3} parent=11 // pred_check
        %p124 = pneg %p57
      $region14: #{basic_block.3} parent=11 // pred_check_branch
        %126 = sbr.rel (%p124) target = $region16
      $region15: #{basic_block.3} parent=11 // pred_region
        _
      $region16: #{basic_block.3} parent=11 // pred_fallthru
        _
    $region12: #{basic_block.3} parent=5 // pred_fallthru
      _
    %p127 = scmp.lt.s32.totalorder %s10, 2
    // Predicated region
    $region17: #{basic_block.3} parent=5 // pred_check
      %p128 = pneg %p127
    $region18: #{basic_block.3} parent=5 // pred_check_branch
      %130 = sbr.rel (%p128) target = $region20
    $region19: #{basic_block.3} parent=5 // pred_region
      // Predicated region
      $region21: #{basic_block.3} parent=19 // pred_check
        %p131 = pneg %p30
      $region22: #{basic_block.3} parent=19 // pred_check_branch
        %133 = sbr.rel (%p131) target = $region24
      $region23: #{basic_block.3} parent=19 // pred_region
        %s134 = smul.u32 32, %s10
        %p135 = scmp.lt.s32.totalorder %s134, 63
        %s136 = scalar_select %p135, %s134, 63
        %s137 = smul.addr %s136, 8
        %s138 = scalar_lea.vmem %s0, %s137
        %s139 = smul.u32 32, %s10
      $region24: #{basic_block.3} parent=19 // pred_fallthru
        _
    $region20: #{basic_block.3} parent=5 // pred_fallthru
      _
    %p140 = scmp.le.s32.totalorder 1, %s10
    %p141 = scmp.lt.s32.totalorder %s10, 3
    %p142 = pnand %p140, %p141
    %p143 = pneg %p142
    // Predicated region
    $region25: #{basic_block.3} parent=5 // pred_check
      _
    $region26: #{basic_block.3} parent=5 // pred_check_branch
      %145 = sbr.rel (%p142) target = $region28
    $region27: #{basic_block.3} parent=5 // pred_region
      %s146 = ssub.s32 %s10, 1
      %s147 = smul.u32 32, %s15
      %p148 = scmp.lt.s32.totalorder %s147, 63
      %s149 = scalar_select %p148, %s147, 63
      %s150 = smul.addr %s149, 8
      %s151 = scalar_lea.vmem %s0, %s150
      %p152 = pneg %p36
      %p153 = pneg %p33
      %p154 = pneg %p57
      %p155 = pneg %p54
      %p156 = pneg %p83
      %p157 = pneg %p80
      %s158 = smul.u32 32, %s15
      %p159 = scmp.lt.s32.totalorder %s158, 63
      %s160 = scalar_select %p159, %s158, 63
      %s161 = smul.addr %s160, 8
      %s162 = scalar_lea.vmem %s2, %s161
      %p163 = pneg %p109
      %p164 = pneg %p106
      %p165 = scmp.lt.s32.totalorder %s15, 1
      %s166 = scalar_select %p165, %s15, 1
      %s167 = smul.addr %s166, 2
      %s168 = scalar_lea.vmem %s3, %s167
      %s169 = smul.u32 32, %s15
      %p170 = scmp.lt.s32.totalorder %s169, 63
      %s171 = scalar_select %p170, %s169, 63
      %s172 = smul.addr %s171, 8
      %s173 = scalar_lea.vmem %s0, %s172
      %s174 = smul.u32 32, %s15
      %s175 = smul.u32 32, %s15
      %p176 = scmp.lt.s32.totalorder %s175, 63
      %s177 = scalar_select %p176, %s175, 63
      %s178 = smul.addr %s177, 8
      %s179 = scalar_lea.vmem %s2, %s178
      %s180 = smul.u32 32, %s15
      %p181 = scmp.lt.s32.totalorder %s15, 1
      %s182 = scalar_select %p181, %s15, 1
      %s183 = smul.addr %s182, 2
      %s184 = scalar_lea.vmem %s3, %s183
      %v185 = vlaneseq
      %v186 = vshrl.u32 %v185, 7
      %v187 = vadd.s32 %v186, 8
      %v188 = vadd.s32 %v186, 16
      %v189 = vadd.s32 %v186, 24
      %v190 = vadd.s32 %v186, 32
      %v191 = vadd.s32 %v186, 40
      %v192 = vadd.s32 %v186, 48
      %v193 = vadd.s32 %v186, 56
      %v194 = vadd.s32 %v186, 64
      %v195 = vadd.s32 %v186, 72
      %v196 = vadd.s32 %v186, 80
      %v197 = vadd.s32 %v186, 88
      %v198 = vadd.s32 %v186, 96
      %v199 = vadd.s32 %v186, 104
      %v200 = vadd.s32 %v186, 112
      %v201 = vadd.s32 %v186, 120
      %v202 = vadd.s32 %v186, 128
      %v203 = vadd.s32 %v186, 136
      %v204 = vadd.s32 %v186, 144
      %v205 = vadd.s32 %v186, 152
      %v206 = vadd.s32 %v186, 160
      %v207 = vadd.s32 %v186, 168
      %v208 = vadd.s32 %v186, 176
      %v209 = vadd.s32 %v186, 184
      %v210 = vadd.s32 %v186, 192
      %v211 = vadd.s32 %v186, 200
      %v212 = vadd.s32 %v186, 208
      %v213 = vadd.s32 %v186, 216
      %v214 = vadd.s32 %v186, 224
      %v215 = vadd.s32 %v186, 232
      %v216 = vadd.s32 %v186, 240
      %v217 = vadd.s32 %v186, 248
      %vm218 = vcmp.lt.s32.totalorder %v186, 0
      %v219 = vsub.s32 0, %v186
      %v220 = vsel %vm218, %v219, %v186
      %v221 = vshrl.u32 %v220, 4
      %v222 = vand.u32 %v220, 15
      %v223 = vsub.s32 0, %v222
      %v224 = vsel %vm218, %v223, %v222
      %vm225 = vcmp.lt.s32.totalorder %v187, 0
      %v226 = vsub.s32 0, %v187
      %v227 = vsel %vm225, %v226, %v187
      %v228 = vshrl.u32 %v227, 4
      %v229 = vand.u32 %v227, 15
      %v230 = vsub.s32 0, %v229
      %v231 = vsel %vm225, %v230, %v229
      %vm232 = vcmp.lt.s32.totalorder %v188, 0
      %v233 = vsub.s32 0, %v188
      %v234 = vsel %vm232, %v233, %v188
      %v235 = vshrl.u32 %v234, 4
      %v236 = vand.u32 %v234, 15
      %v237 = vsub.s32 0, %v236
      %v238 = vsel %vm232, %v237, %v236
      %vm239 = vcmp.lt.s32.totalorder %v189, 0
      %v240 = vsub.s32 0, %v189
      %v241 = vsel %vm239, %v240, %v189
      %v242 = vshrl.u32 %v241, 4
      %v243 = vand.u32 %v241, 15
      %v244 = vsub.s32 0, %v243
      %v245 = vsel %vm239, %v244, %v243
      %vm246 = vcmp.lt.s32.totalorder %v190, 0
      %v247 = vsub.s32 0, %v190
      %v248 = vsel %vm246, %v247, %v190
      %v249 = vshrl.u32 %v248, 4
      %v250 = vand.u32 %v248, 15
      %v251 = vsub.s32 0, %v250
      %v252 = vsel %vm246, %v251, %v250
      %vm253 = vcmp.lt.s32.totalorder %v191, 0
      %v254 = vsub.s32 0, %v191
      %v255 = vsel %vm253, %v254, %v191
      %v256 = vshrl.u32 %v255, 4
      %v257 = vand.u32 %v255, 15
      %v258 = vsub.s32 0, %v257
      %v259 = vsel %vm253, %v258, %v257
      %vm260 = vcmp.lt.s32.totalorder %v192, 0
      %v261 = vsub.s32 0, %v192
      %v262 = vsel %vm260, %v261, %v192
      %v263 = vshrl.u32 %v262, 4
      %v264 = vand.u32 %v262, 15
      %v265 = vsub.s32 0, %v264
      %v266 = vsel %vm260, %v265, %v264
      %vm267 = vcmp.lt.s32.totalorder %v193, 0
      %v268 = vsub.s32 0, %v193
      %v269 = vsel %vm267, %v268, %v193
      %v270 = vshrl.u32 %v269, 4
      %v271 = vand.u32 %v269, 15
      %v272 = vsub.s32 0, %v271
      %v273 = vsel %vm267, %v272, %v271
      %vm274 = vcmp.lt.s32.totalorder %v194, 0
      %v275 = vsub.s32 0, %v194
      %v276 = vsel %vm274, %v275, %v194
      %v277 = vshrl.u32 %v276, 4
      %v278 = vand.u32 %v276, 15
      %v279 = vsub.s32 0, %v278
      %v280 = vsel %vm274, %v279, %v278
      %vm281 = vcmp.lt.s32.totalorder %v195, 0
      %v282 = vsub.s32 0, %v195
      %v283 = vsel %vm281, %v282, %v195
      %v284 = vshrl.u32 %v283, 4
      %v285 = vand.u32 %v283, 15
      %v286 = vsub.s32 0, %v285
      %v287 = vsel %vm281, %v286, %v285
      %vm288 = vcmp.lt.s32.totalorder %v196, 0
      %v289 = vsub.s32 0, %v196
      %v290 = vsel %vm288, %v289, %v196
      %v291 = vshrl.u32 %v290, 4
      %v292 = vand.u32 %v290, 15
      %v293 = vsub.s32 0, %v292
      %v294 = vsel %vm288, %v293, %v292
      %vm295 = vcmp.lt.s32.totalorder %v197, 0
      %v296 = vsub.s32 0, %v197
      %v297 = vsel %vm295, %v296, %v197
      %v298 = vshrl.u32 %v297, 4
      %v299 = vand.u32 %v297, 15
      %v300 = vsub.s32 0, %v299
      %v301 = vsel %vm295, %v300, %v299
      %vm302 = vcmp.lt.s32.totalorder %v198, 0
      %v303 = vsub.s32 0, %v198
      %v304 = vsel %vm302, %v303, %v198
      %v305 = vshrl.u32 %v304, 4
      %v306 = vand.u32 %v304, 15
      %v307 = vsub.s32 0, %v306
      %v308 = vsel %vm302, %v307, %v306
      %vm309 = vcmp.lt.s32.totalorder %v199, 0
      %v310 = vsub.s32 0, %v199
      %v311 = vsel %vm309, %v310, %v199
      %v312 = vshrl.u32 %v311, 4
      %v313 = vand.u32 %v311, 15
      %v314 = vsub.s32 0, %v313
      %v315 = vsel %vm309, %v314, %v313
      %vm316 = vcmp.lt.s32.totalorder %v200, 0
      %v317 = vsub.s32 0, %v200
      %v318 = vsel %vm316, %v317, %v200
      %v319 = vshrl.u32 %v318, 4
      %v320 = vand.u32 %v318, 15
      %v321 = vsub.s32 0, %v320
      %v322 = vsel %vm316, %v321, %v320
      %vm323 = vcmp.lt.s32.totalorder %v201, 0
      %v324 = vsub.s32 0, %v201
      %v325 = vsel %vm323, %v324, %v201
      %v326 = vshrl.u32 %v325, 4
      %v327 = vand.u32 %v325, 15
      %v328 = vsub.s32 0, %v327
      %v329 = vsel %vm323, %v328, %v327
      %vm330 = vcmp.lt.s32.totalorder %v202, 0
      %v331 = vsub.s32 0, %v202
      %v332 = vsel %vm330, %v331, %v202
      %v333 = vshrl.u32 %v332, 4
      %v334 = vand.u32 %v332, 15
      %v335 = vsub.s32 0, %v334
      %v336 = vsel %vm330, %v335, %v334
      %vm337 = vcmp.lt.s32.totalorder %v203, 0
      %v338 = vsub.s32 0, %v203
      %v339 = vsel %vm337, %v338, %v203
      %v340 = vshrl.u32 %v339, 4
      %v341 = vand.u32 %v339, 15
      %v342 = vsub.s32 0, %v341
      %v343 = vsel %vm337, %v342, %v341
      %vm344 = vcmp.lt.s32.totalorder %v204, 0
      %v345 = vsub.s32 0, %v204
      %v346 = vsel %vm344, %v345, %v204
      %v347 = vshrl.u32 %v346, 4
      %v348 = vand.u32 %v346, 15
      %v349 = vsub.s32 0, %v348
      %v350 = vsel %vm344, %v349, %v348
      %vm351 = vcmp.lt.s32.totalorder %v205, 0
      %v352 = vsub.s32 0, %v205
      %v353 = vsel %vm351, %v352, %v205
      %v354 = vshrl.u32 %v353, 4
      %v355 = vand.u32 %v353, 15
      %v356 = vsub.s32 0, %v355
      %v357 = vsel %vm351, %v356, %v355
      %vm358 = vcmp.lt.s32.totalorder %v206, 0
      %v359 = vsub.s32 0, %v206
      %v360 = vsel %vm358, %v359, %v206
      %v361 = vshrl.u32 %v360, 4
      %v362 = vand.u32 %v360, 15
      %v363 = vsub.s32 0, %v362
      %v364 = vsel %vm358, %v363, %v362
      %vm365 = vcmp.lt.s32.totalorder %v207, 0
      %v366 = vsub.s32 0, %v207
      %v367 = vsel %vm365, %v366, %v207
      %v368 = vshrl.u32 %v367, 4
      %v369 = vand.u32 %v367, 15
      %v370 = vsub.s32 0, %v369
      %v371 = vsel %vm365, %v370, %v369
      %vm372 = vcmp.lt.s32.totalorder %v208, 0
      %v373 = vsub.s32 0, %v208
      %v374 = vsel %vm372, %v373, %v208
      %v375 = vshrl.u32 %v374, 4
      %v376 = vand.u32 %v374, 15
      %v377 = vsub.s32 0, %v376
      %v378 = vsel %vm372, %v377, %v376
      %vm379 = vcmp.lt.s32.totalorder %v209, 0
      %v380 = vsub.s32 0, %v209
      %v381 = vsel %vm379, %v380, %v209
      %v382 = vshrl.u32 %v381, 4
      %v383 = vand.u32 %v381, 15
      %v384 = vsub.s32 0, %v383
      %v385 = vsel %vm379, %v384, %v383
      %vm386 = vcmp.lt.s32.totalorder %v210, 0
      %v387 = vsub.s32 0, %v210
      %v388 = vsel %vm386, %v387, %v210
      %v389 = vshrl.u32 %v388, 4
      %v390 = vand.u32 %v388, 15
      %v391 = vsub.s32 0, %v390
      %v392 = vsel %vm386, %v391, %v390
      %vm393 = vcmp.lt.s32.totalorder %v211, 0
      %v394 = vsub.s32 0, %v211
      %v395 = vsel %vm393, %v394, %v211
      %v396 = vshrl.u32 %v395, 4
      %v397 = vand.u32 %v395, 15
      %v398 = vsub.s32 0, %v397
      %v399 = vsel %vm393, %v398, %v397
      %vm400 = vcmp.lt.s32.totalorder %v212, 0
      %v401 = vsub.s32 0, %v212
      %v402 = vsel %vm400, %v401, %v212
      %v403 = vshrl.u32 %v402, 4
      %v404 = vand.u32 %v402, 15
      %v405 = vsub.s32 0, %v404
      %v406 = vsel %vm400, %v405, %v404
      %vm407 = vcmp.lt.s32.totalorder %v213, 0
      %v408 = vsub.s32 0, %v213
      %v409 = vsel %vm407, %v408, %v213
      %v410 = vshrl.u32 %v409, 4
      %v411 = vand.u32 %v409, 15
      %v412 = vsub.s32 0, %v411
      %v413 = vsel %vm407, %v412, %v411
      %vm414 = vcmp.lt.s32.totalorder %v214, 0
      %v415 = vsub.s32 0, %v214
      %v416 = vsel %vm414, %v415, %v214
      %v417 = vshrl.u32 %v416, 4
      %v418 = vand.u32 %v416, 15
      %v419 = vsub.s32 0, %v418
      %v420 = vsel %vm414, %v419, %v418
      %vm421 = vcmp.lt.s32.totalorder %v215, 0
      %v422 = vsub.s32 0, %v215
      %v423 = vsel %vm421, %v422, %v215
      %v424 = vshrl.u32 %v423, 4
      %v425 = vand.u32 %v423, 15
      %v426 = vsub.s32 0, %v425
      %v427 = vsel %vm421, %v426, %v425
      %vm428 = vcmp.lt.s32.totalorder %v216, 0
      %v429 = vsub.s32 0, %v216
      %v430 = vsel %vm428, %v429, %v216
      %v431 = vshrl.u32 %v430, 4
      %v432 = vand.u32 %v430, 15
      %v433 = vsub.s32 0, %v432
      %v434 = vsel %vm428, %v433, %v432
      %vm435 = vcmp.lt.s32.totalorder %v217, 0
      %v436 = vsub.s32 0, %v217
      %v437 = vsel %vm435, %v436, %v217
      %v438 = vshrl.u32 %v437, 4
      %v439 = vand.u32 %v437, 15
      %v440 = vsub.s32 0, %v439
      %v441 = vsel %vm435, %v440, %v439
      %vm442 = vcmp.ne.s32.totalorder %v224, 0
      %vm443 = vcmp.ne.s32.totalorder %v231, 0
      %vm444 = vcmp.ne.s32.totalorder %v238, 0
      %vm445 = vcmp.ne.s32.totalorder %v245, 0
      %vm446 = vcmp.ne.s32.totalorder %v252, 0
      %vm447 = vcmp.ne.s32.totalorder %v259, 0
      %vm448 = vcmp.ne.s32.totalorder %v266, 0
      %vm449 = vcmp.ne.s32.totalorder %v273, 0
      %vm450 = vcmp.ne.s32.totalorder %v280, 0
      %vm451 = vcmp.ne.s32.totalorder %v287, 0
      %vm452 = vcmp.ne.s32.totalorder %v294, 0
      %vm453 = vcmp.ne.s32.totalorder %v301, 0
      %vm454 = vcmp.ne.s32.totalorder %v308, 0
      %vm455 = vcmp.ne.s32.totalorder %v315, 0
      %vm456 = vcmp.ne.s32.totalorder %v322, 0
      %vm457 = vcmp.ne.s32.totalorder %v329, 0
      %vm458 = vcmp.ne.s32.totalorder %v336, 0
      %vm459 = vcmp.ne.s32.totalorder %v343, 0
      %vm460 = vcmp.ne.s32.totalorder %v350, 0
      %vm461 = vcmp.ne.s32.totalorder %v357, 0
      %vm462 = vcmp.ne.s32.totalorder %v364, 0
      %vm463 = vcmp.ne.s32.totalorder %v371, 0
      %vm464 = vcmp.ne.s32.totalorder %v378, 0
      %vm465 = vcmp.ne.s32.totalorder %v385, 0
      %vm466 = vcmp.ne.s32.totalorder %v392, 0
      %vm467 = vcmp.ne.s32.totalorder %v399, 0
      %vm468 = vcmp.ne.s32.totalorder %v406, 0
      %vm469 = vcmp.ne.s32.totalorder %v413, 0
      %vm470 = vcmp.ne.s32.totalorder %v420, 0
      %vm471 = vcmp.ne.s32.totalorder %v427, 0
      %vm472 = vcmp.ne.s32.totalorder %v434, 0
      %vm473 = vcmp.ne.s32.totalorder %v441, 0
      %vm474 = vcmp.lt.s32.totalorder %v224, 0
      %vm475 = vcmp.lt.s32.totalorder %v231, 0
      %vm476 = vcmp.lt.s32.totalorder %v238, 0
      %vm477 = vcmp.lt.s32.totalorder %v245, 0
      %vm478 = vcmp.lt.s32.totalorder %v252, 0
      %vm479 = vcmp.lt.s32.totalorder %v259, 0
      %vm480 = vcmp.lt.s32.totalorder %v266, 0
      %vm481 = vcmp.lt.s32.totalorder %v273, 0
      %vm482 = vcmp.lt.s32.totalorder %v280, 0
      %vm483 = vcmp.lt.s32.totalorder %v287, 0
      %vm484 = vcmp.lt.s32.totalorder %v294, 0
      %vm485 = vcmp.lt.s32.totalorder %v301, 0
      %vm486 = vcmp.lt.s32.totalorder %v308, 0
      %vm487 = vcmp.lt.s32.totalorder %v315, 0
      %vm488 = vcmp.lt.s32.totalorder %v322, 0
      %vm489 = vcmp.lt.s32.totalorder %v329, 0
      %vm490 = vcmp.lt.s32.totalorder %v336, 0
      %vm491 = vcmp.lt.s32.totalorder %v343, 0
      %vm492 = vcmp.lt.s32.totalorder %v350, 0
      %vm493 = vcmp.lt.s32.totalorder %v357, 0
      %vm494 = vcmp.lt.s32.totalorder %v364, 0
      %vm495 = vcmp.lt.s32.totalorder %v371, 0
      %vm496 = vcmp.lt.s32.totalorder %v378, 0
      %vm497 = vcmp.lt.s32.totalorder %v385, 0
      %vm498 = vcmp.lt.s32.totalorder %v392, 0
      %vm499 = vcmp.lt.s32.totalorder %v399, 0
      %vm500 = vcmp.lt.s32.totalorder %v406, 0
      %vm501 = vcmp.lt.s32.totalorder %v413, 0
      %vm502 = vcmp.lt.s32.totalorder %v420, 0
      %vm503 = vcmp.lt.s32.totalorder %v427, 0
      %vm504 = vcmp.lt.s32.totalorder %v434, 0
      %vm505 = vcmp.lt.s32.totalorder %v441, 0
      %vm506 = vmand %vm474, %vm442
      %vm507 = vmand %vm475, %vm443
      %vm508 = vmand %vm476, %vm444
      %vm509 = vmand %vm477, %vm445
      %vm510 = vmand %vm478, %vm446
      %vm511 = vmand %vm479, %vm447
      %vm512 = vmand %vm480, %vm448
      %vm513 = vmand %vm481, %vm449
      %vm514 = vmand %vm482, %vm450
      %vm515 = vmand %vm483, %vm451
      %vm516 = vmand %vm484, %vm452
      %vm517 = vmand %vm485, %vm453
      %vm518 = vmand %vm486, %vm454
      %vm519 = vmand %vm487, %vm455
      %vm520 = vmand %vm488, %vm456
      %vm521 = vmand %vm489, %vm457
      %vm522 = vmand %vm490, %vm458
      %vm523 = vmand %vm491, %vm459
      %vm524 = vmand %vm492, %vm460
      %vm525 = vmand %vm493, %vm461
      %vm526 = vmand %vm494, %vm462
      %vm527 = vmand %vm495, %vm463
      %vm528 = vmand %vm496, %vm464
      %vm529 = vmand %vm497, %vm465
      %vm530 = vmand %vm498, %vm466
      %vm531 = vmand %vm499, %vm467
      %vm532 = vmand %vm500, %vm468
      %vm533 = vmand %vm501, %vm469
      %vm534 = vmand %vm502, %vm470
      %vm535 = vmand %vm503, %vm471
      %vm536 = vmand %vm504, %vm472
      %vm537 = vmand %vm505, %vm473
      %v538 = vadd.s32 %v224, 16
      %v539 = vadd.s32 %v231, 16
      %v540 = vadd.s32 %v238, 16
      %v541 = vadd.s32 %v245, 16
      %v542 = vadd.s32 %v252, 16
      %v543 = vadd.s32 %v259, 16
      %v544 = vadd.s32 %v266, 16
      %v545 = vadd.s32 %v273, 16
      %v546 = vadd.s32 %v280, 16
      %v547 = vadd.s32 %v287, 16
      %v548 = vadd.s32 %v294, 16
      %v549 = vadd.s32 %v301, 16
      %v550 = vadd.s32 %v308, 16
      %v551 = vadd.s32 %v315, 16
      %v552 = vadd.s32 %v322, 16
      %v553 = vadd.s32 %v329, 16
      %v554 = vadd.s32 %v336, 16
      %v555 = vadd.s32 %v343, 16
      %v556 = vadd.s32 %v350, 16
      %v557 = vadd.s32 %v357, 16
      %v558 = vadd.s32 %v364, 16
      %v559 = vadd.s32 %v371, 16
      %v560 = vadd.s32 %v378, 16
      %v561 = vadd.s32 %v385, 16
      %v562 = vadd.s32 %v392, 16
      %v563 = vadd.s32 %v399, 16
      %v564 = vadd.s32 %v406, 16
      %v565 = vadd.s32 %v413, 16
      %v566 = vadd.s32 %v420, 16
      %v567 = vadd.s32 %v427, 16
      %v568 = vadd.s32 %v434, 16
      %v569 = vadd.s32 %v441, 16
      %v570 = vsel %vm506, %v538, %v224
      %v571 = vsel %vm507, %v539, %v231
      %v572 = vsel %vm508, %v540, %v238
      %v573 = vsel %vm509, %v541, %v245
      %v574 = vsel %vm510, %v542, %v252
      %v575 = vsel %vm511, %v543, %v259
      %v576 = vsel %vm512, %v544, %v266
      %v577 = vsel %vm513, %v545, %v273
      %v578 = vsel %vm514, %v546, %v280
      %v579 = vsel %vm515, %v547, %v287
      %v580 = vsel %vm516, %v548, %v294
      %v581 = vsel %vm517, %v549, %v301
      %v582 = vsel %vm518, %v550, %v308
      %v583 = vsel %vm519, %v551, %v315
      %v584 = vsel %vm520, %v552, %v322
      %v585 = vsel %vm521, %v553, %v329
      %v586 = vsel %vm522, %v554, %v336
      %v587 = vsel %vm523, %v555, %v343
      %v588 = vsel %vm524, %v556, %v350
      %v589 = vsel %vm525, %v557, %v357
      %v590 = vsel %vm526, %v558, %v364
      %v591 = vsel %vm527, %v559, %v371
      %v592 = vsel %vm528, %v560, %v378
      %v593 = vsel %vm529, %v561, %v385
      %v594 = vsel %vm530, %v562, %v392
      %v595 = vsel %vm531, %v563, %v399
      %v596 = vsel %vm532, %v564, %v406
      %v597 = vsel %vm533, %v565, %v413
      %v598 = vsel %vm534, %v566, %v420
      %v599 = vsel %vm535, %v567, %v427
      %v600 = vsel %vm536, %v568, %v434
      %v601 = vsel %vm537, %v569, %v441
      %vm602 = vcmp.eq.s32.totalorder %v570, 0
      %vm603 = vcmp.eq.s32.totalorder %v571, 0
      %vm604 = vcmp.eq.s32.totalorder %v572, 0
      %vm605 = vcmp.eq.s32.totalorder %v573, 0
      %vm606 = vcmp.eq.s32.totalorder %v574, 0
      %vm607 = vcmp.eq.s32.totalorder %v575, 0
      %vm608 = vcmp.eq.s32.totalorder %v576, 0
      %vm609 = vcmp.eq.s32.totalorder %v577, 0
      %vm610 = vcmp.eq.s32.totalorder %v578, 0
      %vm611 = vcmp.eq.s32.totalorder %v579, 0
      %vm612 = vcmp.eq.s32.totalorder %v580, 0
      %vm613 = vcmp.eq.s32.totalorder %v581, 0
      %vm614 = vcmp.eq.s32.totalorder %v582, 0
      %vm615 = vcmp.eq.s32.totalorder %v583, 0
      %vm616 = vcmp.eq.s32.totalorder %v584, 0
      %vm617 = vcmp.eq.s32.totalorder %v585, 0
      %vm618 = vcmp.eq.s32.totalorder %v586, 0
      %vm619 = vcmp.eq.s32.totalorder %v587, 0
      %vm620 = vcmp.eq.s32.totalorder %v588, 0
      %vm621 = vcmp.eq.s32.totalorder %v589, 0
      %vm622 = vcmp.eq.s32.totalorder %v590, 0
      %vm623 = vcmp.eq.s32.totalorder %v591, 0
      %vm624 = vcmp.eq.s32.totalorder %v592, 0
      %vm625 = vcmp.eq.s32.totalorder %v593, 0
      %vm626 = vcmp.eq.s32.totalorder %v594, 0
      %vm627 = vcmp.eq.s32.totalorder %v595, 0
      %vm628 = vcmp.eq.s32.totalorder %v596, 0
      %vm629 = vcmp.eq.s32.totalorder %v597, 0
      %vm630 = vcmp.eq.s32.totalorder %v598, 0
      %vm631 = vcmp.eq.s32.totalorder %v599, 0
      %vm632 = vcmp.eq.s32.totalorder %v600, 0
      %vm633 = vcmp.eq.s32.totalorder %v601, 0
      %vm634 = vcmp.eq.s32.totalorder %v570, 15
      %vm635 = vcmp.eq.s32.totalorder %v571, 15
      %vm636 = vcmp.eq.s32.totalorder %v572, 15
      %vm637 = vcmp.eq.s32.totalorder %v573, 15
      %vm638 = vcmp.eq.s32.totalorder %v574, 15
      %vm639 = vcmp.eq.s32.totalorder %v575, 15
      %vm640 = vcmp.eq.s32.totalorder %v576, 15
      %vm641 = vcmp.eq.s32.totalorder %v577, 15
      %vm642 = vcmp.eq.s32.totalorder %v578, 15
      %vm643 = vcmp.eq.s32.totalorder %v579, 15
      %vm644 = vcmp.eq.s32.totalorder %v580, 15
      %vm645 = vcmp.eq.s32.totalorder %v581, 15
      %vm646 = vcmp.eq.s32.totalorder %v582, 15
      %vm647 = vcmp.eq.s32.totalorder %v583, 15
      %vm648 = vcmp.eq.s32.totalorder %v584, 15
      %vm649 = vcmp.eq.s32.totalorder %v585, 15
      %vm650 = vcmp.eq.s32.totalorder %v586, 15
      %vm651 = vcmp.eq.s32.totalorder %v587, 15
      %vm652 = vcmp.eq.s32.totalorder %v588, 15
      %vm653 = vcmp.eq.s32.totalorder %v589, 15
      %vm654 = vcmp.eq.s32.totalorder %v590, 15
      %vm655 = vcmp.eq.s32.totalorder %v591, 15
      %vm656 = vcmp.eq.s32.totalorder %v592, 15
      %vm657 = vcmp.eq.s32.totalorder %v593, 15
      %vm658 = vcmp.eq.s32.totalorder %v594, 15
      %vm659 = vcmp.eq.s32.totalorder %v595, 15
      %vm660 = vcmp.eq.s32.totalorder %v596, 15
      %vm661 = vcmp.eq.s32.totalorder %v597, 15
      %vm662 = vcmp.eq.s32.totalorder %v598, 15
      %vm663 = vcmp.eq.s32.totalorder %v599, 15
      %vm664 = vcmp.eq.s32.totalorder %v600, 15
      %vm665 = vcmp.eq.s32.totalorder %v601, 15
      %v666 = vld [vmem:[%s173] sm:$0xff]
      %v667 = vld [vmem:[%s173 + $0x8] sm:$0xff]
      %v668 = vld [vmem:[%s173 + $0x10] sm:$0xff]
      %v669 = vld [vmem:[%s173 + $0x18] sm:$0xff]
      %v670 = vld [vmem:[%s173 + $0x20] sm:$0xff]
      %v671 = vld [vmem:[%s173 + $0x28] sm:$0xff]
      %v672 = vld [vmem:[%s173 + $0x30] sm:$0xff]
      %v673 = vld [vmem:[%s173 + $0x38] sm:$0xff]
      %v674 = vld [vmem:[%s173 + $0x40] sm:$0xff]
      %v675 = vld [vmem:[%s173 + $0x48] sm:$0xff]
      %v676 = vld [vmem:[%s173 + $0x50] sm:$0xff]
      %v677 = vld [vmem:[%s173 + $0x58] sm:$0xff]
      %v678 = vld [vmem:[%s173 + $0x60] sm:$0xff]
      %v679 = vld [vmem:[%s173 + $0x68] sm:$0xff]
      %v680 = vld [vmem:[%s173 + $0x70] sm:$0xff]
      %v681 = vld [vmem:[%s173 + $0x78] sm:$0xff]
      %v682 = vld [vmem:[%s173 + $0x80] sm:$0xff]
      %v683 = vld [vmem:[%s173 + $0x88] sm:$0xff]
      %v684 = vld [vmem:[%s173 + $0x90] sm:$0xff]
      %v685 = vld [vmem:[%s173 + $0x98] sm:$0xff]
      %v686 = vld [vmem:[%s173 + $0xa0] sm:$0xff]
      %v687 = vld [vmem:[%s173 + $0xa8] sm:$0xff]
      %v688 = vld [vmem:[%s173 + $0xb0] sm:$0xff]
      %v689 = vld [vmem:[%s173 + $0xb8] sm:$0xff]
      %v690 = vld [vmem:[%s173 + $0xc0] sm:$0xff]
      %v691 = vld [vmem:[%s173 + $0xc8] sm:$0xff]
      %v692 = vld [vmem:[%s173 + $0xd0] sm:$0xff]
      %v693 = vld [vmem:[%s173 + $0xd8] sm:$0xff]
      %v694 = vld [vmem:[%s173 + $0xe0] sm:$0xff]
      %v695 = vld [vmem:[%s173 + $0xe8] sm:$0xff]
      %v696 = vld [vmem:[%s173 + $0xf0] sm:$0xff]
      %v697 = vld [vmem:[%s173 + $0xf8] sm:$0xff]
      %v698 = vrot.slane %v666, 7
      %v699 = vrot.slane %v667, 7
      %v700 = vrot.slane %v668, 7
      %v701 = vrot.slane %v669, 7
      %v702 = vrot.slane %v670, 7
      %v703 = vrot.slane %v671, 7
      %v704 = vrot.slane %v672, 7
      %v705 = vrot.slane %v673, 7
      %v706 = vrot.slane %v674, 7
      %v707 = vrot.slane %v675, 7
      %v708 = vrot.slane %v676, 7
      %v709 = vrot.slane %v677, 7
      %v710 = vrot.slane %v678, 7
      %v711 = vrot.slane %v679, 7
      %v712 = vrot.slane %v680, 7
      %v713 = vrot.slane %v681, 7
      %v714 = vrot.slane %v682, 7
      %v715 = vrot.slane %v683, 7
      %v716 = vrot.slane %v684, 7
      %v717 = vrot.slane %v685, 7
      %v718 = vrot.slane %v686, 7
      %v719 = vrot.slane %v687, 7
      %v720 = vrot.slane %v688, 7
      %v721 = vrot.slane %v689, 7
      %v722 = vrot.slane %v690, 7
      %v723 = vrot.slane %v691, 7
      %v724 = vrot.slane %v692, 7
      %v725 = vrot.slane %v693, 7
      %v726 = vrot.slane %v694, 7
      %v727 = vrot.slane %v695, 7
      %v728 = vrot.slane %v696, 7
      %v729 = vrot.slane %v697, 7
      %vm730 = vcmp.lt.s32.totalorder %v186, 1
      %v731 = vsel %vm730, %v728, %v729
      %v732 = vsel %vm730, %v727, %v728
      %v733 = vsel %vm730, %v726, %v727
      %v734 = vsel %vm730, %v725, %v726
      %v735 = vsel %vm730, %v724, %v725
      %v736 = vsel %vm730, %v723, %v724
      %v737 = vsel %vm730, %v722, %v723
      %v738 = vsel %vm730, %v721, %v722
      %v739 = vsel %vm730, %v720, %v721
      %v740 = vsel %vm730, %v719, %v720
      %v741 = vsel %vm730, %v718, %v719
      %v742 = vsel %vm730, %v717, %v718
      %v743 = vsel %vm730, %v716, %v717
      %v744 = vsel %vm730, %v715, %v716
      %v745 = vsel %vm730, %v714, %v715
      %v746 = vsel %vm730, %v713, %v714
      %v747 = vsel %vm730, %v712, %v713
      %v748 = vsel %vm730, %v711, %v712
      %v749 = vsel %vm730, %v710, %v711
      %v750 = vsel %vm730, %v709, %v710
      %v751 = vsel %vm730, %v708, %v709
      %v752 = vsel %vm730, %v707, %v708
      %v753 = vsel %vm730, %v706, %v707
      %v754 = vsel %vm730, %v705, %v706
      %v755 = vsel %vm730, %v704, %v705
      %v756 = vsel %vm730, %v703, %v704
      %v757 = vsel %vm730, %v702, %v703
      %v758 = vsel %vm730, %v701, %v702
      %v759 = vsel %vm730, %v700, %v701
      %v760 = vsel %vm730, %v699, %v700
      %v761 = vsel %vm730, %v698, %v699
      %v762 = vsel %vm730, %v729, %v698
      %v763 = vsel %vm602, 1, 0
      %v764 = vsel %vm603, 1, 0
      %v765 = vsel %vm604, 1, 0
      %v766 = vsel %vm605, 1, 0
      %v767 = vsel %vm606, 1, 0
      %v768 = vsel %vm607, 1, 0
      %v769 = vsel %vm608, 1, 0
      %v770 = vsel %vm609, 1, 0
      %v771 = vsel %vm610, 1, 0
      %v772 = vsel %vm611, 1, 0
      %v773 = vsel %vm612, 1, 0
      %v774 = vsel %vm613, 1, 0
      %v775 = vsel %vm614, 1, 0
      %v776 = vsel %vm615, 1, 0
      %v777 = vsel %vm616, 1, 0
      %v778 = vsel %vm617, 1, 0
      %v779 = vsel %vm618, 1, 0
      %v780 = vsel %vm619, 1, 0
      %v781 = vsel %vm620, 1, 0
      %v782 = vsel %vm621, 1, 0
      %v783 = vsel %vm622, 1, 0
      %v784 = vsel %vm623, 1, 0
      %v785 = vsel %vm624, 1, 0
      %v786 = vsel %vm625, 1, 0
      %v787 = vsel %vm626, 1, 0
      %v788 = vsel %vm627, 1, 0
      %v789 = vsel %vm628, 1, 0
      %v790 = vsel %vm629, 1, 0
      %v791 = vsel %vm630, 1, 0
      %v792 = vsel %vm631, 1, 0
      %v793 = vsel %vm632, 1, 0
      %v794 = vsel %vm633, 1, 0
      %vm795 = vcmp.eq.s32.totalorder %v763, 1
      %vm796 = vcmp.eq.s32.totalorder %v764, 1
      %vm797 = vcmp.eq.s32.totalorder %v765, 1
      %vm798 = vcmp.eq.s32.totalorder %v766, 1
      %vm799 = vcmp.eq.s32.totalorder %v767, 1
      %vm800 = vcmp.eq.s32.totalorder %v768, 1
      %vm801 = vcmp.eq.s32.totalorder %v769, 1
      %vm802 = vcmp.eq.s32.totalorder %v770, 1
      %vm803 = vcmp.eq.s32.totalorder %v771, 1
      %vm804 = vcmp.eq.s32.totalorder %v772, 1
      %vm805 = vcmp.eq.s32.totalorder %v773, 1
      %vm806 = vcmp.eq.s32.totalorder %v774, 1
      %vm807 = vcmp.eq.s32.totalorder %v775, 1
      %vm808 = vcmp.eq.s32.totalorder %v776, 1
      %vm809 = vcmp.eq.s32.totalorder %v777, 1
      %vm810 = vcmp.eq.s32.totalorder %v778, 1
      %vm811 = vcmp.eq.s32.totalorder %v779, 1
      %vm812 = vcmp.eq.s32.totalorder %v780, 1
      %vm813 = vcmp.eq.s32.totalorder %v781, 1
      %vm814 = vcmp.eq.s32.totalorder %v782, 1
      %vm815 = vcmp.eq.s32.totalorder %v783, 1
      %vm816 = vcmp.eq.s32.totalorder %v784, 1
      %vm817 = vcmp.eq.s32.totalorder %v785, 1
      %vm818 = vcmp.eq.s32.totalorder %v786, 1
      %vm819 = vcmp.eq.s32.totalorder %v787, 1
      %vm820 = vcmp.eq.s32.totalorder %v788, 1
      %vm821 = vcmp.eq.s32.totalorder %v789, 1
      %vm822 = vcmp.eq.s32.totalorder %v790, 1
      %vm823 = vcmp.eq.s32.totalorder %v791, 1
      %vm824 = vcmp.eq.s32.totalorder %v792, 1
      %vm825 = vcmp.eq.s32.totalorder %v793, 1
      %vm826 = vcmp.eq.s32.totalorder %v794, 1
      %v827 = vsel %vm795, 0.0, %v762
      %v828 = vsel %vm796, 0.0, %v761
      %v829 = vsel %vm797, 0.0, %v760
      %v830 = vsel %vm798, 0.0, %v759
      %v831 = vsel %vm799, 0.0, %v758
      %v832 = vsel %vm800, 0.0, %v757
      %v833 = vsel %vm801, 0.0, %v756
      %v834 = vsel %vm802, 0.0, %v755
      %v835 = vsel %vm803, 0.0, %v754
      %v836 = vsel %vm804, 0.0, %v753
      %v837 = vsel %vm805, 0.0, %v752
      %v838 = vsel %vm806, 0.0, %v751
      %v839 = vsel %vm807, 0.0, %v750
      %v840 = vsel %vm808, 0.0, %v749
      %v841 = vsel %vm809, 0.0, %v748
      %v842 = vsel %vm810, 0.0, %v747
      %v843 = vsel %vm811, 0.0, %v746
      %v844 = vsel %vm812, 0.0, %v745
      %v845 = vsel %vm813, 0.0, %v744
      %v846 = vsel %vm814, 0.0, %v743
      %v847 = vsel %vm815, 0.0, %v742
      %v848 = vsel %vm816, 0.0, %v741
      %v849 = vsel %vm817, 0.0, %v740
      %v850 = vsel %vm818, 0.0, %v739
      %v851 = vsel %vm819, 0.0, %v738
      %v852 = vsel %vm820, 0.0, %v737
      %v853 = vsel %vm821, 0.0, %v736
      %v854 = vsel %vm822, 0.0, %v735
      %v855 = vsel %vm823, 0.0, %v734
      %v856 = vsel %vm824, 0.0, %v733
      %v857 = vsel %vm825, 0.0, %v732
      %v858 = vsel %vm826, 0.0, %v731
      %v859 = vrot.slane %v666, 1
      %v860 = vrot.slane %v667, 1
      %v861 = vrot.slane %v668, 1
      %v862 = vrot.slane %v669, 1
      %v863 = vrot.slane %v670, 1
      %v864 = vrot.slane %v671, 1
      %v865 = vrot.slane %v672, 1
      %v866 = vrot.slane %v673, 1
      %v867 = vrot.slane %v674, 1
      %v868 = vrot.slane %v675, 1
      %v869 = vrot.slane %v676, 1
      %v870 = vrot.slane %v677, 1
      %v871 = vrot.slane %v678, 1
      %v872 = vrot.slane %v679, 1
      %v873 = vrot.slane %v680, 1
      %v874 = vrot.slane %v681, 1
      %v875 = vrot.slane %v682, 1
      %v876 = vrot.slane %v683, 1
      %v877 = vrot.slane %v684, 1
      %v878 = vrot.slane %v685, 1
      %v879 = vrot.slane %v686, 1
      %v880 = vrot.slane %v687, 1
      %v881 = vrot.slane %v688, 1
      %v882 = vrot.slane %v689, 1
      %v883 = vrot.slane %v690, 1
      %v884 = vrot.slane %v691, 1
      %v885 = vrot.slane %v692, 1
      %v886 = vrot.slane %v693, 1
      %v887 = vrot.slane %v694, 1
      %v888 = vrot.slane %v695, 1
      %v889 = vrot.slane %v696, 1
      %v890 = vrot.slane %v697, 1
      %vm891 = vcmp.lt.s32.totalorder %v186, 7
      %v892 = vsel %vm891, %v889, %v890
      %v893 = vsel %vm891, %v888, %v889
      %v894 = vsel %vm891, %v887, %v888
      %v895 = vsel %vm891, %v886, %v887
      %v896 = vsel %vm891, %v885, %v886
      %v897 = vsel %vm891, %v884, %v885
      %v898 = vsel %vm891, %v883, %v884
      %v899 = vsel %vm891, %v882, %v883
      %v900 = vsel %vm891, %v881, %v882
      %v901 = vsel %vm891, %v880, %v881
      %v902 = vsel %vm891, %v879, %v880
      %v903 = vsel %vm891, %v878, %v879
      %v904 = vsel %vm891, %v877, %v878
      %v905 = vsel %vm891, %v876, %v877
      %v906 = vsel %vm891, %v875, %v876
      %v907 = vsel %vm891, %v874, %v875
      %v908 = vsel %vm891, %v873, %v874
      %v909 = vsel %vm891, %v872, %v873
      %v910 = vsel %vm891, %v871, %v872
      %v911 = vsel %vm891, %v870, %v871
      %v912 = vsel %vm891, %v869, %v870
      %v913 = vsel %vm891, %v868, %v869
      %v914 = vsel %vm891, %v867, %v868
      %v915 = vsel %vm891, %v866, %v867
      %v916 = vsel %vm891, %v865, %v866
      %v917 = vsel %vm891, %v864, %v865
      %v918 = vsel %vm891, %v863, %v864
      %v919 = vsel %vm891, %v862, %v863
      %v920 = vsel %vm891, %v861, %v862
      %v921 = vsel %vm891, %v860, %v861
      %v922 = vsel %vm891, %v859, %v860
      %v923 = vsel %vm891, %v890, %v859
      %v924 = vsel %vm634, 1, 0
      %v925 = vsel %vm635, 1, 0
      %v926 = vsel %vm636, 1, 0
      %v927 = vsel %vm637, 1, 0
      %v928 = vsel %vm638, 1, 0
      %v929 = vsel %vm639, 1, 0
      %v930 = vsel %vm640, 1, 0
      %v931 = vsel %vm641, 1, 0
      %v932 = vsel %vm642, 1, 0
      %v933 = vsel %vm643, 1, 0
      %v934 = vsel %vm644, 1, 0
      %v935 = vsel %vm645, 1, 0
      %v936 = vsel %vm646, 1, 0
      %v937 = vsel %vm647, 1, 0
      %v938 = vsel %vm648, 1, 0
      %v939 = vsel %vm649, 1, 0
      %v940 = vsel %vm650, 1, 0
      %v941 = vsel %vm651, 1, 0
      %v942 = vsel %vm652, 1, 0
      %v943 = vsel %vm653, 1, 0
      %v944 = vsel %vm654, 1, 0
      %v945 = vsel %vm655, 1, 0
      %v946 = vsel %vm656, 1, 0
      %v947 = vsel %vm657, 1, 0
      %v948 = vsel %vm658, 1, 0
      %v949 = vsel %vm659, 1, 0
      %v950 = vsel %vm660, 1, 0
      %v951 = vsel %vm661, 1, 0
      %v952 = vsel %vm662, 1, 0
      %v953 = vsel %vm663, 1, 0
      %v954 = vsel %vm664, 1, 0
      %v955 = vsel %vm665, 1, 0
      %vm956 = vcmp.eq.s32.totalorder %v924, 1
      %vm957 = vcmp.eq.s32.totalorder %v925, 1
      %vm958 = vcmp.eq.s32.totalorder %v926, 1
      %vm959 = vcmp.eq.s32.totalorder %v927, 1
      %vm960 = vcmp.eq.s32.totalorder %v928, 1
      %vm961 = vcmp.eq.s32.totalorder %v929, 1
      %vm962 = vcmp.eq.s32.totalorder %v930, 1
      %vm963 = vcmp.eq.s32.totalorder %v931, 1
      %vm964 = vcmp.eq.s32.totalorder %v932, 1
      %vm965 = vcmp.eq.s32.totalorder %v933, 1
      %vm966 = vcmp.eq.s32.totalorder %v934, 1
      %vm967 = vcmp.eq.s32.totalorder %v935, 1
      %vm968 = vcmp.eq.s32.totalorder %v936, 1
      %vm969 = vcmp.eq.s32.totalorder %v937, 1
      %vm970 = vcmp.eq.s32.totalorder %v938, 1
      %vm971 = vcmp.eq.s32.totalorder %v939, 1
      %vm972 = vcmp.eq.s32.totalorder %v940, 1
      %vm973 = vcmp.eq.s32.totalorder %v941, 1
      %vm974 = vcmp.eq.s32.totalorder %v942, 1
      %vm975 = vcmp.eq.s32.totalorder %v943, 1
      %vm976 = vcmp.eq.s32.totalorder %v944, 1
      %vm977 = vcmp.eq.s32.totalorder %v945, 1
      %vm978 = vcmp.eq.s32.totalorder %v946, 1
      %vm979 = vcmp.eq.s32.totalorder %v947, 1
      %vm980 = vcmp.eq.s32.totalorder %v948, 1
      %vm981 = vcmp.eq.s32.totalorder %v949, 1
      %vm982 = vcmp.eq.s32.totalorder %v950, 1
      %vm983 = vcmp.eq.s32.totalorder %v951, 1
      %vm984 = vcmp.eq.s32.totalorder %v952, 1
      %vm985 = vcmp.eq.s32.totalorder %v953, 1
      %vm986 = vcmp.eq.s32.totalorder %v954, 1
      %vm987 = vcmp.eq.s32.totalorder %v955, 1
      %v988 = vsel %vm956, 0.0, %v922
      %v989 = vsel %vm957, 0.0, %v921
      %v990 = vsel %vm958, 0.0, %v920
      %v991 = vsel %vm959, 0.0, %v919
      %v992 = vsel %vm960, 0.0, %v918
      %v993 = vsel %vm961, 0.0, %v917
      %v994 = vsel %vm962, 0.0, %v916
      %v995 = vsel %vm963, 0.0, %v915
      %v996 = vsel %vm964, 0.0, %v914
      %v997 = vsel %vm965, 0.0, %v913
      %v998 = vsel %vm966, 0.0, %v912
      %v999 = vsel %vm967, 0.0, %v911
      %v1000 = vsel %vm968, 0.0, %v910
      %v1001 = vsel %vm969, 0.0, %v909
      %v1002 = vsel %vm970, 0.0, %v908
      %v1003 = vsel %vm971, 0.0, %v907
      %v1004 = vsel %vm972, 0.0, %v906
      %v1005 = vsel %vm973, 0.0, %v905
      %v1006 = vsel %vm974, 0.0, %v904
      %v1007 = vsel %vm975, 0.0, %v903
      %v1008 = vsel %vm976, 0.0, %v902
      %v1009 = vsel %vm977, 0.0, %v901
      %v1010 = vsel %vm978, 0.0, %v900
      %v1011 = vsel %vm979, 0.0, %v899
      %v1012 = vsel %vm980, 0.0, %v898
      %v1013 = vsel %vm981, 0.0, %v897
      %v1014 = vsel %vm982, 0.0, %v896
      %v1015 = vsel %vm983, 0.0, %v895
      %v1016 = vsel %vm984, 0.0, %v894
      %v1017 = vsel %vm985, 0.0, %v893
      %v1018 = vsel %vm986, 0.0, %v892
      %v1019 = vsel %vm987, 0.0, %v923
      %v1020 = vpack.c.bf16 %v827, %v827
      %v1021 = vpack.c.bf16 %v828, %v828
      %v1022 = vpack.c.bf16 %v829, %v829
      %v1023 = vpack.c.bf16 %v830, %v830
      %v1024 = vpack.c.bf16 %v831, %v831
      %v1025 = vpack.c.bf16 %v832, %v832
      %v1026 = vpack.c.bf16 %v833, %v833
      %v1027 = vpack.c.bf16 %v834, %v834
      %v1028 = vpack.c.bf16 %v835, %v835
      %v1029 = vpack.c.bf16 %v836, %v836
      %v1030 = vpack.c.bf16 %v837, %v837
      %v1031 = vpack.c.bf16 %v838, %v838
      %v1032 = vpack.c.bf16 %v839, %v839
      %v1033 = vpack.c.bf16 %v840, %v840
      %v1034 = vpack.c.bf16 %v841, %v841
      %v1035 = vpack.c.bf16 %v842, %v842
      %v1036 = vpack.c.bf16 %v843, %v843
      %v1037 = vpack.c.bf16 %v844, %v844
      %v1038 = vpack.c.bf16 %v845, %v845
      %v1039 = vpack.c.bf16 %v846, %v846
      %v1040 = vpack.c.bf16 %v847, %v847
      %v1041 = vpack.c.bf16 %v848, %v848
      %v1042 = vpack.c.bf16 %v849, %v849
      %v1043 = vpack.c.bf16 %v850, %v850
      %v1044 = vpack.c.bf16 %v851, %v851
      %v1045 = vpack.c.bf16 %v852, %v852
      %v1046 = vpack.c.bf16 %v853, %v853
      %v1047 = vpack.c.bf16 %v854, %v854
      %v1048 = vpack.c.bf16 %v855, %v855
      %v1049 = vpack.c.bf16 %v856, %v856
      %v1050 = vpack.c.bf16 %v857, %v857
      %v1051 = vpack.c.bf16 %v858, %v858
      %v1052 = vpack.c.bf16 %v666, %v666
      %v1053 = vpack.c.bf16 %v667, %v667
      %v1054 = vpack.c.bf16 %v668, %v668
      %v1055 = vpack.c.bf16 %v669, %v669
      %v1056 = vpack.c.bf16 %v670, %v670
      %v1057 = vpack.c.bf16 %v671, %v671
      %v1058 = vpack.c.bf16 %v672, %v672
      %v1059 = vpack.c.bf16 %v673, %v673
      %v1060 = vpack.c.bf16 %v674, %v674
      %v1061 = vpack.c.bf16 %v675, %v675
      %v1062 = vpack.c.bf16 %v676, %v676
      %v1063 = vpack.c.bf16 %v677, %v677
      %v1064 = vpack.c.bf16 %v678, %v678
      %v1065 = vpack.c.bf16 %v679, %v679
      %v1066 = vpack.c.bf16 %v680, %v680
      %v1067 = vpack.c.bf16 %v681, %v681
      %v1068 = vpack.c.bf16 %v682, %v682
      %v1069 = vpack.c.bf16 %v683, %v683
      %v1070 = vpack.c.bf16 %v684, %v684
      %v1071 = vpack.c.bf16 %v685, %v685
      %v1072 = vpack.c.bf16 %v686, %v686
      %v1073 = vpack.c.bf16 %v687, %v687
      %v1074 = vpack.c.bf16 %v688, %v688
      %v1075 = vpack.c.bf16 %v689, %v689
      %v1076 = vpack.c.bf16 %v690, %v690
      %v1077 = vpack.c.bf16 %v691, %v691
      %v1078 = vpack.c.bf16 %v692, %v692
      %v1079 = vpack.c.bf16 %v693, %v693
      %v1080 = vpack.c.bf16 %v694, %v694
      %v1081 = vpack.c.bf16 %v695, %v695
      %v1082 = vpack.c.bf16 %v696, %v696
      %v1083 = vpack.c.bf16 %v697, %v697
      %v1084 = vpack.c.bf16 %v988, %v988
      %v1085 = vpack.c.bf16 %v989, %v989
      %v1086 = vpack.c.bf16 %v990, %v990
      %v1087 = vpack.c.bf16 %v991, %v991
      %v1088 = vpack.c.bf16 %v992, %v992
      %v1089 = vpack.c.bf16 %v993, %v993
      %v1090 = vpack.c.bf16 %v994, %v994
      %v1091 = vpack.c.bf16 %v995, %v995
      %v1092 = vpack.c.bf16 %v996, %v996
      %v1093 = vpack.c.bf16 %v997, %v997
      %v1094 = vpack.c.bf16 %v998, %v998
      %v1095 = vpack.c.bf16 %v999, %v999
      %v1096 = vpack.c.bf16 %v1000, %v1000
      %v1097 = vpack.c.bf16 %v1001, %v1001
      %v1098 = vpack.c.bf16 %v1002, %v1002
      %v1099 = vpack.c.bf16 %v1003, %v1003
      %v1100 = vpack.c.bf16 %v1004, %v1004
      %v1101 = vpack.c.bf16 %v1005, %v1005
      %v1102 = vpack.c.bf16 %v1006, %v1006
      %v1103 = vpack.c.bf16 %v1007, %v1007
      %v1104 = vpack.c.bf16 %v1008, %v1008
      %v1105 = vpack.c.bf16 %v1009, %v1009
      %v1106 = vpack.c.bf16 %v1010, %v1010
      %v1107 = vpack.c.bf16 %v1011, %v1011
      %v1108 = vpack.c.bf16 %v1012, %v1012
      %v1109 = vpack.c.bf16 %v1013, %v1013
      %v1110 = vpack.c.bf16 %v1014, %v1014
      %v1111 = vpack.c.bf16 %v1015, %v1015
      %v1112 = vpack.c.bf16 %v1016, %v1016
      %v1113 = vpack.c.bf16 %v1017, %v1017
      %v1114 = vpack.c.bf16 %v1018, %v1018
      %v1115 = vpack.c.bf16 %v1019, %v1019
      %v1148 = vunpack.c.l.b16 %v1020
      %v1149 = vunpack.c.l.b16 %v1021
      %v1150 = vunpack.c.l.b16 %v1022
      %v1151 = vunpack.c.l.b16 %v1023
      %v1152 = vunpack.c.l.b16 %v1024
      %v1153 = vunpack.c.l.b16 %v1025
      %v1154 = vunpack.c.l.b16 %v1026
      %v1155 = vunpack.c.l.b16 %v1027
      %v1156 = vunpack.c.l.b16 %v1028
      %v1157 = vunpack.c.l.b16 %v1029
      %v1158 = vunpack.c.l.b16 %v1030
      %v1159 = vunpack.c.l.b16 %v1031
      %v1160 = vunpack.c.l.b16 %v1032
      %v1161 = vunpack.c.l.b16 %v1033
      %v1162 = vunpack.c.l.b16 %v1034
      %v1163 = vunpack.c.l.b16 %v1035
      %v1164 = vunpack.c.l.b16 %v1036
      %v1165 = vunpack.c.l.b16 %v1037
      %v1166 = vunpack.c.l.b16 %v1038
      %v1167 = vunpack.c.l.b16 %v1039
      %v1168 = vunpack.c.l.b16 %v1040
      %v1169 = vunpack.c.l.b16 %v1041
      %v1170 = vunpack.c.l.b16 %v1042
      %v1171 = vunpack.c.l.b16 %v1043
      %v1172 = vunpack.c.l.b16 %v1044
      %v1173 = vunpack.c.l.b16 %v1045
      %v1174 = vunpack.c.l.b16 %v1046
      %v1175 = vunpack.c.l.b16 %v1047
      %v1176 = vunpack.c.l.b16 %v1048
      %v1177 = vunpack.c.l.b16 %v1049
      %v1178 = vunpack.c.l.b16 %v1050
      %v1179 = vunpack.c.l.b16 %v1051
      %v1180 = vpack.c.b16 %v1149, %v1148
      %v1181 = vpack.c.b16 %v1151, %v1150
      %v1182 = vpack.c.b16 %v1153, %v1152
      %v1183 = vpack.c.b16 %v1155, %v1154
      %v1184 = vpack.c.b16 %v1157, %v1156
      %v1185 = vpack.c.b16 %v1159, %v1158
      %v1186 = vpack.c.b16 %v1161, %v1160
      %v1187 = vpack.c.b16 %v1163, %v1162
      %v1188 = vpack.c.b16 %v1165, %v1164
      %v1189 = vpack.c.b16 %v1167, %v1166
      %v1190 = vpack.c.b16 %v1169, %v1168
      %v1191 = vpack.c.b16 %v1171, %v1170
      %v1192 = vpack.c.b16 %v1173, %v1172
      %v1193 = vpack.c.b16 %v1175, %v1174
      %v1194 = vpack.c.b16 %v1177, %v1176
      %v1195 = vpack.c.b16 %v1179, %v1178
      %v1244 = vunpack.c.l.b16 %v1052
      %v1245 = vunpack.c.l.b16 %v1053
      %v1246 = vunpack.c.l.b16 %v1054
      %v1247 = vunpack.c.l.b16 %v1055
      %v1248 = vunpack.c.l.b16 %v1056
      %v1249 = vunpack.c.l.b16 %v1057
      %v1250 = vunpack.c.l.b16 %v1058
      %v1251 = vunpack.c.l.b16 %v1059
      %v1252 = vunpack.c.l.b16 %v1060
      %v1253 = vunpack.c.l.b16 %v1061
      %v1254 = vunpack.c.l.b16 %v1062
      %v1255 = vunpack.c.l.b16 %v1063
      %v1256 = vunpack.c.l.b16 %v1064
      %v1257 = vunpack.c.l.b16 %v1065
      %v1258 = vunpack.c.l.b16 %v1066
      %v1259 = vunpack.c.l.b16 %v1067
      %v1260 = vunpack.c.l.b16 %v1068
      %v1261 = vunpack.c.l.b16 %v1069
      %v1262 = vunpack.c.l.b16 %v1070
      %v1263 = vunpack.c.l.b16 %v1071
      %v1264 = vunpack.c.l.b16 %v1072
      %v1265 = vunpack.c.l.b16 %v1073
      %v1266 = vunpack.c.l.b16 %v1074
      %v1267 = vunpack.c.l.b16 %v1075
      %v1268 = vunpack.c.l.b16 %v1076
      %v1269 = vunpack.c.l.b16 %v1077
      %v1270 = vunpack.c.l.b16 %v1078
      %v1271 = vunpack.c.l.b16 %v1079
      %v1272 = vunpack.c.l.b16 %v1080
      %v1273 = vunpack.c.l.b16 %v1081
      %v1274 = vunpack.c.l.b16 %v1082
      %v1275 = vunpack.c.l.b16 %v1083
      %v1276 = vpack.c.b16 %v1245, %v1244
      %v1277 = vpack.c.b16 %v1247, %v1246
      %v1278 = vpack.c.b16 %v1249, %v1248
      %v1279 = vpack.c.b16 %v1251, %v1250
      %v1280 = vpack.c.b16 %v1253, %v1252
      %v1281 = vpack.c.b16 %v1255, %v1254
      %v1282 = vpack.c.b16 %v1257, %v1256
      %v1283 = vpack.c.b16 %v1259, %v1258
      %v1284 = vpack.c.b16 %v1261, %v1260
      %v1285 = vpack.c.b16 %v1263, %v1262
      %v1286 = vpack.c.b16 %v1265, %v1264
      %v1287 = vpack.c.b16 %v1267, %v1266
      %v1288 = vpack.c.b16 %v1269, %v1268
      %v1289 = vpack.c.b16 %v1271, %v1270
      %v1290 = vpack.c.b16 %v1273, %v1272
      %v1291 = vpack.c.b16 %v1275, %v1274
      %v1340 = vunpack.c.l.b16 %v1084
      %v1341 = vunpack.c.l.b16 %v1085
      %v1342 = vunpack.c.l.b16 %v1086
      %v1343 = vunpack.c.l.b16 %v1087
      %v1344 = vunpack.c.l.b16 %v1088
      %v1345 = vunpack.c.l.b16 %v1089
      %v1346 = vunpack.c.l.b16 %v1090
      %v1347 = vunpack.c.l.b16 %v1091
      %v1348 = vunpack.c.l.b16 %v1092
      %v1349 = vunpack.c.l.b16 %v1093
      %v1350 = vunpack.c.l.b16 %v1094
      %v1351 = vunpack.c.l.b16 %v1095
      %v1352 = vunpack.c.l.b16 %v1096
      %v1353 = vunpack.c.l.b16 %v1097
      %v1354 = vunpack.c.l.b16 %v1098
      %v1355 = vunpack.c.l.b16 %v1099
      %v1356 = vunpack.c.l.b16 %v1100
      %v1357 = vunpack.c.l.b16 %v1101
      %v1358 = vunpack.c.l.b16 %v1102
      %v1359 = vunpack.c.l.b16 %v1103
      %v1360 = vunpack.c.l.b16 %v1104
      %v1361 = vunpack.c.l.b16 %v1105
      %v1362 = vunpack.c.l.b16 %v1106
      %v1363 = vunpack.c.l.b16 %v1107
      %v1364 = vunpack.c.l.b16 %v1108
      %v1365 = vunpack.c.l.b16 %v1109
      %v1366 = vunpack.c.l.b16 %v1110
      %v1367 = vunpack.c.l.b16 %v1111
      %v1368 = vunpack.c.l.b16 %v1112
      %v1369 = vunpack.c.l.b16 %v1113
      %v1370 = vunpack.c.l.b16 %v1114
      %v1371 = vunpack.c.l.b16 %v1115
      %v1372 = vpack.c.b16 %v1341, %v1340
      %v1373 = vpack.c.b16 %v1343, %v1342
      %v1374 = vpack.c.b16 %v1345, %v1344
      %v1375 = vpack.c.b16 %v1347, %v1346
      %v1376 = vpack.c.b16 %v1349, %v1348
      %v1377 = vpack.c.b16 %v1351, %v1350
      %v1378 = vpack.c.b16 %v1353, %v1352
      %v1379 = vpack.c.b16 %v1355, %v1354
      %v1380 = vpack.c.b16 %v1357, %v1356
      %v1381 = vpack.c.b16 %v1359, %v1358
      %v1382 = vpack.c.b16 %v1361, %v1360
      %v1383 = vpack.c.b16 %v1363, %v1362
      %v1384 = vpack.c.b16 %v1365, %v1364
      %v1385 = vpack.c.b16 %v1367, %v1366
      %v1386 = vpack.c.b16 %v1369, %v1368
      %v1387 = vpack.c.b16 %v1371, %v1370
      %v1404 = vld [vmem:[%s1] sm:$0xf]
      %v1405 = vld [vmem:[%s1 + $0x4] sm:$0xf]
      %v1406 = vld [vmem:[%s1 + $0x8] sm:$0xf]
      %v1407 = vld [vmem:[%s1 + $0xc] sm:$0xf]
      %v1408 = vld [vmem:[%s1 + $0x10] sm:$0xf]
      %v1409 = vld [vmem:[%s1 + $0x14] sm:$0xf]
      %v1410 = vld [vmem:[%s1 + $0x18] sm:$0xf]
      %v1411 = vld [vmem:[%s1 + $0x1c] sm:$0xf]
      %v1412 = vld [vmem:[%s1 + $0x20] sm:$0xf]
      %v1413 = vld [vmem:[%s1 + $0x24] sm:$0xf]
      %v1414 = vld [vmem:[%s1 + $0x28] sm:$0xf]
      %v1415 = vld [vmem:[%s1 + $0x2c] sm:$0xf]
      %v1416 = vld [vmem:[%s1 + $0x30] sm:$0xf]
      %v1417 = vld [vmem:[%s1 + $0x34] sm:$0xf]
      %v1418 = vld [vmem:[%s1 + $0x38] sm:$0xf]
      %v1419 = vld [vmem:[%s1 + $0x3c] sm:$0xf]
      %v1420 = vld [vmem:[%s1 + $0x40] sm:$0xf]
      %v1421 = vld [vmem:[%s1 + $0x44] sm:$0xf]
      %v1422 = vld [vmem:[%s1 + $0x48] sm:$0xf]
      %v1423 = vld [vmem:[%s1 + $0x4c] sm:$0xf]
      %v1424 = vld [vmem:[%s1 + $0x50] sm:$0xf]
      %v1425 = vld [vmem:[%s1 + $0x54] sm:$0xf]
      %v1426 = vld [vmem:[%s1 + $0x58] sm:$0xf]
      %v1427 = vld [vmem:[%s1 + $0x5c] sm:$0xf]
      %v1428 = vld [vmem:[%s1 + $0x60] sm:$0xf]
      %v1429 = vld [vmem:[%s1 + $0x64] sm:$0xf]
      %v1430 = vld [vmem:[%s1 + $0x68] sm:$0xf]
      %v1431 = vld [vmem:[%s1 + $0x6c] sm:$0xf]
      %v1432 = vld [vmem:[%s1 + $0x70] sm:$0xf]
      %v1433 = vld [vmem:[%s1 + $0x74] sm:$0xf]
      %v1434 = vld [vmem:[%s1 + $0x78] sm:$0xf]
      %v1435 = vld [vmem:[%s1 + $0x7c] sm:$0xf]
      %v1436 = vld [vmem:[%s1 + $0x80] sm:$0xf]
      %v1437 = vld [vmem:[%s1 + $0x84] sm:$0xf]
      %v1438 = vld [vmem:[%s1 + $0x88] sm:$0xf]
      %v1439 = vld [vmem:[%s1 + $0x8c] sm:$0xf]
      %v1440 = vld [vmem:[%s1 + $0x90] sm:$0xf]
      %v1441 = vld [vmem:[%s1 + $0x94] sm:$0xf]
      %v1442 = vld [vmem:[%s1 + $0x98] sm:$0xf]
      %v1443 = vld [vmem:[%s1 + $0x9c] sm:$0xf]
      %v1444 = vld [vmem:[%s1 + $0xa0] sm:$0xf]
      %v1445 = vld [vmem:[%s1 + $0xa4] sm:$0xf]
      %v1446 = vld [vmem:[%s1 + $0xa8] sm:$0xf]
      %v1447 = vld [vmem:[%s1 + $0xac] sm:$0xf]
      %v1448 = vld [vmem:[%s1 + $0xb0] sm:$0xf]
      %v1449 = vld [vmem:[%s1 + $0xb4] sm:$0xf]
      %v1450 = vld [vmem:[%s1 + $0xb8] sm:$0xf]
      %v1451 = vld [vmem:[%s1 + $0xbc] sm:$0xf]
      %v1500 = vunpack.c.l.b16 %v1404
      %v1501 = vunpack.c.l.b16 %v1405
      %v1502 = vunpack.c.l.b16 %v1406
      %v1503 = vunpack.c.l.b16 %v1407
      %v1504 = vunpack.c.l.b16 %v1408
      %v1505 = vunpack.c.l.b16 %v1409
      %v1506 = vunpack.c.l.b16 %v1410
      %v1507 = vunpack.c.l.b16 %v1411
      %v1508 = vunpack.c.l.b16 %v1412
      %v1509 = vunpack.c.l.b16 %v1413
      %v1510 = vunpack.c.l.b16 %v1414
      %v1511 = vunpack.c.l.b16 %v1415
      %v1512 = vunpack.c.l.b16 %v1416
      %v1513 = vunpack.c.l.b16 %v1417
      %v1514 = vunpack.c.l.b16 %v1418
      %v1515 = vunpack.c.l.b16 %v1419
      %v1516 = vunpack.c.l.b16 %v1420
      %v1517 = vunpack.c.l.b16 %v1421
      %v1518 = vunpack.c.l.b16 %v1422
      %v1519 = vunpack.c.l.b16 %v1423
      %v1520 = vunpack.c.l.b16 %v1424
      %v1521 = vunpack.c.l.b16 %v1425
      %v1522 = vunpack.c.l.b16 %v1426
      %v1523 = vunpack.c.l.b16 %v1427
      %v1524 = vunpack.c.l.b16 %v1428
      %v1525 = vunpack.c.l.b16 %v1429
      %v1526 = vunpack.c.l.b16 %v1430
      %v1527 = vunpack.c.l.b16 %v1431
      %v1528 = vunpack.c.l.b16 %v1432
      %v1529 = vunpack.c.l.b16 %v1433
      %v1530 = vunpack.c.l.b16 %v1434
      %v1531 = vunpack.c.l.b16 %v1435
      %v1532 = vunpack.c.l.b16 %v1436
      %v1533 = vunpack.c.l.b16 %v1437
      %v1534 = vunpack.c.l.b16 %v1438
      %v1535 = vunpack.c.l.b16 %v1439
      %v1536 = vunpack.c.l.b16 %v1440
      %v1537 = vunpack.c.l.b16 %v1441
      %v1538 = vunpack.c.l.b16 %v1442
      %v1539 = vunpack.c.l.b16 %v1443
      %v1540 = vunpack.c.l.b16 %v1444
      %v1541 = vunpack.c.l.b16 %v1445
      %v1542 = vunpack.c.l.b16 %v1446
      %v1543 = vunpack.c.l.b16 %v1447
      %v1544 = vunpack.c.l.b16 %v1448
      %v1545 = vunpack.c.l.b16 %v1449
      %v1546 = vunpack.c.l.b16 %v1450
      %v1547 = vunpack.c.l.b16 %v1451
      %v1548 = vpack.c.b16 %v1501, %v1500
      %v1549 = vpack.c.b16 %v1503, %v1502
      %v1550 = vpack.c.b16 %v1505, %v1504
      %v1551 = vpack.c.b16 %v1507, %v1506
      %v1552 = vpack.c.b16 %v1509, %v1508
      %v1553 = vpack.c.b16 %v1511, %v1510
      %v1554 = vpack.c.b16 %v1513, %v1512
      %v1555 = vpack.c.b16 %v1515, %v1514
      %v1556 = vpack.c.b16 %v1517, %v1516
      %v1557 = vpack.c.b16 %v1519, %v1518
      %v1558 = vpack.c.b16 %v1521, %v1520
      %v1559 = vpack.c.b16 %v1523, %v1522
      %v1560 = vpack.c.b16 %v1525, %v1524
      %v1561 = vpack.c.b16 %v1527, %v1526
      %v1562 = vpack.c.b16 %v1529, %v1528
      %v1563 = vpack.c.b16 %v1531, %v1530
      %v1564 = vpack.c.b16 %v1533, %v1532
      %v1565 = vpack.c.b16 %v1535, %v1534
      %v1566 = vpack.c.b16 %v1537, %v1536
      %v1567 = vpack.c.b16 %v1539, %v1538
      %v1568 = vpack.c.b16 %v1541, %v1540
      %v1569 = vpack.c.b16 %v1543, %v1542
      %v1570 = vpack.c.b16 %v1545, %v1544
      %v1571 = vpack.c.b16 %v1547, %v1546
      %1596 = vmatpush.bf16.msra.mxu0 %v1555
      %1597 = vmatpush.bf16.msra.mxu0 %v1554
      %1598 = vmatpush.bf16.msra.mxu0 %v1553
      %1599 = vmatpush.bf16.msra.mxu0 %v1552
      %1600 = vmatpush.bf16.msra.mxu0 %v1551
      %1601 = vmatpush.bf16.msra.mxu0 %v1550
      %1602 = vmatpush.bf16.msra.mxu0 %v1549
      %1603 = vmatpush.bf16.msra.mxu0 %v1548
      %1604 = vmatmul.bf16.gmra.mxu0 %v1180
      %v1605 = vpop.f32.mrf.mxu0
      %v1606 = vadd.f32 0.0, %v1605
      %v1607 = vpop.f32.mrf.mxu0
      %v1608 = vadd.f32 0.0, %v1607
      %1609 = vmatmul.bf16.gmra.mxu0 %v1181
      %v1610 = vpop.f32.mrf.mxu0
      %v1611 = vadd.f32 0.0, %v1610
      %v1612 = vpop.f32.mrf.mxu0
      %v1613 = vadd.f32 0.0, %v1612
      %1614 = vmatmul.bf16.gmra.mxu0 %v1182
      %v1615 = vpop.f32.mrf.mxu0
      %v1616 = vadd.f32 0.0, %v1615
      %v1617 = vpop.f32.mrf.mxu0
      %v1618 = vadd.f32 0.0, %v1617
      %1619 = vmatmul.bf16.gmra.mxu0 %v1183
      %v1620 = vpop.f32.mrf.mxu0
      %v1621 = vadd.f32 0.0, %v1620
      %v1622 = vpop.f32.mrf.mxu0
      %v1623 = vadd.f32 0.0, %v1622
      %1624 = vmatmul.bf16.gmra.mxu0 %v1184
      %v1625 = vpop.f32.mrf.mxu0
      %v1626 = vadd.f32 0.0, %v1625
      %v1627 = vpop.f32.mrf.mxu0
      %v1628 = vadd.f32 0.0, %v1627
      %1629 = vmatmul.bf16.gmra.mxu0 %v1185
      %v1630 = vpop.f32.mrf.mxu0
      %v1631 = vadd.f32 0.0, %v1630
      %v1632 = vpop.f32.mrf.mxu0
      %v1633 = vadd.f32 0.0, %v1632
      %1634 = vmatmul.bf16.gmra.mxu0 %v1186
      %v1635 = vpop.f32.mrf.mxu0
      %v1636 = vadd.f32 0.0, %v1635
      %v1637 = vpop.f32.mrf.mxu0
      %v1638 = vadd.f32 0.0, %v1637
      %1639 = vmatmul.bf16.gmra.mxu0 %v1187
      %v1640 = vpop.f32.mrf.mxu0
      %v1641 = vadd.f32 0.0, %v1640
      %v1642 = vpop.f32.mrf.mxu0
      %v1643 = vadd.f32 0.0, %v1642
      %1644 = vmatmul.bf16.gmra.mxu0 %v1188
      %v1645 = vpop.f32.mrf.mxu0
      %v1646 = vadd.f32 0.0, %v1645
      %v1647 = vpop.f32.mrf.mxu0
      %v1648 = vadd.f32 0.0, %v1647
      %1649 = vmatmul.bf16.gmra.mxu0 %v1189
      %v1650 = vpop.f32.mrf.mxu0
      %v1651 = vadd.f32 0.0, %v1650
      %v1652 = vpop.f32.mrf.mxu0
      %v1653 = vadd.f32 0.0, %v1652
      %1654 = vmatmul.bf16.gmra.mxu0 %v1190
      %v1655 = vpop.f32.mrf.mxu0
      %v1656 = vadd.f32 0.0, %v1655
      %v1657 = vpop.f32.mrf.mxu0
      %v1658 = vadd.f32 0.0, %v1657
      %1659 = vmatmul.bf16.gmra.mxu0 %v1191
      %v1660 = vpop.f32.mrf.mxu0
      %v1661 = vadd.f32 0.0, %v1660
      %v1662 = vpop.f32.mrf.mxu0
      %v1663 = vadd.f32 0.0, %v1662
      %1664 = vmatmul.bf16.gmra.mxu0 %v1192
      %v1665 = vpop.f32.mrf.mxu0
      %v1666 = vadd.f32 0.0, %v1665
      %v1667 = vpop.f32.mrf.mxu0
      %v1668 = vadd.f32 0.0, %v1667
      %1669 = vmatmul.bf16.gmra.mxu0 %v1193
      %v1670 = vpop.f32.mrf.mxu0
      %v1671 = vadd.f32 0.0, %v1670
      %v1672 = vpop.f32.mrf.mxu0
      %v1673 = vadd.f32 0.0, %v1672
      %1674 = vmatmul.bf16.gmra.mxu0 %v1194
      %v1675 = vpop.f32.mrf.mxu0
      %v1676 = vadd.f32 0.0, %v1675
      %v1677 = vpop.f32.mrf.mxu0
      %v1678 = vadd.f32 0.0, %v1677
      %1679 = vmatmul.bf16.gmra.mxu0 %v1195
      %v1680 = vpop.f32.mrf.mxu0
      %v1681 = vadd.f32 0.0, %v1680
      %v1682 = vpop.f32.mrf.mxu0
      %v1683 = vadd.f32 0.0, %v1682
      %1684 = vdwg.mxu0
      %1685 = vmatpush.bf16.msra.mxu0 %v1563
      %1686 = vmatpush.bf16.msra.mxu0 %v1562
      %1687 = vmatpush.bf16.msra.mxu0 %v1561
      %1688 = vmatpush.bf16.msra.mxu0 %v1560
      %1689 = vmatpush.bf16.msra.mxu0 %v1559
      %1690 = vmatpush.bf16.msra.mxu0 %v1558
      %1691 = vmatpush.bf16.msra.mxu0 %v1557
      %1692 = vmatpush.bf16.msra.mxu0 %v1556
      %1693 = vmatmul.bf16.gmra.mxu0 %v1276
      %v1694 = vpop.f32.mrf.mxu0
      %v1695 = vadd.f32 %v1606, %v1694
      %v1696 = vpop.f32.mrf.mxu0
      %v1697 = vadd.f32 %v1608, %v1696
      %1698 = vmatmul.bf16.gmra.mxu0 %v1277
      %v1699 = vpop.f32.mrf.mxu0
      %v1700 = vadd.f32 %v1611, %v1699
      %v1701 = vpop.f32.mrf.mxu0
      %v1702 = vadd.f32 %v1613, %v1701
      %1703 = vmatmul.bf16.gmra.mxu0 %v1278
      %v1704 = vpop.f32.mrf.mxu0
      %v1705 = vadd.f32 %v1616, %v1704
      %v1706 = vpop.f32.mrf.mxu0
      %v1707 = vadd.f32 %v1618, %v1706
      %1708 = vmatmul.bf16.gmra.mxu0 %v1279
      %v1709 = vpop.f32.mrf.mxu0
      %v1710 = vadd.f32 %v1621, %v1709
      %v1711 = vpop.f32.mrf.mxu0
      %v1712 = vadd.f32 %v1623, %v1711
      %1713 = vmatmul.bf16.gmra.mxu0 %v1280
      %v1714 = vpop.f32.mrf.mxu0
      %v1715 = vadd.f32 %v1626, %v1714
      %v1716 = vpop.f32.mrf.mxu0
      %v1717 = vadd.f32 %v1628, %v1716
      %1718 = vmatmul.bf16.gmra.mxu0 %v1281
      %v1719 = vpop.f32.mrf.mxu0
      %v1720 = vadd.f32 %v1631, %v1719
      %v1721 = vpop.f32.mrf.mxu0
      %v1722 = vadd.f32 %v1633, %v1721
      %1723 = vmatmul.bf16.gmra.mxu0 %v1282
      %v1724 = vpop.f32.mrf.mxu0
      %v1725 = vadd.f32 %v1636, %v1724
      %v1726 = vpop.f32.mrf.mxu0
      %v1727 = vadd.f32 %v1638, %v1726
      %1728 = vmatmul.bf16.gmra.mxu0 %v1283
      %v1729 = vpop.f32.mrf.mxu0
      %v1730 = vadd.f32 %v1641, %v1729
      %v1731 = vpop.f32.mrf.mxu0
      %v1732 = vadd.f32 %v1643, %v1731
      %1733 = vmatmul.bf16.gmra.mxu0 %v1284
      %v1734 = vpop.f32.mrf.mxu0
      %v1735 = vadd.f32 %v1646, %v1734
      %v1736 = vpop.f32.mrf.mxu0
      %v1737 = vadd.f32 %v1648, %v1736
      %1738 = vmatmul.bf16.gmra.mxu0 %v1285
      %v1739 = vpop.f32.mrf.mxu0
      %v1740 = vadd.f32 %v1651, %v1739
      %v1741 = vpop.f32.mrf.mxu0
      %v1742 = vadd.f32 %v1653, %v1741
      %1743 = vmatmul.bf16.gmra.mxu0 %v1286
      %v1744 = vpop.f32.mrf.mxu0
      %v1745 = vadd.f32 %v1656, %v1744
      %v1746 = vpop.f32.mrf.mxu0
      %v1747 = vadd.f32 %v1658, %v1746
      %1748 = vmatmul.bf16.gmra.mxu0 %v1287
      %v1749 = vpop.f32.mrf.mxu0
      %v1750 = vadd.f32 %v1661, %v1749
      %v1751 = vpop.f32.mrf.mxu0
      %v1752 = vadd.f32 %v1663, %v1751
      %1753 = vmatmul.bf16.gmra.mxu0 %v1288
      %v1754 = vpop.f32.mrf.mxu0
      %v1755 = vadd.f32 %v1666, %v1754
      %v1756 = vpop.f32.mrf.mxu0
      %v1757 = vadd.f32 %v1668, %v1756
      %1758 = vmatmul.bf16.gmra.mxu0 %v1289
      %v1759 = vpop.f32.mrf.mxu0
      %v1760 = vadd.f32 %v1671, %v1759
      %v1761 = vpop.f32.mrf.mxu0
      %v1762 = vadd.f32 %v1673, %v1761
      %1763 = vmatmul.bf16.gmra.mxu0 %v1290
      %v1764 = vpop.f32.mrf.mxu0
      %v1765 = vadd.f32 %v1676, %v1764
      %v1766 = vpop.f32.mrf.mxu0
      %v1767 = vadd.f32 %v1678, %v1766
      %1768 = vmatmul.bf16.gmra.mxu0 %v1291
      %v1769 = vpop.f32.mrf.mxu0
      %v1770 = vadd.f32 %v1681, %v1769
      %v1771 = vpop.f32.mrf.mxu0
      %v1772 = vadd.f32 %v1683, %v1771
      %1773 = vdwg.mxu0
      %1774 = vmatpush.bf16.msra.mxu0 %v1571
      %1775 = vmatpush.bf16.msra.mxu0 %v1570
      %1776 = vmatpush.bf16.msra.mxu0 %v1569
      %1777 = vmatpush.bf16.msra.mxu0 %v1568
      %1778 = vmatpush.bf16.msra.mxu0 %v1567
      %1779 = vmatpush.bf16.msra.mxu0 %v1566
      %1780 = vmatpush.bf16.msra.mxu0 %v1565
      %1781 = vmatpush.bf16.msra.mxu0 %v1564
      %1782 = vmatmul.bf16.gmra.mxu0 %v1372
      %v1783 = vpop.f32.mrf.mxu0
      %v1784 = vadd.f32 %v1695, %v1783
      %v1785 = vpop.f32.mrf.mxu0
      %v1786 = vadd.f32 %v1697, %v1785
      %1787 = vmatmul.bf16.gmra.mxu0 %v1373
      %v1788 = vpop.f32.mrf.mxu0
      %v1789 = vadd.f32 %v1700, %v1788
      %v1790 = vpop.f32.mrf.mxu0
      %v1791 = vadd.f32 %v1702, %v1790
      %1792 = vmatmul.bf16.gmra.mxu0 %v1374
      %v1793 = vpop.f32.mrf.mxu0
      %v1794 = vadd.f32 %v1705, %v1793
      %v1795 = vpop.f32.mrf.mxu0
      %v1796 = vadd.f32 %v1707, %v1795
      %1797 = vmatmul.bf16.gmra.mxu0 %v1375
      %v1798 = vpop.f32.mrf.mxu0
      %v1799 = vadd.f32 %v1710, %v1798
      %v1800 = vpop.f32.mrf.mxu0
      %v1801 = vadd.f32 %v1712, %v1800
      %1802 = vmatmul.bf16.gmra.mxu0 %v1376
      %v1803 = vpop.f32.mrf.mxu0
      %v1804 = vadd.f32 %v1715, %v1803
      %v1805 = vpop.f32.mrf.mxu0
      %v1806 = vadd.f32 %v1717, %v1805
      %1807 = vmatmul.bf16.gmra.mxu0 %v1377
      %v1808 = vpop.f32.mrf.mxu0
      %v1809 = vadd.f32 %v1720, %v1808
      %v1810 = vpop.f32.mrf.mxu0
      %v1811 = vadd.f32 %v1722, %v1810
      %1812 = vmatmul.bf16.gmra.mxu0 %v1378
      %v1813 = vpop.f32.mrf.mxu0
      %v1814 = vadd.f32 %v1725, %v1813
      %v1815 = vpop.f32.mrf.mxu0
      %v1816 = vadd.f32 %v1727, %v1815
      %1817 = vmatmul.bf16.gmra.mxu0 %v1379
      %v1818 = vpop.f32.mrf.mxu0
      %v1819 = vadd.f32 %v1730, %v1818
      %v1820 = vpop.f32.mrf.mxu0
      %v1821 = vadd.f32 %v1732, %v1820
      %1822 = vmatmul.bf16.gmra.mxu0 %v1380
      %v1823 = vpop.f32.mrf.mxu0
      %v1824 = vadd.f32 %v1735, %v1823
      %v1825 = vpop.f32.mrf.mxu0
      %v1826 = vadd.f32 %v1737, %v1825
      %1827 = vmatmul.bf16.gmra.mxu0 %v1381
      %v1828 = vpop.f32.mrf.mxu0
      %v1829 = vadd.f32 %v1740, %v1828
      %v1830 = vpop.f32.mrf.mxu0
      %v1831 = vadd.f32 %v1742, %v1830
      %1832 = vmatmul.bf16.gmra.mxu0 %v1382
      %v1833 = vpop.f32.mrf.mxu0
      %v1834 = vadd.f32 %v1745, %v1833
      %v1835 = vpop.f32.mrf.mxu0
      %v1836 = vadd.f32 %v1747, %v1835
      %1837 = vmatmul.bf16.gmra.mxu0 %v1383
      %v1838 = vpop.f32.mrf.mxu0
      %v1839 = vadd.f32 %v1750, %v1838
      %v1840 = vpop.f32.mrf.mxu0
      %v1841 = vadd.f32 %v1752, %v1840
      %1842 = vmatmul.bf16.gmra.mxu0 %v1384
      %v1843 = vpop.f32.mrf.mxu0
      %v1844 = vadd.f32 %v1755, %v1843
      %v1845 = vpop.f32.mrf.mxu0
      %v1846 = vadd.f32 %v1757, %v1845
      %1847 = vmatmul.bf16.gmra.mxu0 %v1385
      %v1848 = vpop.f32.mrf.mxu0
      %v1849 = vadd.f32 %v1760, %v1848
      %v1850 = vpop.f32.mrf.mxu0
      %v1851 = vadd.f32 %v1762, %v1850
      %1852 = vmatmul.bf16.gmra.mxu0 %v1386
      %v1853 = vpop.f32.mrf.mxu0
      %v1854 = vadd.f32 %v1765, %v1853
      %v1855 = vpop.f32.mrf.mxu0
      %v1856 = vadd.f32 %v1767, %v1855
      %1857 = vmatmul.bf16.gmra.mxu0 %v1387
      %v1858 = vpop.f32.mrf.mxu0
      %v1859 = vadd.f32 %v1770, %v1858
      %v1860 = vpop.f32.mrf.mxu0
      %v1861 = vadd.f32 %v1772, %v1860
      %1862 = vdwg.mxu0
      %1863 = vst [vmem:[%s179] sm:$0xff] %v1784
      %1864 = vst [vmem:[%s179 + $0x8] sm:$0xff] %v1786
      %1865 = vst [vmem:[%s179 + $0x10] sm:$0xff] %v1789
      %1866 = vst [vmem:[%s179 + $0x18] sm:$0xff] %v1791
      %1867 = vst [vmem:[%s179 + $0x20] sm:$0xff] %v1794
      %1868 = vst [vmem:[%s179 + $0x28] sm:$0xff] %v1796
      %1869 = vst [vmem:[%s179 + $0x30] sm:$0xff] %v1799
      %1870 = vst [vmem:[%s179 + $0x38] sm:$0xff] %v1801
      %1871 = vst [vmem:[%s179 + $0x40] sm:$0xff] %v1804
      %1872 = vst [vmem:[%s179 + $0x48] sm:$0xff] %v1806
      %1873 = vst [vmem:[%s179 + $0x50] sm:$0xff] %v1809
      %1874 = vst [vmem:[%s179 + $0x58] sm:$0xff] %v1811
      %1875 = vst [vmem:[%s179 + $0x60] sm:$0xff] %v1814
      %1876 = vst [vmem:[%s179 + $0x68] sm:$0xff] %v1816
      %1877 = vst [vmem:[%s179 + $0x70] sm:$0xff] %v1819
      %1878 = vst [vmem:[%s179 + $0x78] sm:$0xff] %v1821
      %1879 = vst [vmem:[%s179 + $0x80] sm:$0xff] %v1824
      %1880 = vst [vmem:[%s179 + $0x88] sm:$0xff] %v1826
      %1881 = vst [vmem:[%s179 + $0x90] sm:$0xff] %v1829
      %1882 = vst [vmem:[%s179 + $0x98] sm:$0xff] %v1831
      %1883 = vst [vmem:[%s179 + $0xa0] sm:$0xff] %v1834
      %1884 = vst [vmem:[%s179 + $0xa8] sm:$0xff] %v1836
      %1885 = vst [vmem:[%s179 + $0xb0] sm:$0xff] %v1839
      %1886 = vst [vmem:[%s179 + $0xb8] sm:$0xff] %v1841
      %1887 = vst [vmem:[%s179 + $0xc0] sm:$0xff] %v1844
      %1888 = vst [vmem:[%s179 + $0xc8] sm:$0xff] %v1846
      %1889 = vst [vmem:[%s179 + $0xd0] sm:$0xff] %v1849
      %1890 = vst [vmem:[%s179 + $0xd8] sm:$0xff] %v1851
      %1891 = vst [vmem:[%s179 + $0xe0] sm:$0xff] %v1854
      %1892 = vst [vmem:[%s179 + $0xe8] sm:$0xff] %v1856
      %1893 = vst [vmem:[%s179 + $0xf0] sm:$0xff] %v1859
      %1894 = vst [vmem:[%s179 + $0xf8] sm:$0xff] %v1861
      %v1895 = vadd.f32 %v1784, %v1786
      %v1896 = vadd.f32 %v1895, %v1789
      %v1897 = vadd.f32 %v1896, %v1791
      %v1898 = vadd.f32 %v1897, %v1794
      %v1899 = vadd.f32 %v1898, %v1796
      %v1900 = vadd.f32 %v1899, %v1799
      %v1901 = vadd.f32 %v1900, %v1801
      %v1902 = vadd.f32 %v1901, %v1804
      %v1903 = vadd.f32 %v1902, %v1806
      %v1904 = vadd.f32 %v1903, %v1809
      %v1905 = vadd.f32 %v1904, %v1811
      %v1906 = vadd.f32 %v1905, %v1814
      %v1907 = vadd.f32 %v1906, %v1816
      %v1908 = vadd.f32 %v1907, %v1819
      %v1909 = vadd.f32 %v1908, %v1821
      %v1910 = vadd.f32 %v1909, %v1824
      %v1911 = vadd.f32 %v1910, %v1826
      %v1912 = vadd.f32 %v1911, %v1829
      %v1913 = vadd.f32 %v1912, %v1831
      %v1914 = vadd.f32 %v1913, %v1834
      %v1915 = vadd.f32 %v1914, %v1836
      %v1916 = vadd.f32 %v1915, %v1839
      %v1917 = vadd.f32 %v1916, %v1841
      %v1918 = vadd.f32 %v1917, %v1844
      %v1919 = vadd.f32 %v1918, %v1846
      %v1920 = vadd.f32 %v1919, %v1849
      %v1921 = vadd.f32 %v1920, %v1851
      %v1922 = vadd.f32 %v1921, %v1854
      %v1923 = vadd.f32 %v1922, %v1856
      %v1924 = vadd.f32 %v1923, %v1859
      %v1925 = vadd.f32 %v1924, %v1861
      %v1926 = vrot.slane %v1925, 4
      %v1927 = vadd.f32 %v1925, %v1926
      %v1928 = vrot.slane %v1927, 2
      %v1929 = vadd.f32 %v1927, %v1928
      %v1930 = vrot.slane %v1929, 1
      %v1931 = vadd.f32 %v1929, %v1930
      %v1932 = vmul.f32 %v1784, %v1784
      %v1933 = vmul.f32 %v1786, %v1786
      %v1934 = vmul.f32 %v1789, %v1789
      %v1935 = vmul.f32 %v1791, %v1791
      %v1936 = vmul.f32 %v1794, %v1794
      %v1937 = vmul.f32 %v1796, %v1796
      %v1938 = vmul.f32 %v1799, %v1799
      %v1939 = vmul.f32 %v1801, %v1801
      %v1940 = vmul.f32 %v1804, %v1804
      %v1941 = vmul.f32 %v1806, %v1806
      %v1942 = vmul.f32 %v1809, %v1809
      %v1943 = vmul.f32 %v1811, %v1811
      %v1944 = vmul.f32 %v1814, %v1814
      %v1945 = vmul.f32 %v1816, %v1816
      %v1946 = vmul.f32 %v1819, %v1819
      %v1947 = vmul.f32 %v1821, %v1821
      %v1948 = vmul.f32 %v1824, %v1824
      %v1949 = vmul.f32 %v1826, %v1826
      %v1950 = vmul.f32 %v1829, %v1829
      %v1951 = vmul.f32 %v1831, %v1831
      %v1952 = vmul.f32 %v1834, %v1834
      %v1953 = vmul.f32 %v1836, %v1836
      %v1954 = vmul.f32 %v1839, %v1839
      %v1955 = vmul.f32 %v1841, %v1841
      %v1956 = vmul.f32 %v1844, %v1844
      %v1957 = vmul.f32 %v1846, %v1846
      %v1958 = vmul.f32 %v1849, %v1849
      %v1959 = vmul.f32 %v1851, %v1851
      %v1960 = vmul.f32 %v1854, %v1854
      %v1961 = vmul.f32 %v1856, %v1856
      %v1962 = vmul.f32 %v1859, %v1859
      %v1963 = vmul.f32 %v1861, %v1861
      %v1964 = vadd.f32 %v1932, %v1933
      %v1965 = vadd.f32 %v1964, %v1934
      %v1966 = vadd.f32 %v1965, %v1935
      %v1967 = vadd.f32 %v1966, %v1936
      %v1968 = vadd.f32 %v1967, %v1937
      %v1969 = vadd.f32 %v1968, %v1938
      %v1970 = vadd.f32 %v1969, %v1939
      %v1971 = vadd.f32 %v1970, %v1940
      %v1972 = vadd.f32 %v1971, %v1941
      %v1973 = vadd.f32 %v1972, %v1942
      %v1974 = vadd.f32 %v1973, %v1943
      %v1975 = vadd.f32 %v1974, %v1944
      %v1976 = vadd.f32 %v1975, %v1945
      %v1977 = vadd.f32 %v1976, %v1946
      %v1978 = vadd.f32 %v1977, %v1947
      %v1979 = vadd.f32 %v1978, %v1948
      %v1980 = vadd.f32 %v1979, %v1949
      %v1981 = vadd.f32 %v1980, %v1950
      %v1982 = vadd.f32 %v1981, %v1951
      %v1983 = vadd.f32 %v1982, %v1952
      %v1984 = vadd.f32 %v1983, %v1953
      %v1985 = vadd.f32 %v1984, %v1954
      %v1986 = vadd.f32 %v1985, %v1955
      %v1987 = vadd.f32 %v1986, %v1956
      %v1988 = vadd.f32 %v1987, %v1957
      %v1989 = vadd.f32 %v1988, %v1958
      %v1990 = vadd.f32 %v1989, %v1959
      %v1991 = vadd.f32 %v1990, %v1960
      %v1992 = vadd.f32 %v1991, %v1961
      %v1993 = vadd.f32 %v1992, %v1962
      %v1994 = vadd.f32 %v1993, %v1963
      %v1995 = vrot.slane %v1994, 4
      %v1996 = vadd.f32 %v1994, %v1995
      %v1997 = vrot.slane %v1996, 2
      %v1998 = vadd.f32 %v1996, %v1997
      %v1999 = vrot.slane %v1998, 1
      %v2000 = vadd.f32 %v1998, %v1999
      %vm2001 = vcmask 1040384
      %v2002 = vsel %vm2001, %v1931, %v2000
      %2003 = vst [vmem:[%s184] sm:$0x3] %v2002
      %s2004 = smul.u32 32, %s15
      %p2005 = scmp.lt.s32.totalorder %s2004, 63
      %s2006 = scalar_select %p2005, %s2004, 63
      %s2007 = smul.addr %s2006, 8
      %s2008 = scalar_lea.vmem %s2, %s2007
      %p2009 = scmp.lt.s32.totalorder %s15, 1
      %s2010 = scalar_select %p2009, %s15, 1
      %s2011 = smul.addr %s2010, 2
      %s2012 = scalar_lea.vmem %s3, %s2011
      // Predicated region
      $region29: #{basic_block.3} parent=27 // pred_check
        %p2013 = pneg %p80
      $region30: #{basic_block.3} parent=27 // pred_check_branch
        %2015 = sbr.rel (%p2013) target = $region32
      $region31: #{basic_block.3} parent=27 // pred_region
        %s2016 = smul.u32 32, %s15
      $region32: #{basic_block.3} parent=27 // pred_fallthru
        _
      // Predicated region
      $region33: #{basic_block.3} parent=27 // pred_check
        %p2017 = pneg %p106
      $region34: #{basic_block.3} parent=27 // pred_check_branch
        %2019 = sbr.rel (%p2017) target = $region36
      $region35: #{basic_block.3} parent=27 // pred_region
        _
      $region36: #{basic_block.3} parent=27 // pred_fallthru
        _
    $region28: #{basic_block.3} parent=5 // pred_fallthru
      _
    %p2020 = scmp.le.s32.totalorder 2, %s10
    // Predicated region
    $region37: #{basic_block.3} parent=5 // pred_check
      %p2021 = pneg %p2020
    $region38: #{basic_block.3} parent=5 // pred_check_branch
      %2023 = sbr.rel (%p2021) target = $region40
    $region39: #{basic_block.3} parent=5 // pred_region
      %s2024 = ssub.s32 %s10, 2
      // Predicated region
      $region41: #{basic_block.3} parent=39 // pred_check
        %p2025 = pneg %p86
      $region42: #{basic_block.3} parent=39 // pred_check_branch
        %2027 = sbr.rel (%p2025) target = $region44
      $region43: #{basic_block.3} parent=39 // pred_region
        %s2028 = smul.u32 32, %s16
        %p2029 = scmp.lt.s32.totalorder %s2028, 63
        %s2030 = scalar_select %p2029, %s2028, 63
        %s2031 = smul.addr %s2030, 8
        %s2032 = scalar_lea.vmem %s2, %s2031
      $region44: #{basic_block.3} parent=39 // pred_fallthru
        _
      // Predicated region
      $region45: #{basic_block.3} parent=39 // pred_check
        %p2033 = pneg %p112
      $region46: #{basic_block.3} parent=39 // pred_check_branch
        %2035 = sbr.rel (%p2033) target = $region48
      $region47: #{basic_block.3} parent=39 // pred_region
        %p2036 = scmp.lt.s32.totalorder %s16, 1
        %s2037 = scalar_select %p2036, %s16, 1
        %s2038 = smul.addr %s2037, 2
        %s2039 = scalar_lea.vmem %s3, %s2038
      $region48: #{basic_block.3} parent=39 // pred_fallthru
        _
    $region40: #{basic_block.3} parent=5 // pred_fallthru
      _
  $region6: #{basic_block.3} parent=0 // loop_footer
    %s14 = sadd.s32 1, %s10
  $region7: #{basic_block.3} parent=0 // loop_footer_branch
    %9 = sbr.rel target = $region3
  $region8: #{basic_block.3} parent=0 // loop_exit
    _

// kernel: tile.28
$region0: #{tile.28}
  #allocation0 [shape = 's32[1]{0}', space=sflag, size = 0x4, scoped, tag = 'scoped memory for tile.28']
  %s0 = inlined_call_operand.vmem [shape: f32[8], index: 0, kind: input, shape index: {}]
  %s1 = inlined_call_operand.vmem [shape: f32[16,8], index: 1, kind: output, shape index: {}]
  // Predicated region
  $region2: #{tile.28} parent=0 // pred_check
    _
  $region3: #{tile.28} parent=0 // pred_check_branch
    %3 = sbr.rel (0) target = $region5
  $region4: #{tile.28} parent=0 // pred_region
    _
  $region5: #{tile.28} parent=0 // pred_fallthru
    _
  %v4 = vld [vmem:[%s0] ss:$0 sm:$0xff]
  %5 = vst [vmem:[%s1] sm:$0xff] %v4
  %s6 = scalar_lea.vmem %s1, 8
  %7 = vst [vmem:[%s6] sm:$0xff] %v4

// kernel: tile.29
$region0: #{tile.29}
  %s0 = inlined_call_operand.vmem [shape: f32[16,8], index: 0, kind: input, shape index: {}]
  %s1 = inlined_call_operand.vmem [shape: f32[1,128], index: 1, kind: output, shape index: {}]
  $region1: #{tile.29} parent=0
    #allocation0 [shape = 'u8[4096]{0}', space=vmem, size = 0x1000, scoped, tag = 'scoped mem for output reshape']
    %v2 = vld [vmem:[%s0] sm:$0x1]
    %vm3 = vcmask 64512
    %4 = vst.msk [vmem:[#allocation0] sm:$0x1] %vm3, %v2
    %s5 = scalar_lea.vmem %s0, 15
    %v6 = vld [vmem:[%s5] sm:$0x1]
    %7 = vrot.lane.b32.xlu0 %v6, 120
    %v8 = vpop.permute.xlu0 %7
    %vm9 = vcmask 1048512
    %10 = vst.msk [vmem:[#allocation0] sm:$0x1] %vm9, %v8
    %s11 = scalar_lea.vmem %s0, 14
    %v12 = vld [vmem:[%s11] sm:$0x1]
    %13 = vrot.lane.b32.xlu0 %v12, 112
    %v14 = vpop.permute.xlu0 %13
    %vm15 = vcmask 982912
    %16 = vst.msk [vmem:[#allocation0] sm:$0x1] %vm15, %v14
    %s17 = scalar_lea.vmem %s0, 13
    %v18 = vld [vmem:[%s17] sm:$0x1]
    %19 = vrot.lane.b32.xlu0 %v18, 104
    %v20 = vpop.permute.xlu0 %19
    %vm21 = vcmask 917312
    %22 = vst.msk [vmem:[#allocation0] sm:$0x1] %vm21, %v20
    %s23 = scalar_lea.vmem %s0, 12
    %v24 = vld [vmem:[%s23] sm:$0x1]
    %25 = vrot.lane.b32.xlu0 %v24, 96
    %v26 = vpop.permute.xlu0 %25
    %vm27 = vcmask 851712
    %28 = vst.msk [vmem:[#allocation0] sm:$0x1] %vm27, %v26
    %s29 = scalar_lea.vmem %s0, 11
    %v30 = vld [vmem:[%s29] sm:$0x1]
    %31 = vrot.lane.b32.xlu0 %v30, 88
    %v32 = vpop.permute.xlu0 %31
    %vm33 = vcmask 786112
    %34 = vst.msk [vmem:[#allocation0] sm:$0x1] %vm33, %v32
    %s35 = scalar_lea.vmem %s0, 10
    %v36 = vld [vmem:[%s35] sm:$0x1]
    %37 = vrot.lane.b32.xlu0 %v36, 80
    %v38 = vpop.permute.xlu0 %37
    %vm39 = vcmask 720512
    %40 = vst.msk [vmem:[#allocation0] sm:$0x1] %vm39, %v38
    %s41 = scalar_lea.vmem %s0, 9
    %v42 = vld [vmem:[%s41] sm:$0x1]
    %43 = vrot.lane.b32.xlu0 %v42, 72
    %v44 = vpop.permute.xlu0 %43
    %vm45 = vcmask 654912
    %46 = vst.msk [vmem:[#allocation0] sm:$0x1] %vm45, %v44
    %s47 = scalar_lea.vmem %s0, 8
    %v48 = vld [vmem:[%s47] sm:$0x1]
    %49 = vrot.lane.b32.xlu0 %v48, 64
    %v50 = vpop.permute.xlu0 %49
    %vm51 = vcmask 589312
    %52 = vst.msk [vmem:[#allocation0] sm:$0x1] %vm51, %v50
    %s53 = scalar_lea.vmem %s0, 7
    %v54 = vld [vmem:[%s53] sm:$0x1]
    %55 = vrot.lane.b32.xlu0 %v54, 56
    %v56 = vpop.permute.xlu0 %55
    %vm57 = vcmask 523712
    %58 = vst.msk [vmem:[#allocation0] sm:$0x1] %vm57, %v56
    %s59 = scalar_lea.vmem %s0, 6
    %v60 = vld [vmem:[%s59] sm:$0x1]
    %61 = vrot.lane.b32.xlu0 %v60, 48
    %v62 = vpop.permute.xlu0 %61
    %vm63 = vcmask 458112
    %64 = vst.msk [vmem:[#allocation0] sm:$0x1] %vm63, %v62
    %s65 = scalar_lea.vmem %s0, 5
    %v66 = vld [vmem:[%s65] sm:$0x1]
    %67 = vrot.lane.b32.xlu0 %v66, 40
    %v68 = vpop.permute.xlu0 %67
    %vm69 = vcmask 392512
    %70 = vst.msk [vmem:[#allocation0] sm:$0x1] %vm69, %v68
    %s71 = scalar_lea.vmem %s0, 4
    %v72 = vld [vmem:[%s71] sm:$0x1]
    %73 = vrot.lane.b32.xlu0 %v72, 32
    %v74 = vpop.permute.xlu0 %73
    %vm75 = vcmask 326912
    %76 = vst.msk [vmem:[#allocation0] sm:$0x1] %vm75, %v74
    %s77 = scalar_lea.vmem %s0, 3
    %v78 = vld [vmem:[%s77] sm:$0x1]
    %79 = vrot.lane.b32.xlu0 %v78, 24
    %v80 = vpop.permute.xlu0 %79
    %vm81 = vcmask 261312
    %82 = vst.msk [vmem:[#allocation0] sm:$0x1] %vm81, %v80
    %s83 = scalar_lea.vmem %s0, 2
    %v84 = vld [vmem:[%s83] sm:$0x1]
    %85 = vrot.lane.b32.xlu0 %v84, 16
    %v86 = vpop.permute.xlu0 %85
    %vm87 = vcmask 195712
    %88 = vst.msk [vmem:[#allocation0] sm:$0x1] %vm87, %v86
    %s89 = scalar_lea.vmem %s0, 1
    %v90 = vld [vmem:[%s89] sm:$0x1]
    %91 = vrot.lane.b32.xlu0 %v90, 8
    %v92 = vpop.permute.xlu0 %91
    %vm93 = vcmask 130112
    %94 = vst.msk [vmem:[#allocation0] sm:$0x1] %vm93, %v92
    %s96 = ssub.s32 2, 1
    %v97 = vld [vmem:[#allocation0] sm:%s96]
    %s99 = ssub.s32 2, 1
    %100 = vst [vmem:[%s1] sm:%s99] %v97

// kernel: basic_block.5
$region0: #{basic_block.5}
  #allocation0 [shape = 'u32[]', space=smem, size = 0x4, offset = 0x4, fixed_abs, tag = 'smem constant byte address 0x4 - core index']
  #allocation1 [shape = 'u32[72,128]{1,0:T(1,128)}', space=vmem, size = 0x9000, scoped, tag = 'internal scratch']
  %s0 = inlined_call_operand.vmem [shape: f32[512,128], index: 0, kind: input, shape index: {}]
  %s1 = inlined_call_operand.vmem [shape: f32[512,128], index: 1, kind: input, shape index: {}]
  %s2 = inlined_call_operand.vmem [shape: f32[1,128], index: 2, kind: input, shape index: {}]
  %s3 = inlined_call_operand.vmem [shape: f32[1,128], index: 3, kind: input, shape index: {}]
  %s4 = inlined_call_operand.vmem [shape: f32[512,128], index: 4, kind: output, shape index: {}]
  %s5 = sld [smem:[#allocation0]]
  $region49: #{basic_block.5} parent=0
    _
  %s7 = ssub.s32 1, %s5
  %s8 = scalar_select 0, %s7, %s5
  loop: start=0, step=1, limit=4
  $region2: #{basic_block.5} parent=0 // loop_pre_header
    _
  $region3: #{basic_block.5} parent=0 // loop_header
    %s10 = sphi 0, %s14
    %p11 = scmp.ge.s32.totalorder %s10, 4
    %s20 = sphi 0, %s22
    %s23 = sphi 0, %s20
    %s24 = sphi 0, %s23
    %s40 = sphi 0, %s24
    %s46 = sphi 0, %s48
    %s49 = sphi 0, %s46
    %s50 = sphi 0, %s49
    %s66 = sphi 0, %s50
    %s70 = sphi 0, %s70
    %s72 = sphi 0, %s70
    %s73 = sphi 0, %s72
    %s87 = sphi 0, %s73
    %s91 = sphi 0, %s91
    %s93 = sphi 0, %s91
    %s94 = sphi 0, %s93
    %s108 = sphi 0, %s94
    %s114 = sphi 0, %s116
    %s117 = sphi 0, %s114
    %s118 = sphi 0, %s117
    %s134 = sphi 0, %s118
  $region4: #{basic_block.5} parent=0 // loop_header_branch
    %13 = sbr.rel (%p11) target = $region8
  $region5: #{basic_block.5} parent=0 // loop_body
    %s15 = ssub.s32 %s10, 1
    %s16 = ssub.s32 %s10, 2
    %s17 = sadd.s32 %s10, 1
    %s18 = ssub.s32 %s10, %s17
    %p19 = scmp.eq.s32.totalorder %s18, 0
    %s21 = sadd.s32 %s20, 1
    %s22 = scalar_select %p19, %s20, %s21
    %p25 = pneg %p19
    %p26 = scmp.eq.s32.totalorder %s10, 1
    %p27 = por %p25, %p26
    %p28 = scmp.ne.s32.totalorder %s20, %s23
    %p29 = scmp.eq.s32.totalorder %s10, 0
    %p30 = por %p28, %p29
    %p31 = scmp.ne.s32.totalorder %s20, %s23
    %p32 = scmp.eq.s32.totalorder %s15, 1
    %p33 = por %p31, %p32
    %p34 = scmp.ne.s32.totalorder %s23, %s24
    %p35 = scmp.eq.s32.totalorder %s15, 0
    %p36 = por %p34, %p35
    %p37 = scmp.ne.s32.totalorder %s23, %s24
    %p38 = scmp.eq.s32.totalorder %s16, 1
    %p39 = por %p37, %p38
    %p41 = scmp.ne.s32.totalorder %s24, %s40
    %p42 = scmp.eq.s32.totalorder %s16, 0
    %p43 = por %p41, %p42
    %s44 = ssub.s32 %s10, %s17
    %p45 = scmp.eq.s32.totalorder %s44, 0
    %s47 = sadd.s32 %s46, 1
    %s48 = scalar_select %p45, %s46, %s47
    %p51 = pneg %p45
    %p52 = scmp.eq.s32.totalorder %s10, 1
    %p53 = por %p51, %p52
    %p54 = scmp.ne.s32.totalorder %s46, %s49
    %p55 = scmp.eq.s32.totalorder %s10, 0
    %p56 = por %p54, %p55
    %p57 = scmp.ne.s32.totalorder %s46, %s49
    %p58 = scmp.eq.s32.totalorder %s15, 1
    %p59 = por %p57, %p58
    %p60 = scmp.ne.s32.totalorder %s49, %s50
    %p61 = scmp.eq.s32.totalorder %s15, 0
    %p62 = por %p60, %p61
    %p63 = scmp.ne.s32.totalorder %s49, %s50
    %p64 = scmp.eq.s32.totalorder %s16, 1
    %p65 = por %p63, %p64
    %p67 = scmp.ne.s32.totalorder %s50, %s66
    %p68 = scmp.eq.s32.totalorder %s16, 0
    %p69 = por %p67, %p68
    %s71 = sadd.s32 %s70, 1
    %p74 = scmp.eq.s32.totalorder %s10, 1
    %p75 = scmp.ne.s32.totalorder %s70, %s72
    %p76 = scmp.eq.s32.totalorder %s10, 0
    %p77 = por %p75, %p76
    %p78 = scmp.ne.s32.totalorder %s70, %s72
    %p79 = scmp.eq.s32.totalorder %s15, 1
    %p80 = por %p78, %p79
    %p81 = scmp.ne.s32.totalorder %s72, %s73
    %p82 = scmp.eq.s32.totalorder %s15, 0
    %p83 = por %p81, %p82
    %p84 = scmp.ne.s32.totalorder %s72, %s73
    %p85 = scmp.eq.s32.totalorder %s16, 1
    %p86 = por %p84, %p85
    %p88 = scmp.ne.s32.totalorder %s73, %s87
    %p89 = scmp.eq.s32.totalorder %s16, 0
    %p90 = por %p88, %p89
    %s92 = sadd.s32 %s91, 1
    %p95 = scmp.eq.s32.totalorder %s10, 1
    %p96 = scmp.ne.s32.totalorder %s91, %s93
    %p97 = scmp.eq.s32.totalorder %s10, 0
    %p98 = por %p96, %p97
    %p99 = scmp.ne.s32.totalorder %s91, %s93
    %p100 = scmp.eq.s32.totalorder %s15, 1
    %p101 = por %p99, %p100
    %p102 = scmp.ne.s32.totalorder %s93, %s94
    %p103 = scmp.eq.s32.totalorder %s15, 0
    %p104 = por %p102, %p103
    %p105 = scmp.ne.s32.totalorder %s93, %s94
    %p106 = scmp.eq.s32.totalorder %s16, 1
    %p107 = por %p105, %p106
    %p109 = scmp.ne.s32.totalorder %s94, %s108
    %p110 = scmp.eq.s32.totalorder %s16, 0
    %p111 = por %p109, %p110
    %s112 = ssub.s32 %s10, %s17
    %p113 = scmp.eq.s32.totalorder %s112, 0
    %s115 = sadd.s32 %s114, 1
    %s116 = scalar_select %p113, %s114, %s115
    %p119 = pneg %p113
    %p120 = scmp.eq.s32.totalorder %s10, 1
    %p121 = por %p119, %p120
    %p122 = scmp.ne.s32.totalorder %s114, %s117
    %p123 = scmp.eq.s32.totalorder %s10, 0
    %p124 = por %p122, %p123
    %p125 = scmp.ne.s32.totalorder %s114, %s117
    %p126 = scmp.eq.s32.totalorder %s15, 1
    %p127 = por %p125, %p126
    %p128 = scmp.ne.s32.totalorder %s117, %s118
    %p129 = scmp.eq.s32.totalorder %s15, 0
    %p130 = por %p128, %p129
    %p131 = scmp.ne.s32.totalorder %s117, %s118
    %p132 = scmp.eq.s32.totalorder %s16, 1
    %p133 = por %p131, %p132
    %p135 = scmp.ne.s32.totalorder %s118, %s134
    %p136 = scmp.eq.s32.totalorder %s16, 0
    %p137 = por %p135, %p136
    %p138 = scmp.le.s32.totalorder 1, %s10
    %p139 = scmp.lt.s32.totalorder %s10, 3
    %p140 = pnand %p138, %p139
    %p141 = pneg %p140
    // Predicated region
    $region9: #{basic_block.5} parent=5 // pred_check
      _
    $region10: #{basic_block.5} parent=5 // pred_check_branch
      %143 = sbr.rel (%p140) target = $region12
    $region11: #{basic_block.5} parent=5 // pred_region
      %s144 = ssub.s32 %s10, 1
      // Predicated region
      $region13: #{basic_block.5} parent=11 // pred_check
        %p145 = pneg %p83
      $region14: #{basic_block.5} parent=11 // pred_check_branch
        %147 = sbr.rel (%p145) target = $region16
      $region15: #{basic_block.5} parent=11 // pred_region
        _
      $region16: #{basic_block.5} parent=11 // pred_fallthru
        _
      // Predicated region
      $region17: #{basic_block.5} parent=11 // pred_check
        %p148 = pneg %p104
      $region18: #{basic_block.5} parent=11 // pred_check_branch
        %150 = sbr.rel (%p148) target = $region20
      $region19: #{basic_block.5} parent=11 // pred_region
        _
      $region20: #{basic_block.5} parent=11 // pred_fallthru
        _
    $region12: #{basic_block.5} parent=5 // pred_fallthru
      _
    %p151 = scmp.lt.s32.totalorder %s10, 2
    // Predicated region
    $region21: #{basic_block.5} parent=5 // pred_check
      %p152 = pneg %p151
    $region22: #{basic_block.5} parent=5 // pred_check_branch
      %154 = sbr.rel (%p152) target = $region24
    $region23: #{basic_block.5} parent=5 // pred_region
      // Predicated region
      $region25: #{basic_block.5} parent=23 // pred_check
        %p155 = pneg %p30
      $region26: #{basic_block.5} parent=23 // pred_check_branch
        %157 = sbr.rel (%p155) target = $region28
      $region27: #{basic_block.5} parent=23 // pred_region
        %s158 = smul.u32 32, %s10
        %p159 = scmp.lt.s32.totalorder %s158, 63
        %s160 = scalar_select %p159, %s158, 63
        %s161 = smul.addr %s160, 8
        %s162 = scalar_lea.vmem %s0, %s161
        %s163 = smul.u32 32, %s10
      $region28: #{basic_block.5} parent=23 // pred_fallthru
        _
      // Predicated region
      $region29: #{basic_block.5} parent=23 // pred_check
        %p164 = pneg %p56
      $region30: #{basic_block.5} parent=23 // pred_check_branch
        %166 = sbr.rel (%p164) target = $region32
      $region31: #{basic_block.5} parent=23 // pred_region
        %s167 = smul.u32 32, %s10
        %p168 = scmp.lt.s32.totalorder %s167, 63
        %s169 = scalar_select %p168, %s167, 63
        %s170 = smul.addr %s169, 8
        %s171 = scalar_lea.vmem %s1, %s170
        %s172 = smul.u32 32, %s10
      $region32: #{basic_block.5} parent=23 // pred_fallthru
        _
    $region24: #{basic_block.5} parent=5 // pred_fallthru
      _
    %p173 = scmp.le.s32.totalorder 1, %s10
    %p174 = scmp.lt.s32.totalorder %s10, 3
    %p175 = pnand %p173, %p174
    %p176 = pneg %p175
    // Predicated region
    $region33: #{basic_block.5} parent=5 // pred_check
      _
    $region34: #{basic_block.5} parent=5 // pred_check_branch
      %178 = sbr.rel (%p175) target = $region36
    $region35: #{basic_block.5} parent=5 // pred_region
      %s179 = ssub.s32 %s10, 1
      %s180 = smul.u32 32, %s15
      %p181 = scmp.lt.s32.totalorder %s180, 63
      %s182 = scalar_select %p181, %s180, 63
      %s183 = smul.addr %s182, 8
      %s184 = scalar_lea.vmem %s0, %s183
      %p185 = pneg %p36
      %p186 = pneg %p33
      %s187 = smul.u32 32, %s15
      %p188 = scmp.lt.s32.totalorder %s187, 63
      %s189 = scalar_select %p188, %s187, 63
      %s190 = smul.addr %s189, 8
      %s191 = scalar_lea.vmem %s1, %s190
      %p192 = pneg %p62
      %p193 = pneg %p59
      %p194 = pneg %p83
      %p195 = pneg %p80
      %p196 = pneg %p104
      %p197 = pneg %p101
      %p198 = pneg %p130
      %p199 = pneg %p127
      %s200 = smul.u32 32, %s15
      %p201 = scmp.lt.s32.totalorder %s200, 63
      %s202 = scalar_select %p201, %s200, 63
      %s203 = smul.addr %s202, 8
      %s204 = scalar_lea.vmem %s4, %s203
      %s205 = smul.u32 32, %s15
      %p206 = scmp.lt.s32.totalorder %s205, 63
      %s207 = scalar_select %p206, %s205, 63
      %s208 = smul.addr %s207, 8
      %s209 = scalar_lea.vmem %s0, %s208
      %s210 = smul.u32 32, %s15
      %s211 = smul.u32 32, %s15
      %p212 = scmp.lt.s32.totalorder %s211, 63
      %s213 = scalar_select %p212, %s211, 63
      %s214 = smul.addr %s213, 8
      %s215 = scalar_lea.vmem %s1, %s214
      %s216 = smul.u32 32, %s15
      %s217 = smul.u32 32, %s15
      %p218 = scmp.lt.s32.totalorder %s217, 63
      %s219 = scalar_select %p218, %s217, 63
      %s220 = smul.addr %s219, 8
      %s221 = scalar_lea.vmem %s4, %s220
      %s222 = smul.u32 32, %s15
      %v223 = vld [vmem:[%s209] sm:$0xff]
      %v224 = vld [vmem:[%s209 + $0x8] sm:$0xff]
      %v225 = vld [vmem:[%s209 + $0x10] sm:$0xff]
      %v226 = vld [vmem:[%s209 + $0x18] sm:$0xff]
      %v227 = vld [vmem:[%s209 + $0x20] sm:$0xff]
      %v228 = vld [vmem:[%s209 + $0x28] sm:$0xff]
      %v229 = vld [vmem:[%s209 + $0x30] sm:$0xff]
      %v230 = vld [vmem:[%s209 + $0x38] sm:$0xff]
      %v231 = vld [vmem:[%s209 + $0x40] sm:$0xff]
      %v232 = vld [vmem:[%s209 + $0x48] sm:$0xff]
      %v233 = vld [vmem:[%s209 + $0x50] sm:$0xff]
      %v234 = vld [vmem:[%s209 + $0x58] sm:$0xff]
      %v235 = vld [vmem:[%s209 + $0x60] sm:$0xff]
      %v236 = vld [vmem:[%s209 + $0x68] sm:$0xff]
      %v237 = vld [vmem:[%s209 + $0x70] sm:$0xff]
      %v238 = vld [vmem:[%s209 + $0x78] sm:$0xff]
      %v239 = vld [vmem:[%s209 + $0x80] sm:$0xff]
      %v240 = vld [vmem:[%s209 + $0x88] sm:$0xff]
      %v241 = vld [vmem:[%s209 + $0x90] sm:$0xff]
      %v242 = vld [vmem:[%s209 + $0x98] sm:$0xff]
      %v243 = vld [vmem:[%s209 + $0xa0] sm:$0xff]
      %v244 = vld [vmem:[%s209 + $0xa8] sm:$0xff]
      %v245 = vld [vmem:[%s209 + $0xb0] sm:$0xff]
      %v246 = vld [vmem:[%s209 + $0xb8] sm:$0xff]
      %v247 = vld [vmem:[%s209 + $0xc0] sm:$0xff]
      %v248 = vld [vmem:[%s209 + $0xc8] sm:$0xff]
      %v249 = vld [vmem:[%s209 + $0xd0] sm:$0xff]
      %v250 = vld [vmem:[%s209 + $0xd8] sm:$0xff]
      %v251 = vld [vmem:[%s209 + $0xe0] sm:$0xff]
      %v252 = vld [vmem:[%s209 + $0xe8] sm:$0xff]
      %v253 = vld [vmem:[%s209 + $0xf0] sm:$0xff]
      %v254 = vld [vmem:[%s209 + $0xf8] sm:$0xff]
      %v255 = vld [vmem:[%s2] sm:$0x1]
      %v257 = vperm.slane %v255, 0
      %v259 = vmul.f32 %v223, %v257
      %v260 = vmul.f32 %v224, %v257
      %v261 = vmul.f32 %v225, %v257
      %v262 = vmul.f32 %v226, %v257
      %v263 = vmul.f32 %v227, %v257
      %v264 = vmul.f32 %v228, %v257
      %v265 = vmul.f32 %v229, %v257
      %v266 = vmul.f32 %v230, %v257
      %v267 = vmul.f32 %v231, %v257
      %v268 = vmul.f32 %v232, %v257
      %v269 = vmul.f32 %v233, %v257
      %v270 = vmul.f32 %v234, %v257
      %v271 = vmul.f32 %v235, %v257
      %v272 = vmul.f32 %v236, %v257
      %v273 = vmul.f32 %v237, %v257
      %v274 = vmul.f32 %v238, %v257
      %v275 = vmul.f32 %v239, %v257
      %v276 = vmul.f32 %v240, %v257
      %v277 = vmul.f32 %v241, %v257
      %v278 = vmul.f32 %v242, %v257
      %v279 = vmul.f32 %v243, %v257
      %v280 = vmul.f32 %v244, %v257
      %v281 = vmul.f32 %v245, %v257
      %v282 = vmul.f32 %v246, %v257
      %v283 = vmul.f32 %v247, %v257
      %v284 = vmul.f32 %v248, %v257
      %v285 = vmul.f32 %v249, %v257
      %v286 = vmul.f32 %v250, %v257
      %v287 = vmul.f32 %v251, %v257
      %v288 = vmul.f32 %v252, %v257
      %v289 = vmul.f32 %v253, %v257
      %v290 = vmul.f32 %v254, %v257
      %v291 = vld [vmem:[%s3] sm:$0x1]
      %v293 = vperm.slane %v291, 0
      %v295 = vadd.f32 %v259, %v293
      %v296 = vadd.f32 %v260, %v293
      %v297 = vadd.f32 %v261, %v293
      %v298 = vadd.f32 %v262, %v293
      %v299 = vadd.f32 %v263, %v293
      %v300 = vadd.f32 %v264, %v293
      %v301 = vadd.f32 %v265, %v293
      %v302 = vadd.f32 %v266, %v293
      %v303 = vadd.f32 %v267, %v293
      %v304 = vadd.f32 %v268, %v293
      %v305 = vadd.f32 %v269, %v293
      %v306 = vadd.f32 %v270, %v293
      %v307 = vadd.f32 %v271, %v293
      %v308 = vadd.f32 %v272, %v293
      %v309 = vadd.f32 %v273, %v293
      %v310 = vadd.f32 %v274, %v293
      %v311 = vadd.f32 %v275, %v293
      %v312 = vadd.f32 %v276, %v293
      %v313 = vadd.f32 %v277, %v293
      %v314 = vadd.f32 %v278, %v293
      %v315 = vadd.f32 %v279, %v293
      %v316 = vadd.f32 %v280, %v293
      %v317 = vadd.f32 %v281, %v293
      %v318 = vadd.f32 %v282, %v293
      %v319 = vadd.f32 %v283, %v293
      %v320 = vadd.f32 %v284, %v293
      %v321 = vadd.f32 %v285, %v293
      %v322 = vadd.f32 %v286, %v293
      %v323 = vadd.f32 %v287, %v293
      %v324 = vadd.f32 %v288, %v293
      %v325 = vadd.f32 %v289, %v293
      %v326 = vadd.f32 %v290, %v293
      %v327 = vld [vmem:[%s215] sm:$0xff]
      %v328 = vld [vmem:[%s215 + $0x8] sm:$0xff]
      %v329 = vld [vmem:[%s215 + $0x10] sm:$0xff]
      %v330 = vld [vmem:[%s215 + $0x18] sm:$0xff]
      %v331 = vld [vmem:[%s215 + $0x20] sm:$0xff]
      %v332 = vld [vmem:[%s215 + $0x28] sm:$0xff]
      %v333 = vld [vmem:[%s215 + $0x30] sm:$0xff]
      %v334 = vld [vmem:[%s215 + $0x38] sm:$0xff]
      %v335 = vld [vmem:[%s215 + $0x40] sm:$0xff]
      %v336 = vld [vmem:[%s215 + $0x48] sm:$0xff]
      %v337 = vld [vmem:[%s215 + $0x50] sm:$0xff]
      %v338 = vld [vmem:[%s215 + $0x58] sm:$0xff]
      %v339 = vld [vmem:[%s215 + $0x60] sm:$0xff]
      %v340 = vld [vmem:[%s215 + $0x68] sm:$0xff]
      %v341 = vld [vmem:[%s215 + $0x70] sm:$0xff]
      %v342 = vld [vmem:[%s215 + $0x78] sm:$0xff]
      %v343 = vld [vmem:[%s215 + $0x80] sm:$0xff]
      %v344 = vld [vmem:[%s215 + $0x88] sm:$0xff]
      %v345 = vld [vmem:[%s215 + $0x90] sm:$0xff]
      %v346 = vld [vmem:[%s215 + $0x98] sm:$0xff]
      %v347 = vld [vmem:[%s215 + $0xa0] sm:$0xff]
      %v348 = vld [vmem:[%s215 + $0xa8] sm:$0xff]
      %v349 = vld [vmem:[%s215 + $0xb0] sm:$0xff]
      %v350 = vld [vmem:[%s215 + $0xb8] sm:$0xff]
      %v351 = vld [vmem:[%s215 + $0xc0] sm:$0xff]
      %v352 = vld [vmem:[%s215 + $0xc8] sm:$0xff]
      %v353 = vld [vmem:[%s215 + $0xd0] sm:$0xff]
      %v354 = vld [vmem:[%s215 + $0xd8] sm:$0xff]
      %v355 = vld [vmem:[%s215 + $0xe0] sm:$0xff]
      %v356 = vld [vmem:[%s215 + $0xe8] sm:$0xff]
      %v357 = vld [vmem:[%s215 + $0xf0] sm:$0xff]
      %v358 = vld [vmem:[%s215 + $0xf8] sm:$0xff]
      %v359 = vadd.f32 %v295, %v327
      %v360 = vadd.f32 %v296, %v328
      %v361 = vadd.f32 %v297, %v329
      %v362 = vadd.f32 %v298, %v330
      %v363 = vadd.f32 %v299, %v331
      %v364 = vadd.f32 %v300, %v332
      %v365 = vadd.f32 %v301, %v333
      %v366 = vadd.f32 %v302, %v334
      %v367 = vadd.f32 %v303, %v335
      %v368 = vadd.f32 %v304, %v336
      %v369 = vadd.f32 %v305, %v337
      %v370 = vadd.f32 %v306, %v338
      %v371 = vadd.f32 %v307, %v339
      %v372 = vadd.f32 %v308, %v340
      %v373 = vadd.f32 %v309, %v341
      %v374 = vadd.f32 %v310, %v342
      %v375 = vadd.f32 %v311, %v343
      %v376 = vadd.f32 %v312, %v344
      %v377 = vadd.f32 %v313, %v345
      %v378 = vadd.f32 %v314, %v346
      %v379 = vadd.f32 %v315, %v347
      %v380 = vadd.f32 %v316, %v348
      %v381 = vadd.f32 %v317, %v349
      %v382 = vadd.f32 %v318, %v350
      %v383 = vadd.f32 %v319, %v351
      %v384 = vadd.f32 %v320, %v352
      %v385 = vadd.f32 %v321, %v353
      %v386 = vadd.f32 %v322, %v354
      %v387 = vadd.f32 %v323, %v355
      %v388 = vadd.f32 %v324, %v356
      %v389 = vadd.f32 %v325, %v357
      %v390 = vadd.f32 %v326, %v358
      %v391 = vmax.f32 %v359, 0.0
      %v392 = vmax.f32 %v360, 0.0
      %v393 = vmax.f32 %v361, 0.0
      %v394 = vmax.f32 %v362, 0.0
      %v395 = vmax.f32 %v363, 0.0
      %v396 = vmax.f32 %v364, 0.0
      %v397 = vmax.f32 %v365, 0.0
      %v398 = vmax.f32 %v366, 0.0
      %v399 = vmax.f32 %v367, 0.0
      %v400 = vmax.f32 %v368, 0.0
      %v401 = vmax.f32 %v369, 0.0
      %v402 = vmax.f32 %v370, 0.0
      %v403 = vmax.f32 %v371, 0.0
      %v404 = vmax.f32 %v372, 0.0
      %v405 = vmax.f32 %v373, 0.0
      %v406 = vmax.f32 %v374, 0.0
      %v407 = vmax.f32 %v375, 0.0
      %v408 = vmax.f32 %v376, 0.0
      %v409 = vmax.f32 %v377, 0.0
      %v410 = vmax.f32 %v378, 0.0
      %v411 = vmax.f32 %v379, 0.0
      %v412 = vmax.f32 %v380, 0.0
      %v413 = vmax.f32 %v381, 0.0
      %v414 = vmax.f32 %v382, 0.0
      %v415 = vmax.f32 %v383, 0.0
      %v416 = vmax.f32 %v384, 0.0
      %v417 = vmax.f32 %v385, 0.0
      %v418 = vmax.f32 %v386, 0.0
      %v419 = vmax.f32 %v387, 0.0
      %v420 = vmax.f32 %v388, 0.0
      %v421 = vmax.f32 %v389, 0.0
      %v422 = vmax.f32 %v390, 0.0
      %423 = vst [vmem:[%s221] sm:$0xff] %v391
      %424 = vst [vmem:[%s221 + $0x8] sm:$0xff] %v392
      %425 = vst [vmem:[%s221 + $0x10] sm:$0xff] %v393
      %426 = vst [vmem:[%s221 + $0x18] sm:$0xff] %v394
      %427 = vst [vmem:[%s221 + $0x20] sm:$0xff] %v395
      %428 = vst [vmem:[%s221 + $0x28] sm:$0xff] %v396
      %429 = vst [vmem:[%s221 + $0x30] sm:$0xff] %v397
      %430 = vst [vmem:[%s221 + $0x38] sm:$0xff] %v398
      %431 = vst [vmem:[%s221 + $0x40] sm:$0xff] %v399
      %432 = vst [vmem:[%s221 + $0x48] sm:$0xff] %v400
      %433 = vst [vmem:[%s221 + $0x50] sm:$0xff] %v401
      %434 = vst [vmem:[%s221 + $0x58] sm:$0xff] %v402
      %435 = vst [vmem:[%s221 + $0x60] sm:$0xff] %v403
      %436 = vst [vmem:[%s221 + $0x68] sm:$0xff] %v404
      %437 = vst [vmem:[%s221 + $0x70] sm:$0xff] %v405
      %438 = vst [vmem:[%s221 + $0x78] sm:$0xff] %v406
      %439 = vst [vmem:[%s221 + $0x80] sm:$0xff] %v407
      %440 = vst [vmem:[%s221 + $0x88] sm:$0xff] %v408
      %441 = vst [vmem:[%s221 + $0x90] sm:$0xff] %v409
      %442 = vst [vmem:[%s221 + $0x98] sm:$0xff] %v410
      %443 = vst [vmem:[%s221 + $0xa0] sm:$0xff] %v411
      %444 = vst [vmem:[%s221 + $0xa8] sm:$0xff] %v412
      %445 = vst [vmem:[%s221 + $0xb0] sm:$0xff] %v413
      %446 = vst [vmem:[%s221 + $0xb8] sm:$0xff] %v414
      %447 = vst [vmem:[%s221 + $0xc0] sm:$0xff] %v415
      %448 = vst [vmem:[%s221 + $0xc8] sm:$0xff] %v416
      %449 = vst [vmem:[%s221 + $0xd0] sm:$0xff] %v417
      %450 = vst [vmem:[%s221 + $0xd8] sm:$0xff] %v418
      %451 = vst [vmem:[%s221 + $0xe0] sm:$0xff] %v419
      %452 = vst [vmem:[%s221 + $0xe8] sm:$0xff] %v420
      %453 = vst [vmem:[%s221 + $0xf0] sm:$0xff] %v421
      %454 = vst [vmem:[%s221 + $0xf8] sm:$0xff] %v422
      %s455 = smul.u32 32, %s15
      %p456 = scmp.lt.s32.totalorder %s455, 63
      %s457 = scalar_select %p456, %s455, 63
      %s458 = smul.addr %s457, 8
      %s459 = scalar_lea.vmem %s4, %s458
      // Predicated region
      $region37: #{basic_block.5} parent=35 // pred_check
        %p460 = pneg %p127
      $region38: #{basic_block.5} parent=35 // pred_check_branch
        %462 = sbr.rel (%p460) target = $region40
      $region39: #{basic_block.5} parent=35 // pred_region
        %s463 = smul.u32 32, %s15
      $region40: #{basic_block.5} parent=35 // pred_fallthru
        _
    $region36: #{basic_block.5} parent=5 // pred_fallthru
      _
    %p464 = scmp.le.s32.totalorder 2, %s10
    // Predicated region
    $region41: #{basic_block.5} parent=5 // pred_check
      %p465 = pneg %p464
    $region42: #{basic_block.5} parent=5 // pred_check_branch
      %467 = sbr.rel (%p465) target = $region44
    $region43: #{basic_block.5} parent=5 // pred_region
      %s468 = ssub.s32 %s10, 2
      // Predicated region
      $region45: #{basic_block.5} parent=43 // pred_check
        %p469 = pneg %p133
      $region46: #{basic_block.5} parent=43 // pred_check_branch
        %471 = sbr.rel (%p469) target = $region48
      $region47: #{basic_block.5} parent=43 // pred_region
        %s472 = smul.u32 32, %s16
        %p473 = scmp.lt.s32.totalorder %s472, 63
        %s474 = scalar_select %p473, %s472, 63
        %s475 = smul.addr %s474, 8
        %s476 = scalar_lea.vmem %s4, %s475
      $region48: #{basic_block.5} parent=43 // pred_fallthru
        _
    $region44: #{basic_block.5} parent=5 // pred_fallthru
      _
  $region6: #{basic_block.5} parent=0 // loop_footer
    %s14 = sadd.s32 1, %s10
  $region7: #{basic_block.5} parent=0 // loop_footer_branch
    %9 = sbr.rel target = $region3
  $region8: #{basic_block.5} parent=0 // loop_exit
    _

// kernel: basic_block.4
$region0: #{basic_block.4}
  #allocation0 [shape = 'u32[]', space=smem, size = 0x4, offset = 0x4, fixed_abs, tag = 'smem constant byte address 0x4 - core index']
  #allocation1 [shape = 'u32[72,128]{1,0:T(1,128)}', space=vmem, size = 0x9000, scoped, tag = 'internal scratch']
  %s0 = inlined_call_operand.vmem [shape: f32[512,128], index: 0, kind: input, shape index: {}]
  %s1 = inlined_call_operand.vmem [shape: f32[1,128], index: 1, kind: input, shape index: {}]
  %s2 = inlined_call_operand.vmem [shape: f32[1,128], index: 2, kind: input, shape index: {}]
  %s3 = inlined_call_operand.vmem [shape: bf16[384,128], index: 3, kind: input, shape index: {}]
  %s4 = inlined_call_operand.vmem [shape: f32[512,128], index: 4, kind: output, shape index: {0}]
  %s5 = inlined_call_operand.vmem [shape: f32[2,2,128], index: 5, kind: output, shape index: {1}]
  %6 = xla_tuple %s4, %s5
  %s7 = sld [smem:[#allocation0]]
  $region57: #{basic_block.4} parent=0
    _
  %s9 = ssub.s32 1, %s7
  %s10 = scalar_select 0, %s9, %s7
  loop: start=0, step=1, limit=4
  $region2: #{basic_block.4} parent=0 // loop_pre_header
    _
  $region3: #{basic_block.4} parent=0 // loop_header
    %s12 = sphi 0, %s16
    %p13 = scmp.ge.s32.totalorder %s12, 4
    %s22 = sphi 0, %s24
    %s25 = sphi 0, %s22
    %s26 = sphi 0, %s25
    %s42 = sphi 0, %s26
    %s46 = sphi 0, %s46
    %s48 = sphi 0, %s46
    %s49 = sphi 0, %s48
    %s63 = sphi 0, %s49
    %s67 = sphi 0, %s67
    %s69 = sphi 0, %s67
    %s70 = sphi 0, %s69
    %s84 = sphi 0, %s70
    %s88 = sphi 0, %s88
    %s90 = sphi 0, %s88
    %s91 = sphi 0, %s90
    %s105 = sphi 0, %s91
    %s111 = sphi 0, %s113
    %s114 = sphi 0, %s111
    %s115 = sphi 0, %s114
    %s131 = sphi 0, %s115
    %s137 = sphi 0, %s139
    %s140 = sphi 0, %s137
    %s141 = sphi 0, %s140
    %s157 = sphi 0, %s141
  $region4: #{basic_block.4} parent=0 // loop_header_branch
    %15 = sbr.rel (%p13) target = $region8
  $region5: #{basic_block.4} parent=0 // loop_body
    %s17 = ssub.s32 %s12, 1
    %s18 = ssub.s32 %s12, 2
    %s19 = sadd.s32 %s12, 1
    %s20 = ssub.s32 %s12, %s19
    %p21 = scmp.eq.s32.totalorder %s20, 0
    %s23 = sadd.s32 %s22, 1
    %s24 = scalar_select %p21, %s22, %s23
    %p27 = pneg %p21
    %p28 = scmp.eq.s32.totalorder %s12, 1
    %p29 = por %p27, %p28
    %p30 = scmp.ne.s32.totalorder %s22, %s25
    %p31 = scmp.eq.s32.totalorder %s12, 0
    %p32 = por %p30, %p31
    %p33 = scmp.ne.s32.totalorder %s22, %s25
    %p34 = scmp.eq.s32.totalorder %s17, 1
    %p35 = por %p33, %p34
    %p36 = scmp.ne.s32.totalorder %s25, %s26
    %p37 = scmp.eq.s32.totalorder %s17, 0
    %p38 = por %p36, %p37
    %p39 = scmp.ne.s32.totalorder %s25, %s26
    %p40 = scmp.eq.s32.totalorder %s18, 1
    %p41 = por %p39, %p40
    %p43 = scmp.ne.s32.totalorder %s26, %s42
    %p44 = scmp.eq.s32.totalorder %s18, 0
    %p45 = por %p43, %p44
    %s47 = sadd.s32 %s46, 1
    %p50 = scmp.eq.s32.totalorder %s12, 1
    %p51 = scmp.ne.s32.totalorder %s46, %s48
    %p52 = scmp.eq.s32.totalorder %s12, 0
    %p53 = por %p51, %p52
    %p54 = scmp.ne.s32.totalorder %s46, %s48
    %p55 = scmp.eq.s32.totalorder %s17, 1
    %p56 = por %p54, %p55
    %p57 = scmp.ne.s32.totalorder %s48, %s49
    %p58 = scmp.eq.s32.totalorder %s17, 0
    %p59 = por %p57, %p58
    %p60 = scmp.ne.s32.totalorder %s48, %s49
    %p61 = scmp.eq.s32.totalorder %s18, 1
    %p62 = por %p60, %p61
    %p64 = scmp.ne.s32.totalorder %s49, %s63
    %p65 = scmp.eq.s32.totalorder %s18, 0
    %p66 = por %p64, %p65
    %s68 = sadd.s32 %s67, 1
    %p71 = scmp.eq.s32.totalorder %s12, 1
    %p72 = scmp.ne.s32.totalorder %s67, %s69
    %p73 = scmp.eq.s32.totalorder %s12, 0
    %p74 = por %p72, %p73
    %p75 = scmp.ne.s32.totalorder %s67, %s69
    %p76 = scmp.eq.s32.totalorder %s17, 1
    %p77 = por %p75, %p76
    %p78 = scmp.ne.s32.totalorder %s69, %s70
    %p79 = scmp.eq.s32.totalorder %s17, 0
    %p80 = por %p78, %p79
    %p81 = scmp.ne.s32.totalorder %s69, %s70
    %p82 = scmp.eq.s32.totalorder %s18, 1
    %p83 = por %p81, %p82
    %p85 = scmp.ne.s32.totalorder %s70, %s84
    %p86 = scmp.eq.s32.totalorder %s18, 0
    %p87 = por %p85, %p86
    %s89 = sadd.s32 %s88, 1
    %p92 = scmp.eq.s32.totalorder %s12, 1
    %p93 = scmp.ne.s32.totalorder %s88, %s90
    %p94 = scmp.eq.s32.totalorder %s12, 0
    %p95 = por %p93, %p94
    %p96 = scmp.ne.s32.totalorder %s88, %s90
    %p97 = scmp.eq.s32.totalorder %s17, 1
    %p98 = por %p96, %p97
    %p99 = scmp.ne.s32.totalorder %s90, %s91
    %p100 = scmp.eq.s32.totalorder %s17, 0
    %p101 = por %p99, %p100
    %p102 = scmp.ne.s32.totalorder %s90, %s91
    %p103 = scmp.eq.s32.totalorder %s18, 1
    %p104 = por %p102, %p103
    %p106 = scmp.ne.s32.totalorder %s91, %s105
    %p107 = scmp.eq.s32.totalorder %s18, 0
    %p108 = por %p106, %p107
    %s109 = ssub.s32 %s12, %s19
    %p110 = scmp.eq.s32.totalorder %s109, 0
    %s112 = sadd.s32 %s111, 1
    %s113 = scalar_select %p110, %s111, %s112
    %p116 = pneg %p110
    %p117 = scmp.eq.s32.totalorder %s12, 1
    %p118 = por %p116, %p117
    %p119 = scmp.ne.s32.totalorder %s111, %s114
    %p120 = scmp.eq.s32.totalorder %s12, 0
    %p121 = por %p119, %p120
    %p122 = scmp.ne.s32.totalorder %s111, %s114
    %p123 = scmp.eq.s32.totalorder %s17, 1
    %p124 = por %p122, %p123
    %p125 = scmp.ne.s32.totalorder %s114, %s115
    %p126 = scmp.eq.s32.totalorder %s17, 0
    %p127 = por %p125, %p126
    %p128 = scmp.ne.s32.totalorder %s114, %s115
    %p129 = scmp.eq.s32.totalorder %s18, 1
    %p130 = por %p128, %p129
    %p132 = scmp.ne.s32.totalorder %s115, %s131
    %p133 = scmp.eq.s32.totalorder %s18, 0
    %p134 = por %p132, %p133
    %s135 = ssub.s32 %s12, %s19
    %p136 = scmp.eq.s32.totalorder %s135, 0
    %s138 = sadd.s32 %s137, 1
    %s139 = scalar_select %p136, %s137, %s138
    %p142 = pneg %p136
    %p143 = scmp.eq.s32.totalorder %s12, 1
    %p144 = por %p142, %p143
    %p145 = scmp.ne.s32.totalorder %s137, %s140
    %p146 = scmp.eq.s32.totalorder %s12, 0
    %p147 = por %p145, %p146
    %p148 = scmp.ne.s32.totalorder %s137, %s140
    %p149 = scmp.eq.s32.totalorder %s17, 1
    %p150 = por %p148, %p149
    %p151 = scmp.ne.s32.totalorder %s140, %s141
    %p152 = scmp.eq.s32.totalorder %s17, 0
    %p153 = por %p151, %p152
    %p154 = scmp.ne.s32.totalorder %s140, %s141
    %p155 = scmp.eq.s32.totalorder %s18, 1
    %p156 = por %p154, %p155
    %p158 = scmp.ne.s32.totalorder %s141, %s157
    %p159 = scmp.eq.s32.totalorder %s18, 0
    %p160 = por %p158, %p159
    %p161 = scmp.le.s32.totalorder 1, %s12
    %p162 = scmp.lt.s32.totalorder %s12, 3
    %p163 = pnand %p161, %p162
    %p164 = pneg %p163
    // Predicated region
    $region9: #{basic_block.4} parent=5 // pred_check
      _
    $region10: #{basic_block.4} parent=5 // pred_check_branch
      %166 = sbr.rel (%p163) target = $region12
    $region11: #{basic_block.4} parent=5 // pred_region
      %s167 = ssub.s32 %s12, 1
      // Predicated region
      $region13: #{basic_block.4} parent=11 // pred_check
        %p168 = pneg %p59
      $region14: #{basic_block.4} parent=11 // pred_check_branch
        %170 = sbr.rel (%p168) target = $region16
      $region15: #{basic_block.4} parent=11 // pred_region
        _
      $region16: #{basic_block.4} parent=11 // pred_fallthru
        _
      // Predicated region
      $region17: #{basic_block.4} parent=11 // pred_check
        %p171 = pneg %p80
      $region18: #{basic_block.4} parent=11 // pred_check_branch
        %173 = sbr.rel (%p171) target = $region20
      $region19: #{basic_block.4} parent=11 // pred_region
        _
      $region20: #{basic_block.4} parent=11 // pred_fallthru
        _
      // Predicated region
      $region21: #{basic_block.4} parent=11 // pred_check
        %p174 = pneg %p101
      $region22: #{basic_block.4} parent=11 // pred_check_branch
        %176 = sbr.rel (%p174) target = $region24
      $region23: #{basic_block.4} parent=11 // pred_region
        _
      $region24: #{basic_block.4} parent=11 // pred_fallthru
        _
    $region12: #{basic_block.4} parent=5 // pred_fallthru
      _
    %p177 = scmp.lt.s32.totalorder %s12, 2
    // Predicated region
    $region25: #{basic_block.4} parent=5 // pred_check
      %p178 = pneg %p177
    $region26: #{basic_block.4} parent=5 // pred_check_branch
      %180 = sbr.rel (%p178) target = $region28
    $region27: #{basic_block.4} parent=5 // pred_region
      // Predicated region
      $region29: #{basic_block.4} parent=27 // pred_check
        %p181 = pneg %p32
      $region30: #{basic_block.4} parent=27 // pred_check_branch
        %183 = sbr.rel (%p181) target = $region32
      $region31: #{basic_block.4} parent=27 // pred_region
        %s184 = smul.u32 32, %s12
        %p185 = scmp.lt.s32.totalorder %s184, 63
        %s186 = scalar_select %p185, %s184, 63
        %s187 = smul.addr %s186, 8
        %s188 = scalar_lea.vmem %s0, %s187
        %s189 = smul.u32 32, %s12
      $region32: #{basic_block.4} parent=27 // pred_fallthru
        _
    $region28: #{basic_block.4} parent=5 // pred_fallthru
      _
    %p190 = scmp.le.s32.totalorder 1, %s12
    %p191 = scmp.lt.s32.totalorder %s12, 3
    %p192 = pnand %p190, %p191
    %p193 = pneg %p192
    // Predicated region
    $region33: #{basic_block.4} parent=5 // pred_check
      _
    $region34: #{basic_block.4} parent=5 // pred_check_branch
      %195 = sbr.rel (%p192) target = $region36
    $region35: #{basic_block.4} parent=5 // pred_region
      %s196 = ssub.s32 %s12, 1
      %s197 = smul.u32 32, %s17
      %p198 = scmp.lt.s32.totalorder %s197, 63
      %s199 = scalar_select %p198, %s197, 63
      %s200 = smul.addr %s199, 8
      %s201 = scalar_lea.vmem %s0, %s200
      %p202 = pneg %p38
      %p203 = pneg %p35
      %p204 = pneg %p59
      %p205 = pneg %p56
      %p206 = pneg %p80
      %p207 = pneg %p77
      %p208 = pneg %p101
      %p209 = pneg %p98
      %p210 = pneg %p127
      %p211 = pneg %p124
      %s212 = smul.u32 32, %s17
      %p213 = scmp.lt.s32.totalorder %s212, 63
      %s214 = scalar_select %p213, %s212, 63
      %s215 = smul.addr %s214, 8
      %s216 = scalar_lea.vmem %s4, %s215
      %p217 = pneg %p153
      %p218 = pneg %p150
      %p219 = scmp.lt.s32.totalorder %s17, 1
      %s220 = scalar_select %p219, %s17, 1
      %s221 = smul.addr %s220, 2
      %s222 = scalar_lea.vmem %s5, %s221
      %s223 = smul.u32 32, %s17
      %p224 = scmp.lt.s32.totalorder %s223, 63
      %s225 = scalar_select %p224, %s223, 63
      %s226 = smul.addr %s225, 8
      %s227 = scalar_lea.vmem %s0, %s226
      %s228 = smul.u32 32, %s17
      %s229 = smul.u32 32, %s17
      %p230 = scmp.lt.s32.totalorder %s229, 63
      %s231 = scalar_select %p230, %s229, 63
      %s232 = smul.addr %s231, 8
      %s233 = scalar_lea.vmem %s4, %s232
      %s234 = smul.u32 32, %s17
      %p235 = scmp.lt.s32.totalorder %s17, 1
      %s236 = scalar_select %p235, %s17, 1
      %s237 = smul.addr %s236, 2
      %s238 = scalar_lea.vmem %s5, %s237
      %v239 = vlaneseq
      %v240 = vshrl.u32 %v239, 7
      %v241 = vadd.s32 %v240, 8
      %v242 = vadd.s32 %v240, 16
      %v243 = vadd.s32 %v240, 24
      %v244 = vadd.s32 %v240, 32
      %v245 = vadd.s32 %v240, 40
      %v246 = vadd.s32 %v240, 48
      %v247 = vadd.s32 %v240, 56
      %v248 = vadd.s32 %v240, 64
      %v249 = vadd.s32 %v240, 72
      %v250 = vadd.s32 %v240, 80
      %v251 = vadd.s32 %v240, 88
      %v252 = vadd.s32 %v240, 96
      %v253 = vadd.s32 %v240, 104
      %v254 = vadd.s32 %v240, 112
      %v255 = vadd.s32 %v240, 120
      %v256 = vadd.s32 %v240, 128
      %v257 = vadd.s32 %v240, 136
      %v258 = vadd.s32 %v240, 144
      %v259 = vadd.s32 %v240, 152
      %v260 = vadd.s32 %v240, 160
      %v261 = vadd.s32 %v240, 168
      %v262 = vadd.s32 %v240, 176
      %v263 = vadd.s32 %v240, 184
      %v264 = vadd.s32 %v240, 192
      %v265 = vadd.s32 %v240, 200
      %v266 = vadd.s32 %v240, 208
      %v267 = vadd.s32 %v240, 216
      %v268 = vadd.s32 %v240, 224
      %v269 = vadd.s32 %v240, 232
      %v270 = vadd.s32 %v240, 240
      %v271 = vadd.s32 %v240, 248
      %vm272 = vcmp.lt.s32.totalorder %v240, 0
      %v273 = vsub.s32 0, %v240
      %v274 = vsel %vm272, %v273, %v240
      %v275 = vshrl.u32 %v274, 4
      %v276 = vand.u32 %v274, 15
      %v277 = vsub.s32 0, %v276
      %v278 = vsel %vm272, %v277, %v276
      %vm279 = vcmp.lt.s32.totalorder %v241, 0
      %v280 = vsub.s32 0, %v241
      %v281 = vsel %vm279, %v280, %v241
      %v282 = vshrl.u32 %v281, 4
      %v283 = vand.u32 %v281, 15
      %v284 = vsub.s32 0, %v283
      %v285 = vsel %vm279, %v284, %v283
      %vm286 = vcmp.lt.s32.totalorder %v242, 0
      %v287 = vsub.s32 0, %v242
      %v288 = vsel %vm286, %v287, %v242
      %v289 = vshrl.u32 %v288, 4
      %v290 = vand.u32 %v288, 15
      %v291 = vsub.s32 0, %v290
      %v292 = vsel %vm286, %v291, %v290
      %vm293 = vcmp.lt.s32.totalorder %v243, 0
      %v294 = vsub.s32 0, %v243
      %v295 = vsel %vm293, %v294, %v243
      %v296 = vshrl.u32 %v295, 4
      %v297 = vand.u32 %v295, 15
      %v298 = vsub.s32 0, %v297
      %v299 = vsel %vm293, %v298, %v297
      %vm300 = vcmp.lt.s32.totalorder %v244, 0
      %v301 = vsub.s32 0, %v244
      %v302 = vsel %vm300, %v301, %v244
      %v303 = vshrl.u32 %v302, 4
      %v304 = vand.u32 %v302, 15
      %v305 = vsub.s32 0, %v304
      %v306 = vsel %vm300, %v305, %v304
      %vm307 = vcmp.lt.s32.totalorder %v245, 0
      %v308 = vsub.s32 0, %v245
      %v309 = vsel %vm307, %v308, %v245
      %v310 = vshrl.u32 %v309, 4
      %v311 = vand.u32 %v309, 15
      %v312 = vsub.s32 0, %v311
      %v313 = vsel %vm307, %v312, %v311
      %vm314 = vcmp.lt.s32.totalorder %v246, 0
      %v315 = vsub.s32 0, %v246
      %v316 = vsel %vm314, %v315, %v246
      %v317 = vshrl.u32 %v316, 4
      %v318 = vand.u32 %v316, 15
      %v319 = vsub.s32 0, %v318
      %v320 = vsel %vm314, %v319, %v318
      %vm321 = vcmp.lt.s32.totalorder %v247, 0
      %v322 = vsub.s32 0, %v247
      %v323 = vsel %vm321, %v322, %v247
      %v324 = vshrl.u32 %v323, 4
      %v325 = vand.u32 %v323, 15
      %v326 = vsub.s32 0, %v325
      %v327 = vsel %vm321, %v326, %v325
      %vm328 = vcmp.lt.s32.totalorder %v248, 0
      %v329 = vsub.s32 0, %v248
      %v330 = vsel %vm328, %v329, %v248
      %v331 = vshrl.u32 %v330, 4
      %v332 = vand.u32 %v330, 15
      %v333 = vsub.s32 0, %v332
      %v334 = vsel %vm328, %v333, %v332
      %vm335 = vcmp.lt.s32.totalorder %v249, 0
      %v336 = vsub.s32 0, %v249
      %v337 = vsel %vm335, %v336, %v249
      %v338 = vshrl.u32 %v337, 4
      %v339 = vand.u32 %v337, 15
      %v340 = vsub.s32 0, %v339
      %v341 = vsel %vm335, %v340, %v339
      %vm342 = vcmp.lt.s32.totalorder %v250, 0
      %v343 = vsub.s32 0, %v250
      %v344 = vsel %vm342, %v343, %v250
      %v345 = vshrl.u32 %v344, 4
      %v346 = vand.u32 %v344, 15
      %v347 = vsub.s32 0, %v346
      %v348 = vsel %vm342, %v347, %v346
      %vm349 = vcmp.lt.s32.totalorder %v251, 0
      %v350 = vsub.s32 0, %v251
      %v351 = vsel %vm349, %v350, %v251
      %v352 = vshrl.u32 %v351, 4
      %v353 = vand.u32 %v351, 15
      %v354 = vsub.s32 0, %v353
      %v355 = vsel %vm349, %v354, %v353
      %vm356 = vcmp.lt.s32.totalorder %v252, 0
      %v357 = vsub.s32 0, %v252
      %v358 = vsel %vm356, %v357, %v252
      %v359 = vshrl.u32 %v358, 4
      %v360 = vand.u32 %v358, 15
      %v361 = vsub.s32 0, %v360
      %v362 = vsel %vm356, %v361, %v360
      %vm363 = vcmp.lt.s32.totalorder %v253, 0
      %v364 = vsub.s32 0, %v253
      %v365 = vsel %vm363, %v364, %v253
      %v366 = vshrl.u32 %v365, 4
      %v367 = vand.u32 %v365, 15
      %v368 = vsub.s32 0, %v367
      %v369 = vsel %vm363, %v368, %v367
      %vm370 = vcmp.lt.s32.totalorder %v254, 0
      %v371 = vsub.s32 0, %v254
      %v372 = vsel %vm370, %v371, %v254
      %v373 = vshrl.u32 %v372, 4
      %v374 = vand.u32 %v372, 15
      %v375 = vsub.s32 0, %v374
      %v376 = vsel %vm370, %v375, %v374
      %vm377 = vcmp.lt.s32.totalorder %v255, 0
      %v378 = vsub.s32 0, %v255
      %v379 = vsel %vm377, %v378, %v255
      %v380 = vshrl.u32 %v379, 4
      %v381 = vand.u32 %v379, 15
      %v382 = vsub.s32 0, %v381
      %v383 = vsel %vm377, %v382, %v381
      %vm384 = vcmp.lt.s32.totalorder %v256, 0
      %v385 = vsub.s32 0, %v256
      %v386 = vsel %vm384, %v385, %v256
      %v387 = vshrl.u32 %v386, 4
      %v388 = vand.u32 %v386, 15
      %v389 = vsub.s32 0, %v388
      %v390 = vsel %vm384, %v389, %v388
      %vm391 = vcmp.lt.s32.totalorder %v257, 0
      %v392 = vsub.s32 0, %v257
      %v393 = vsel %vm391, %v392, %v257
      %v394 = vshrl.u32 %v393, 4
      %v395 = vand.u32 %v393, 15
      %v396 = vsub.s32 0, %v395
      %v397 = vsel %vm391, %v396, %v395
      %vm398 = vcmp.lt.s32.totalorder %v258, 0
      %v399 = vsub.s32 0, %v258
      %v400 = vsel %vm398, %v399, %v258
      %v401 = vshrl.u32 %v400, 4
      %v402 = vand.u32 %v400, 15
      %v403 = vsub.s32 0, %v402
      %v404 = vsel %vm398, %v403, %v402
      %vm405 = vcmp.lt.s32.totalorder %v259, 0
      %v406 = vsub.s32 0, %v259
      %v407 = vsel %vm405, %v406, %v259
      %v408 = vshrl.u32 %v407, 4
      %v409 = vand.u32 %v407, 15
      %v410 = vsub.s32 0, %v409
      %v411 = vsel %vm405, %v410, %v409
      %vm412 = vcmp.lt.s32.totalorder %v260, 0
      %v413 = vsub.s32 0, %v260
      %v414 = vsel %vm412, %v413, %v260
      %v415 = vshrl.u32 %v414, 4
      %v416 = vand.u32 %v414, 15
      %v417 = vsub.s32 0, %v416
      %v418 = vsel %vm412, %v417, %v416
      %vm419 = vcmp.lt.s32.totalorder %v261, 0
      %v420 = vsub.s32 0, %v261
      %v421 = vsel %vm419, %v420, %v261
      %v422 = vshrl.u32 %v421, 4
      %v423 = vand.u32 %v421, 15
      %v424 = vsub.s32 0, %v423
      %v425 = vsel %vm419, %v424, %v423
      %vm426 = vcmp.lt.s32.totalorder %v262, 0
      %v427 = vsub.s32 0, %v262
      %v428 = vsel %vm426, %v427, %v262
      %v429 = vshrl.u32 %v428, 4
      %v430 = vand.u32 %v428, 15
      %v431 = vsub.s32 0, %v430
      %v432 = vsel %vm426, %v431, %v430
      %vm433 = vcmp.lt.s32.totalorder %v263, 0
      %v434 = vsub.s32 0, %v263
      %v435 = vsel %vm433, %v434, %v263
      %v436 = vshrl.u32 %v435, 4
      %v437 = vand.u32 %v435, 15
      %v438 = vsub.s32 0, %v437
      %v439 = vsel %vm433, %v438, %v437
      %vm440 = vcmp.lt.s32.totalorder %v264, 0
      %v441 = vsub.s32 0, %v264
      %v442 = vsel %vm440, %v441, %v264
      %v443 = vshrl.u32 %v442, 4
      %v444 = vand.u32 %v442, 15
      %v445 = vsub.s32 0, %v444
      %v446 = vsel %vm440, %v445, %v444
      %vm447 = vcmp.lt.s32.totalorder %v265, 0
      %v448 = vsub.s32 0, %v265
      %v449 = vsel %vm447, %v448, %v265
      %v450 = vshrl.u32 %v449, 4
      %v451 = vand.u32 %v449, 15
      %v452 = vsub.s32 0, %v451
      %v453 = vsel %vm447, %v452, %v451
      %vm454 = vcmp.lt.s32.totalorder %v266, 0
      %v455 = vsub.s32 0, %v266
      %v456 = vsel %vm454, %v455, %v266
      %v457 = vshrl.u32 %v456, 4
      %v458 = vand.u32 %v456, 15
      %v459 = vsub.s32 0, %v458
      %v460 = vsel %vm454, %v459, %v458
      %vm461 = vcmp.lt.s32.totalorder %v267, 0
      %v462 = vsub.s32 0, %v267
      %v463 = vsel %vm461, %v462, %v267
      %v464 = vshrl.u32 %v463, 4
      %v465 = vand.u32 %v463, 15
      %v466 = vsub.s32 0, %v465
      %v467 = vsel %vm461, %v466, %v465
      %vm468 = vcmp.lt.s32.totalorder %v268, 0
      %v469 = vsub.s32 0, %v268
      %v470 = vsel %vm468, %v469, %v268
      %v471 = vshrl.u32 %v470, 4
      %v472 = vand.u32 %v470, 15
      %v473 = vsub.s32 0, %v472
      %v474 = vsel %vm468, %v473, %v472
      %vm475 = vcmp.lt.s32.totalorder %v269, 0
      %v476 = vsub.s32 0, %v269
      %v477 = vsel %vm475, %v476, %v269
      %v478 = vshrl.u32 %v477, 4
      %v479 = vand.u32 %v477, 15
      %v480 = vsub.s32 0, %v479
      %v481 = vsel %vm475, %v480, %v479
      %vm482 = vcmp.lt.s32.totalorder %v270, 0
      %v483 = vsub.s32 0, %v270
      %v484 = vsel %vm482, %v483, %v270
      %v485 = vshrl.u32 %v484, 4
      %v486 = vand.u32 %v484, 15
      %v487 = vsub.s32 0, %v486
      %v488 = vsel %vm482, %v487, %v486
      %vm489 = vcmp.lt.s32.totalorder %v271, 0
      %v490 = vsub.s32 0, %v271
      %v491 = vsel %vm489, %v490, %v271
      %v492 = vshrl.u32 %v491, 4
      %v493 = vand.u32 %v491, 15
      %v494 = vsub.s32 0, %v493
      %v495 = vsel %vm489, %v494, %v493
      %vm496 = vcmp.ne.s32.totalorder %v278, 0
      %vm497 = vcmp.ne.s32.totalorder %v285, 0
      %vm498 = vcmp.ne.s32.totalorder %v292, 0
      %vm499 = vcmp.ne.s32.totalorder %v299, 0
      %vm500 = vcmp.ne.s32.totalorder %v306, 0
      %vm501 = vcmp.ne.s32.totalorder %v313, 0
      %vm502 = vcmp.ne.s32.totalorder %v320, 0
      %vm503 = vcmp.ne.s32.totalorder %v327, 0
      %vm504 = vcmp.ne.s32.totalorder %v334, 0
      %vm505 = vcmp.ne.s32.totalorder %v341, 0
      %vm506 = vcmp.ne.s32.totalorder %v348, 0
      %vm507 = vcmp.ne.s32.totalorder %v355, 0
      %vm508 = vcmp.ne.s32.totalorder %v362, 0
      %vm509 = vcmp.ne.s32.totalorder %v369, 0
      %vm510 = vcmp.ne.s32.totalorder %v376, 0
      %vm511 = vcmp.ne.s32.totalorder %v383, 0
      %vm512 = vcmp.ne.s32.totalorder %v390, 0
      %vm513 = vcmp.ne.s32.totalorder %v397, 0
      %vm514 = vcmp.ne.s32.totalorder %v404, 0
      %vm515 = vcmp.ne.s32.totalorder %v411, 0
      %vm516 = vcmp.ne.s32.totalorder %v418, 0
      %vm517 = vcmp.ne.s32.totalorder %v425, 0
      %vm518 = vcmp.ne.s32.totalorder %v432, 0
      %vm519 = vcmp.ne.s32.totalorder %v439, 0
      %vm520 = vcmp.ne.s32.totalorder %v446, 0
      %vm521 = vcmp.ne.s32.totalorder %v453, 0
      %vm522 = vcmp.ne.s32.totalorder %v460, 0
      %vm523 = vcmp.ne.s32.totalorder %v467, 0
      %vm524 = vcmp.ne.s32.totalorder %v474, 0
      %vm525 = vcmp.ne.s32.totalorder %v481, 0
      %vm526 = vcmp.ne.s32.totalorder %v488, 0
      %vm527 = vcmp.ne.s32.totalorder %v495, 0
      %vm528 = vcmp.lt.s32.totalorder %v278, 0
      %vm529 = vcmp.lt.s32.totalorder %v285, 0
      %vm530 = vcmp.lt.s32.totalorder %v292, 0
      %vm531 = vcmp.lt.s32.totalorder %v299, 0
      %vm532 = vcmp.lt.s32.totalorder %v306, 0
      %vm533 = vcmp.lt.s32.totalorder %v313, 0
      %vm534 = vcmp.lt.s32.totalorder %v320, 0
      %vm535 = vcmp.lt.s32.totalorder %v327, 0
      %vm536 = vcmp.lt.s32.totalorder %v334, 0
      %vm537 = vcmp.lt.s32.totalorder %v341, 0
      %vm538 = vcmp.lt.s32.totalorder %v348, 0
      %vm539 = vcmp.lt.s32.totalorder %v355, 0
      %vm540 = vcmp.lt.s32.totalorder %v362, 0
      %vm541 = vcmp.lt.s32.totalorder %v369, 0
      %vm542 = vcmp.lt.s32.totalorder %v376, 0
      %vm543 = vcmp.lt.s32.totalorder %v383, 0
      %vm544 = vcmp.lt.s32.totalorder %v390, 0
      %vm545 = vcmp.lt.s32.totalorder %v397, 0
      %vm546 = vcmp.lt.s32.totalorder %v404, 0
      %vm547 = vcmp.lt.s32.totalorder %v411, 0
      %vm548 = vcmp.lt.s32.totalorder %v418, 0
      %vm549 = vcmp.lt.s32.totalorder %v425, 0
      %vm550 = vcmp.lt.s32.totalorder %v432, 0
      %vm551 = vcmp.lt.s32.totalorder %v439, 0
      %vm552 = vcmp.lt.s32.totalorder %v446, 0
      %vm553 = vcmp.lt.s32.totalorder %v453, 0
      %vm554 = vcmp.lt.s32.totalorder %v460, 0
      %vm555 = vcmp.lt.s32.totalorder %v467, 0
      %vm556 = vcmp.lt.s32.totalorder %v474, 0
      %vm557 = vcmp.lt.s32.totalorder %v481, 0
      %vm558 = vcmp.lt.s32.totalorder %v488, 0
      %vm559 = vcmp.lt.s32.totalorder %v495, 0
      %vm560 = vmand %vm528, %vm496
      %vm561 = vmand %vm529, %vm497
      %vm562 = vmand %vm530, %vm498
      %vm563 = vmand %vm531, %vm499
      %vm564 = vmand %vm532, %vm500
      %vm565 = vmand %vm533, %vm501
      %vm566 = vmand %vm534, %vm502
      %vm567 = vmand %vm535, %vm503
      %vm568 = vmand %vm536, %vm504
      %vm569 = vmand %vm537, %vm505
      %vm570 = vmand %vm538, %vm506
      %vm571 = vmand %vm539, %vm507
      %vm572 = vmand %vm540, %vm508
      %vm573 = vmand %vm541, %vm509
      %vm574 = vmand %vm542, %vm510
      %vm575 = vmand %vm543, %vm511
      %vm576 = vmand %vm544, %vm512
      %vm577 = vmand %vm545, %vm513
      %vm578 = vmand %vm546, %vm514
      %vm579 = vmand %vm547, %vm515
      %vm580 = vmand %vm548, %vm516
      %vm581 = vmand %vm549, %vm517
      %vm582 = vmand %vm550, %vm518
      %vm583 = vmand %vm551, %vm519
      %vm584 = vmand %vm552, %vm520
      %vm585 = vmand %vm553, %vm521
      %vm586 = vmand %vm554, %vm522
      %vm587 = vmand %vm555, %vm523
      %vm588 = vmand %vm556, %vm524
      %vm589 = vmand %vm557, %vm525
      %vm590 = vmand %vm558, %vm526
      %vm591 = vmand %vm559, %vm527
      %v592 = vadd.s32 %v278, 16
      %v593 = vadd.s32 %v285, 16
      %v594 = vadd.s32 %v292, 16
      %v595 = vadd.s32 %v299, 16
      %v596 = vadd.s32 %v306, 16
      %v597 = vadd.s32 %v313, 16
      %v598 = vadd.s32 %v320, 16
      %v599 = vadd.s32 %v327, 16
      %v600 = vadd.s32 %v334, 16
      %v601 = vadd.s32 %v341, 16
      %v602 = vadd.s32 %v348, 16
      %v603 = vadd.s32 %v355, 16
      %v604 = vadd.s32 %v362, 16
      %v605 = vadd.s32 %v369, 16
      %v606 = vadd.s32 %v376, 16
      %v607 = vadd.s32 %v383, 16
      %v608 = vadd.s32 %v390, 16
      %v609 = vadd.s32 %v397, 16
      %v610 = vadd.s32 %v404, 16
      %v611 = vadd.s32 %v411, 16
      %v612 = vadd.s32 %v418, 16
      %v613 = vadd.s32 %v425, 16
      %v614 = vadd.s32 %v432, 16
      %v615 = vadd.s32 %v439, 16
      %v616 = vadd.s32 %v446, 16
      %v617 = vadd.s32 %v453, 16
      %v618 = vadd.s32 %v460, 16
      %v619 = vadd.s32 %v467, 16
      %v620 = vadd.s32 %v474, 16
      %v621 = vadd.s32 %v481, 16
      %v622 = vadd.s32 %v488, 16
      %v623 = vadd.s32 %v495, 16
      %v624 = vsel %vm560, %v592, %v278
      %v625 = vsel %vm561, %v593, %v285
      %v626 = vsel %vm562, %v594, %v292
      %v627 = vsel %vm563, %v595, %v299
      %v628 = vsel %vm564, %v596, %v306
      %v629 = vsel %vm565, %v597, %v313
      %v630 = vsel %vm566, %v598, %v320
      %v631 = vsel %vm567, %v599, %v327
      %v632 = vsel %vm568, %v600, %v334
      %v633 = vsel %vm569, %v601, %v341
      %v634 = vsel %vm570, %v602, %v348
      %v635 = vsel %vm571, %v603, %v355
      %v636 = vsel %vm572, %v604, %v362
      %v637 = vsel %vm573, %v605, %v369
      %v638 = vsel %vm574, %v606, %v376
      %v639 = vsel %vm575, %v607, %v383
      %v640 = vsel %vm576, %v608, %v390
      %v641 = vsel %vm577, %v609, %v397
      %v642 = vsel %vm578, %v610, %v404
      %v643 = vsel %vm579, %v611, %v411
      %v644 = vsel %vm580, %v612, %v418
      %v645 = vsel %vm581, %v613, %v425
      %v646 = vsel %vm582, %v614, %v432
      %v647 = vsel %vm583, %v615, %v439
      %v648 = vsel %vm584, %v616, %v446
      %v649 = vsel %vm585, %v617, %v453
      %v650 = vsel %vm586, %v618, %v460
      %v651 = vsel %vm587, %v619, %v467
      %v652 = vsel %vm588, %v620, %v474
      %v653 = vsel %vm589, %v621, %v481
      %v654 = vsel %vm590, %v622, %v488
      %v655 = vsel %vm591, %v623, %v495
      %vm656 = vcmp.eq.s32.totalorder %v624, 0
      %vm657 = vcmp.eq.s32.totalorder %v625, 0
      %vm658 = vcmp.eq.s32.totalorder %v626, 0
      %vm659 = vcmp.eq.s32.totalorder %v627, 0
      %vm660 = vcmp.eq.s32.totalorder %v628, 0
      %vm661 = vcmp.eq.s32.totalorder %v629, 0
      %vm662 = vcmp.eq.s32.totalorder %v630, 0
      %vm663 = vcmp.eq.s32.totalorder %v631, 0
      %vm664 = vcmp.eq.s32.totalorder %v632, 0
      %vm665 = vcmp.eq.s32.totalorder %v633, 0
      %vm666 = vcmp.eq.s32.totalorder %v634, 0
      %vm667 = vcmp.eq.s32.totalorder %v635, 0
      %vm668 = vcmp.eq.s32.totalorder %v636, 0
      %vm669 = vcmp.eq.s32.totalorder %v637, 0
      %vm670 = vcmp.eq.s32.totalorder %v638, 0
      %vm671 = vcmp.eq.s32.totalorder %v639, 0
      %vm672 = vcmp.eq.s32.totalorder %v640, 0
      %vm673 = vcmp.eq.s32.totalorder %v641, 0
      %vm674 = vcmp.eq.s32.totalorder %v642, 0
      %vm675 = vcmp.eq.s32.totalorder %v643, 0
      %vm676 = vcmp.eq.s32.totalorder %v644, 0
      %vm677 = vcmp.eq.s32.totalorder %v645, 0
      %vm678 = vcmp.eq.s32.totalorder %v646, 0
      %vm679 = vcmp.eq.s32.totalorder %v647, 0
      %vm680 = vcmp.eq.s32.totalorder %v648, 0
      %vm681 = vcmp.eq.s32.totalorder %v649, 0
      %vm682 = vcmp.eq.s32.totalorder %v650, 0
      %vm683 = vcmp.eq.s32.totalorder %v651, 0
      %vm684 = vcmp.eq.s32.totalorder %v652, 0
      %vm685 = vcmp.eq.s32.totalorder %v653, 0
      %vm686 = vcmp.eq.s32.totalorder %v654, 0
      %vm687 = vcmp.eq.s32.totalorder %v655, 0
      %vm688 = vcmp.eq.s32.totalorder %v624, 15
      %vm689 = vcmp.eq.s32.totalorder %v625, 15
      %vm690 = vcmp.eq.s32.totalorder %v626, 15
      %vm691 = vcmp.eq.s32.totalorder %v627, 15
      %vm692 = vcmp.eq.s32.totalorder %v628, 15
      %vm693 = vcmp.eq.s32.totalorder %v629, 15
      %vm694 = vcmp.eq.s32.totalorder %v630, 15
      %vm695 = vcmp.eq.s32.totalorder %v631, 15
      %vm696 = vcmp.eq.s32.totalorder %v632, 15
      %vm697 = vcmp.eq.s32.totalorder %v633, 15
      %vm698 = vcmp.eq.s32.totalorder %v634, 15
      %vm699 = vcmp.eq.s32.totalorder %v635, 15
      %vm700 = vcmp.eq.s32.totalorder %v636, 15
      %vm701 = vcmp.eq.s32.totalorder %v637, 15
      %vm702 = vcmp.eq.s32.totalorder %v638, 15
      %vm703 = vcmp.eq.s32.totalorder %v639, 15
      %vm704 = vcmp.eq.s32.totalorder %v640, 15
      %vm705 = vcmp.eq.s32.totalorder %v641, 15
      %vm706 = vcmp.eq.s32.totalorder %v642, 15
      %vm707 = vcmp.eq.s32.totalorder %v643, 15
      %vm708 = vcmp.eq.s32.totalorder %v644, 15
      %vm709 = vcmp.eq.s32.totalorder %v645, 15
      %vm710 = vcmp.eq.s32.totalorder %v646, 15
      %vm711 = vcmp.eq.s32.totalorder %v647, 15
      %vm712 = vcmp.eq.s32.totalorder %v648, 15
      %vm713 = vcmp.eq.s32.totalorder %v649, 15
      %vm714 = vcmp.eq.s32.totalorder %v650, 15
      %vm715 = vcmp.eq.s32.totalorder %v651, 15
      %vm716 = vcmp.eq.s32.totalorder %v652, 15
      %vm717 = vcmp.eq.s32.totalorder %v653, 15
      %vm718 = vcmp.eq.s32.totalorder %v654, 15
      %vm719 = vcmp.eq.s32.totalorder %v655, 15
      %v720 = vld [vmem:[%s227] sm:$0xff]
      %v721 = vld [vmem:[%s227 + $0x8] sm:$0xff]
      %v722 = vld [vmem:[%s227 + $0x10] sm:$0xff]
      %v723 = vld [vmem:[%s227 + $0x18] sm:$0xff]
      %v724 = vld [vmem:[%s227 + $0x20] sm:$0xff]
      %v725 = vld [vmem:[%s227 + $0x28] sm:$0xff]
      %v726 = vld [vmem:[%s227 + $0x30] sm:$0xff]
      %v727 = vld [vmem:[%s227 + $0x38] sm:$0xff]
      %v728 = vld [vmem:[%s227 + $0x40] sm:$0xff]
      %v729 = vld [vmem:[%s227 + $0x48] sm:$0xff]
      %v730 = vld [vmem:[%s227 + $0x50] sm:$0xff]
      %v731 = vld [vmem:[%s227 + $0x58] sm:$0xff]
      %v732 = vld [vmem:[%s227 + $0x60] sm:$0xff]
      %v733 = vld [vmem:[%s227 + $0x68] sm:$0xff]
      %v734 = vld [vmem:[%s227 + $0x70] sm:$0xff]
      %v735 = vld [vmem:[%s227 + $0x78] sm:$0xff]
      %v736 = vld [vmem:[%s227 + $0x80] sm:$0xff]
      %v737 = vld [vmem:[%s227 + $0x88] sm:$0xff]
      %v738 = vld [vmem:[%s227 + $0x90] sm:$0xff]
      %v739 = vld [vmem:[%s227 + $0x98] sm:$0xff]
      %v740 = vld [vmem:[%s227 + $0xa0] sm:$0xff]
      %v741 = vld [vmem:[%s227 + $0xa8] sm:$0xff]
      %v742 = vld [vmem:[%s227 + $0xb0] sm:$0xff]
      %v743 = vld [vmem:[%s227 + $0xb8] sm:$0xff]
      %v744 = vld [vmem:[%s227 + $0xc0] sm:$0xff]
      %v745 = vld [vmem:[%s227 + $0xc8] sm:$0xff]
      %v746 = vld [vmem:[%s227 + $0xd0] sm:$0xff]
      %v747 = vld [vmem:[%s227 + $0xd8] sm:$0xff]
      %v748 = vld [vmem:[%s227 + $0xe0] sm:$0xff]
      %v749 = vld [vmem:[%s227 + $0xe8] sm:$0xff]
      %v750 = vld [vmem:[%s227 + $0xf0] sm:$0xff]
      %v751 = vld [vmem:[%s227 + $0xf8] sm:$0xff]
      %v752 = vld [vmem:[%s1] sm:$0x1]
      %v754 = vperm.slane %v752, 0
      %v756 = vmul.f32 %v720, %v754
      %v757 = vmul.f32 %v721, %v754
      %v758 = vmul.f32 %v722, %v754
      %v759 = vmul.f32 %v723, %v754
      %v760 = vmul.f32 %v724, %v754
      %v761 = vmul.f32 %v725, %v754
      %v762 = vmul.f32 %v726, %v754
      %v763 = vmul.f32 %v727, %v754
      %v764 = vmul.f32 %v728, %v754
      %v765 = vmul.f32 %v729, %v754
      %v766 = vmul.f32 %v730, %v754
      %v767 = vmul.f32 %v731, %v754
      %v768 = vmul.f32 %v732, %v754
      %v769 = vmul.f32 %v733, %v754
      %v770 = vmul.f32 %v734, %v754
      %v771 = vmul.f32 %v735, %v754
      %v772 = vmul.f32 %v736, %v754
      %v773 = vmul.f32 %v737, %v754
      %v774 = vmul.f32 %v738, %v754
      %v775 = vmul.f32 %v739, %v754
      %v776 = vmul.f32 %v740, %v754
      %v777 = vmul.f32 %v741, %v754
      %v778 = vmul.f32 %v742, %v754
      %v779 = vmul.f32 %v743, %v754
      %v780 = vmul.f32 %v744, %v754
      %v781 = vmul.f32 %v745, %v754
      %v782 = vmul.f32 %v746, %v754
      %v783 = vmul.f32 %v747, %v754
      %v784 = vmul.f32 %v748, %v754
      %v785 = vmul.f32 %v749, %v754
      %v786 = vmul.f32 %v750, %v754
      %v787 = vmul.f32 %v751, %v754
      %v788 = vld [vmem:[%s2] sm:$0x1]
      %v790 = vperm.slane %v788, 0
      %v792 = vadd.f32 %v756, %v790
      %v793 = vadd.f32 %v757, %v790
      %v794 = vadd.f32 %v758, %v790
      %v795 = vadd.f32 %v759, %v790
      %v796 = vadd.f32 %v760, %v790
      %v797 = vadd.f32 %v761, %v790
      %v798 = vadd.f32 %v762, %v790
      %v799 = vadd.f32 %v763, %v790
      %v800 = vadd.f32 %v764, %v790
      %v801 = vadd.f32 %v765, %v790
      %v802 = vadd.f32 %v766, %v790
      %v803 = vadd.f32 %v767, %v790
      %v804 = vadd.f32 %v768, %v790
      %v805 = vadd.f32 %v769, %v790
      %v806 = vadd.f32 %v770, %v790
      %v807 = vadd.f32 %v771, %v790
      %v808 = vadd.f32 %v772, %v790
      %v809 = vadd.f32 %v773, %v790
      %v810 = vadd.f32 %v774, %v790
      %v811 = vadd.f32 %v775, %v790
      %v812 = vadd.f32 %v776, %v790
      %v813 = vadd.f32 %v777, %v790
      %v814 = vadd.f32 %v778, %v790
      %v815 = vadd.f32 %v779, %v790
      %v816 = vadd.f32 %v780, %v790
      %v817 = vadd.f32 %v781, %v790
      %v818 = vadd.f32 %v782, %v790
      %v819 = vadd.f32 %v783, %v790
      %v820 = vadd.f32 %v784, %v790
      %v821 = vadd.f32 %v785, %v790
      %v822 = vadd.f32 %v786, %v790
      %v823 = vadd.f32 %v787, %v790
      %v824 = vmax.f32 %v792, 0.0
      %v825 = vmax.f32 %v793, 0.0
      %v826 = vmax.f32 %v794, 0.0
      %v827 = vmax.f32 %v795, 0.0
      %v828 = vmax.f32 %v796, 0.0
      %v829 = vmax.f32 %v797, 0.0
      %v830 = vmax.f32 %v798, 0.0
      %v831 = vmax.f32 %v799, 0.0
      %v832 = vmax.f32 %v800, 0.0
      %v833 = vmax.f32 %v801, 0.0
      %v834 = vmax.f32 %v802, 0.0
      %v835 = vmax.f32 %v803, 0.0
      %v836 = vmax.f32 %v804, 0.0
      %v837 = vmax.f32 %v805, 0.0
      %v838 = vmax.f32 %v806, 0.0
      %v839 = vmax.f32 %v807, 0.0
      %v840 = vmax.f32 %v808, 0.0
      %v841 = vmax.f32 %v809, 0.0
      %v842 = vmax.f32 %v810, 0.0
      %v843 = vmax.f32 %v811, 0.0
      %v844 = vmax.f32 %v812, 0.0
      %v845 = vmax.f32 %v813, 0.0
      %v846 = vmax.f32 %v814, 0.0
      %v847 = vmax.f32 %v815, 0.0
      %v848 = vmax.f32 %v816, 0.0
      %v849 = vmax.f32 %v817, 0.0
      %v850 = vmax.f32 %v818, 0.0
      %v851 = vmax.f32 %v819, 0.0
      %v852 = vmax.f32 %v820, 0.0
      %v853 = vmax.f32 %v821, 0.0
      %v854 = vmax.f32 %v822, 0.0
      %v855 = vmax.f32 %v823, 0.0
      %v856 = vrot.slane %v824, 7
      %v857 = vrot.slane %v825, 7
      %v858 = vrot.slane %v826, 7
      %v859 = vrot.slane %v827, 7
      %v860 = vrot.slane %v828, 7
      %v861 = vrot.slane %v829, 7
      %v862 = vrot.slane %v830, 7
      %v863 = vrot.slane %v831, 7
      %v864 = vrot.slane %v832, 7
      %v865 = vrot.slane %v833, 7
      %v866 = vrot.slane %v834, 7
      %v867 = vrot.slane %v835, 7
      %v868 = vrot.slane %v836, 7
      %v869 = vrot.slane %v837, 7
      %v870 = vrot.slane %v838, 7
      %v871 = vrot.slane %v839, 7
      %v872 = vrot.slane %v840, 7
      %v873 = vrot.slane %v841, 7
      %v874 = vrot.slane %v842, 7
      %v875 = vrot.slane %v843, 7
      %v876 = vrot.slane %v844, 7
      %v877 = vrot.slane %v845, 7
      %v878 = vrot.slane %v846, 7
      %v879 = vrot.slane %v847, 7
      %v880 = vrot.slane %v848, 7
      %v881 = vrot.slane %v849, 7
      %v882 = vrot.slane %v850, 7
      %v883 = vrot.slane %v851, 7
      %v884 = vrot.slane %v852, 7
      %v885 = vrot.slane %v853, 7
      %v886 = vrot.slane %v854, 7
      %v887 = vrot.slane %v855, 7
      %vm888 = vcmp.lt.s32.totalorder %v240, 1
      %v889 = vsel %vm888, %v886, %v887
      %v890 = vsel %vm888, %v885, %v886
      %v891 = vsel %vm888, %v884, %v885
      %v892 = vsel %vm888, %v883, %v884
      %v893 = vsel %vm888, %v882, %v883
      %v894 = vsel %vm888, %v881, %v882
      %v895 = vsel %vm888, %v880, %v881
      %v896 = vsel %vm888, %v879, %v880
      %v897 = vsel %vm888, %v878, %v879
      %v898 = vsel %vm888, %v877, %v878
      %v899 = vsel %vm888, %v876, %v877
      %v900 = vsel %vm888, %v875, %v876
      %v901 = vsel %vm888, %v874, %v875
      %v902 = vsel %vm888, %v873, %v874
      %v903 = vsel %vm888, %v872, %v873
      %v904 = vsel %vm888, %v871, %v872
      %v905 = vsel %vm888, %v870, %v871
      %v906 = vsel %vm888, %v869, %v870
      %v907 = vsel %vm888, %v868, %v869
      %v908 = vsel %vm888, %v867, %v868
      %v909 = vsel %vm888, %v866, %v867
      %v910 = vsel %vm888, %v865, %v866
      %v911 = vsel %vm888, %v864, %v865
      %v912 = vsel %vm888, %v863, %v864
      %v913 = vsel %vm888, %v862, %v863
      %v914 = vsel %vm888, %v861, %v862
      %v915 = vsel %vm888, %v860, %v861
      %v916 = vsel %vm888, %v859, %v860
      %v917 = vsel %vm888, %v858, %v859
      %v918 = vsel %vm888, %v857, %v858
      %v919 = vsel %vm888, %v856, %v857
      %v920 = vsel %vm888, %v887, %v856
      %v921 = vsel %vm656, 1, 0
      %v922 = vsel %vm657, 1, 0
      %v923 = vsel %vm658, 1, 0
      %v924 = vsel %vm659, 1, 0
      %v925 = vsel %vm660, 1, 0
      %v926 = vsel %vm661, 1, 0
      %v927 = vsel %vm662, 1, 0
      %v928 = vsel %vm663, 1, 0
      %v929 = vsel %vm664, 1, 0
      %v930 = vsel %vm665, 1, 0
      %v931 = vsel %vm666, 1, 0
      %v932 = vsel %vm667, 1, 0
      %v933 = vsel %vm668, 1, 0
      %v934 = vsel %vm669, 1, 0
      %v935 = vsel %vm670, 1, 0
      %v936 = vsel %vm671, 1, 0
      %v937 = vsel %vm672, 1, 0
      %v938 = vsel %vm673, 1, 0
      %v939 = vsel %vm674, 1, 0
      %v940 = vsel %vm675, 1, 0
      %v941 = vsel %vm676, 1, 0
      %v942 = vsel %vm677, 1, 0
      %v943 = vsel %vm678, 1, 0
      %v944 = vsel %vm679, 1, 0
      %v945 = vsel %vm680, 1, 0
      %v946 = vsel %vm681, 1, 0
      %v947 = vsel %vm682, 1, 0
      %v948 = vsel %vm683, 1, 0
      %v949 = vsel %vm684, 1, 0
      %v950 = vsel %vm685, 1, 0
      %v951 = vsel %vm686, 1, 0
      %v952 = vsel %vm687, 1, 0
      %vm953 = vcmp.eq.s32.totalorder %v921, 1
      %vm954 = vcmp.eq.s32.totalorder %v922, 1
      %vm955 = vcmp.eq.s32.totalorder %v923, 1
      %vm956 = vcmp.eq.s32.totalorder %v924, 1
      %vm957 = vcmp.eq.s32.totalorder %v925, 1
      %vm958 = vcmp.eq.s32.totalorder %v926, 1
      %vm959 = vcmp.eq.s32.totalorder %v927, 1
      %vm960 = vcmp.eq.s32.totalorder %v928, 1
      %vm961 = vcmp.eq.s32.totalorder %v929, 1
      %vm962 = vcmp.eq.s32.totalorder %v930, 1
      %vm963 = vcmp.eq.s32.totalorder %v931, 1
      %vm964 = vcmp.eq.s32.totalorder %v932, 1
      %vm965 = vcmp.eq.s32.totalorder %v933, 1
      %vm966 = vcmp.eq.s32.totalorder %v934, 1
      %vm967 = vcmp.eq.s32.totalorder %v935, 1
      %vm968 = vcmp.eq.s32.totalorder %v936, 1
      %vm969 = vcmp.eq.s32.totalorder %v937, 1
      %vm970 = vcmp.eq.s32.totalorder %v938, 1
      %vm971 = vcmp.eq.s32.totalorder %v939, 1
      %vm972 = vcmp.eq.s32.totalorder %v940, 1
      %vm973 = vcmp.eq.s32.totalorder %v941, 1
      %vm974 = vcmp.eq.s32.totalorder %v942, 1
      %vm975 = vcmp.eq.s32.totalorder %v943, 1
      %vm976 = vcmp.eq.s32.totalorder %v944, 1
      %vm977 = vcmp.eq.s32.totalorder %v945, 1
      %vm978 = vcmp.eq.s32.totalorder %v946, 1
      %vm979 = vcmp.eq.s32.totalorder %v947, 1
      %vm980 = vcmp.eq.s32.totalorder %v948, 1
      %vm981 = vcmp.eq.s32.totalorder %v949, 1
      %vm982 = vcmp.eq.s32.totalorder %v950, 1
      %vm983 = vcmp.eq.s32.totalorder %v951, 1
      %vm984 = vcmp.eq.s32.totalorder %v952, 1
      %v985 = vsel %vm953, 0.0, %v920
      %v986 = vsel %vm954, 0.0, %v919
      %v987 = vsel %vm955, 0.0, %v918
      %v988 = vsel %vm956, 0.0, %v917
      %v989 = vsel %vm957, 0.0, %v916
      %v990 = vsel %vm958, 0.0, %v915
      %v991 = vsel %vm959, 0.0, %v914
      %v992 = vsel %vm960, 0.0, %v913
      %v993 = vsel %vm961, 0.0, %v912
      %v994 = vsel %vm962, 0.0, %v911
      %v995 = vsel %vm963, 0.0, %v910
      %v996 = vsel %vm964, 0.0, %v909
      %v997 = vsel %vm965, 0.0, %v908
      %v998 = vsel %vm966, 0.0, %v907
      %v999 = vsel %vm967, 0.0, %v906
      %v1000 = vsel %vm968, 0.0, %v905
      %v1001 = vsel %vm969, 0.0, %v904
      %v1002 = vsel %vm970, 0.0, %v903
      %v1003 = vsel %vm971, 0.0, %v902
      %v1004 = vsel %vm972, 0.0, %v901
      %v1005 = vsel %vm973, 0.0, %v900
      %v1006 = vsel %vm974, 0.0, %v899
      %v1007 = vsel %vm975, 0.0, %v898
      %v1008 = vsel %vm976, 0.0, %v897
      %v1009 = vsel %vm977, 0.0, %v896
      %v1010 = vsel %vm978, 0.0, %v895
      %v1011 = vsel %vm979, 0.0, %v894
      %v1012 = vsel %vm980, 0.0, %v893
      %v1013 = vsel %vm981, 0.0, %v892
      %v1014 = vsel %vm982, 0.0, %v891
      %v1015 = vsel %vm983, 0.0, %v890
      %v1016 = vsel %vm984, 0.0, %v889
      %v1017 = vrot.slane %v824, 1
      %v1018 = vrot.slane %v825, 1
      %v1019 = vrot.slane %v826, 1
      %v1020 = vrot.slane %v827, 1
      %v1021 = vrot.slane %v828, 1
      %v1022 = vrot.slane %v829, 1
      %v1023 = vrot.slane %v830, 1
      %v1024 = vrot.slane %v831, 1
      %v1025 = vrot.slane %v832, 1
      %v1026 = vrot.slane %v833, 1
      %v1027 = vrot.slane %v834, 1
      %v1028 = vrot.slane %v835, 1
      %v1029 = vrot.slane %v836, 1
      %v1030 = vrot.slane %v837, 1
      %v1031 = vrot.slane %v838, 1
      %v1032 = vrot.slane %v839, 1
      %v1033 = vrot.slane %v840, 1
      %v1034 = vrot.slane %v841, 1
      %v1035 = vrot.slane %v842, 1
      %v1036 = vrot.slane %v843, 1
      %v1037 = vrot.slane %v844, 1
      %v1038 = vrot.slane %v845, 1
      %v1039 = vrot.slane %v846, 1
      %v1040 = vrot.slane %v847, 1
      %v1041 = vrot.slane %v848, 1
      %v1042 = vrot.slane %v849, 1
      %v1043 = vrot.slane %v850, 1
      %v1044 = vrot.slane %v851, 1
      %v1045 = vrot.slane %v852, 1
      %v1046 = vrot.slane %v853, 1
      %v1047 = vrot.slane %v854, 1
      %v1048 = vrot.slane %v855, 1
      %vm1049 = vcmp.lt.s32.totalorder %v240, 7
      %v1050 = vsel %vm1049, %v1047, %v1048
      %v1051 = vsel %vm1049, %v1046, %v1047
      %v1052 = vsel %vm1049, %v1045, %v1046
      %v1053 = vsel %vm1049, %v1044, %v1045
      %v1054 = vsel %vm1049, %v1043, %v1044
      %v1055 = vsel %vm1049, %v1042, %v1043
      %v1056 = vsel %vm1049, %v1041, %v1042
      %v1057 = vsel %vm1049, %v1040, %v1041
      %v1058 = vsel %vm1049, %v1039, %v1040
      %v1059 = vsel %vm1049, %v1038, %v1039
      %v1060 = vsel %vm1049, %v1037, %v1038
      %v1061 = vsel %vm1049, %v1036, %v1037
      %v1062 = vsel %vm1049, %v1035, %v1036
      %v1063 = vsel %vm1049, %v1034, %v1035
      %v1064 = vsel %vm1049, %v1033, %v1034
      %v1065 = vsel %vm1049, %v1032, %v1033
      %v1066 = vsel %vm1049, %v1031, %v1032
      %v1067 = vsel %vm1049, %v1030, %v1031
      %v1068 = vsel %vm1049, %v1029, %v1030
      %v1069 = vsel %vm1049, %v1028, %v1029
      %v1070 = vsel %vm1049, %v1027, %v1028
      %v1071 = vsel %vm1049, %v1026, %v1027
      %v1072 = vsel %vm1049, %v1025, %v1026
      %v1073 = vsel %vm1049, %v1024, %v1025
      %v1074 = vsel %vm1049, %v1023, %v1024
      %v1075 = vsel %vm1049, %v1022, %v1023
      %v1076 = vsel %vm1049, %v1021, %v1022
      %v1077 = vsel %vm1049, %v1020, %v1021
      %v1078 = vsel %vm1049, %v1019, %v1020
      %v1079 = vsel %vm1049, %v1018, %v1019
      %v1080 = vsel %vm1049, %v1017, %v1018
      %v1081 = vsel %vm1049, %v1048, %v1017
      %v1082 = vsel %vm688, 1, 0
      %v1083 = vsel %vm689, 1, 0
      %v1084 = vsel %vm690, 1, 0
      %v1085 = vsel %vm691, 1, 0
      %v1086 = vsel %vm692, 1, 0
      %v1087 = vsel %vm693, 1, 0
      %v1088 = vsel %vm694, 1, 0
      %v1089 = vsel %vm695, 1, 0
      %v1090 = vsel %vm696, 1, 0
      %v1091 = vsel %vm697, 1, 0
      %v1092 = vsel %vm698, 1, 0
      %v1093 = vsel %vm699, 1, 0
      %v1094 = vsel %vm700, 1, 0
      %v1095 = vsel %vm701, 1, 0
      %v1096 = vsel %vm702, 1, 0
      %v1097 = vsel %vm703, 1, 0
      %v1098 = vsel %vm704, 1, 0
      %v1099 = vsel %vm705, 1, 0
      %v1100 = vsel %vm706, 1, 0
      %v1101 = vsel %vm707, 1, 0
      %v1102 = vsel %vm708, 1, 0
      %v1103 = vsel %vm709, 1, 0
      %v1104 = vsel %vm710, 1, 0
      %v1105 = vsel %vm711, 1, 0
      %v1106 = vsel %vm712, 1, 0
      %v1107 = vsel %vm713, 1, 0
      %v1108 = vsel %vm714, 1, 0
      %v1109 = vsel %vm715, 1, 0
      %v1110 = vsel %vm716, 1, 0
      %v1111 = vsel %vm717, 1, 0
      %v1112 = vsel %vm718, 1, 0
      %v1113 = vsel %vm719, 1, 0
      %vm1114 = vcmp.eq.s32.totalorder %v1082, 1
      %vm1115 = vcmp.eq.s32.totalorder %v1083, 1
      %vm1116 = vcmp.eq.s32.totalorder %v1084, 1
      %vm1117 = vcmp.eq.s32.totalorder %v1085, 1
      %vm1118 = vcmp.eq.s32.totalorder %v1086, 1
      %vm1119 = vcmp.eq.s32.totalorder %v1087, 1
      %vm1120 = vcmp.eq.s32.totalorder %v1088, 1
      %vm1121 = vcmp.eq.s32.totalorder %v1089, 1
      %vm1122 = vcmp.eq.s32.totalorder %v1090, 1
      %vm1123 = vcmp.eq.s32.totalorder %v1091, 1
      %vm1124 = vcmp.eq.s32.totalorder %v1092, 1
      %vm1125 = vcmp.eq.s32.totalorder %v1093, 1
      %vm1126 = vcmp.eq.s32.totalorder %v1094, 1
      %vm1127 = vcmp.eq.s32.totalorder %v1095, 1
      %vm1128 = vcmp.eq.s32.totalorder %v1096, 1
      %vm1129 = vcmp.eq.s32.totalorder %v1097, 1
      %vm1130 = vcmp.eq.s32.totalorder %v1098, 1
      %vm1131 = vcmp.eq.s32.totalorder %v1099, 1
      %vm1132 = vcmp.eq.s32.totalorder %v1100, 1
      %vm1133 = vcmp.eq.s32.totalorder %v1101, 1
      %vm1134 = vcmp.eq.s32.totalorder %v1102, 1
      %vm1135 = vcmp.eq.s32.totalorder %v1103, 1
      %vm1136 = vcmp.eq.s32.totalorder %v1104, 1
      %vm1137 = vcmp.eq.s32.totalorder %v1105, 1
      %vm1138 = vcmp.eq.s32.totalorder %v1106, 1
      %vm1139 = vcmp.eq.s32.totalorder %v1107, 1
      %vm1140 = vcmp.eq.s32.totalorder %v1108, 1
      %vm1141 = vcmp.eq.s32.totalorder %v1109, 1
      %vm1142 = vcmp.eq.s32.totalorder %v1110, 1
      %vm1143 = vcmp.eq.s32.totalorder %v1111, 1
      %vm1144 = vcmp.eq.s32.totalorder %v1112, 1
      %vm1145 = vcmp.eq.s32.totalorder %v1113, 1
      %v1146 = vsel %vm1114, 0.0, %v1080
      %v1147 = vsel %vm1115, 0.0, %v1079
      %v1148 = vsel %vm1116, 0.0, %v1078
      %v1149 = vsel %vm1117, 0.0, %v1077
      %v1150 = vsel %vm1118, 0.0, %v1076
      %v1151 = vsel %vm1119, 0.0, %v1075
      %v1152 = vsel %vm1120, 0.0, %v1074
      %v1153 = vsel %vm1121, 0.0, %v1073
      %v1154 = vsel %vm1122, 0.0, %v1072
      %v1155 = vsel %vm1123, 0.0, %v1071
      %v1156 = vsel %vm1124, 0.0, %v1070
      %v1157 = vsel %vm1125, 0.0, %v1069
      %v1158 = vsel %vm1126, 0.0, %v1068
      %v1159 = vsel %vm1127, 0.0, %v1067
      %v1160 = vsel %vm1128, 0.0, %v1066
      %v1161 = vsel %vm1129, 0.0, %v1065
      %v1162 = vsel %vm1130, 0.0, %v1064
      %v1163 = vsel %vm1131, 0.0, %v1063
      %v1164 = vsel %vm1132, 0.0, %v1062
      %v1165 = vsel %vm1133, 0.0, %v1061
      %v1166 = vsel %vm1134, 0.0, %v1060
      %v1167 = vsel %vm1135, 0.0, %v1059
      %v1168 = vsel %vm1136, 0.0, %v1058
      %v1169 = vsel %vm1137, 0.0, %v1057
      %v1170 = vsel %vm1138, 0.0, %v1056
      %v1171 = vsel %vm1139, 0.0, %v1055
      %v1172 = vsel %vm1140, 0.0, %v1054
      %v1173 = vsel %vm1141, 0.0, %v1053
      %v1174 = vsel %vm1142, 0.0, %v1052
      %v1175 = vsel %vm1143, 0.0, %v1051
      %v1176 = vsel %vm1144, 0.0, %v1050
      %v1177 = vsel %vm1145, 0.0, %v1081
      %v1178 = vpack.c.bf16 %v985, %v985
      %v1179 = vpack.c.bf16 %v986, %v986
      %v1180 = vpack.c.bf16 %v987, %v987
      %v1181 = vpack.c.bf16 %v988, %v988
      %v1182 = vpack.c.bf16 %v989, %v989
      %v1183 = vpack.c.bf16 %v990, %v990
      %v1184 = vpack.c.bf16 %v991, %v991
      %v1185 = vpack.c.bf16 %v992, %v992
      %v1186 = vpack.c.bf16 %v993, %v993
      %v1187 = vpack.c.bf16 %v994, %v994
      %v1188 = vpack.c.bf16 %v995, %v995
      %v1189 = vpack.c.bf16 %v996, %v996
      %v1190 = vpack.c.bf16 %v997, %v997
      %v1191 = vpack.c.bf16 %v998, %v998
      %v1192 = vpack.c.bf16 %v999, %v999
      %v1193 = vpack.c.bf16 %v1000, %v1000
      %v1194 = vpack.c.bf16 %v1001, %v1001
      %v1195 = vpack.c.bf16 %v1002, %v1002
      %v1196 = vpack.c.bf16 %v1003, %v1003
      %v1197 = vpack.c.bf16 %v1004, %v1004
      %v1198 = vpack.c.bf16 %v1005, %v1005
      %v1199 = vpack.c.bf16 %v1006, %v1006
      %v1200 = vpack.c.bf16 %v1007, %v1007
      %v1201 = vpack.c.bf16 %v1008, %v1008
      %v1202 = vpack.c.bf16 %v1009, %v1009
      %v1203 = vpack.c.bf16 %v1010, %v1010
      %v1204 = vpack.c.bf16 %v1011, %v1011
      %v1205 = vpack.c.bf16 %v1012, %v1012
      %v1206 = vpack.c.bf16 %v1013, %v1013
      %v1207 = vpack.c.bf16 %v1014, %v1014
      %v1208 = vpack.c.bf16 %v1015, %v1015
      %v1209 = vpack.c.bf16 %v1016, %v1016
      %v1210 = vpack.c.bf16 %v824, %v824
      %v1211 = vpack.c.bf16 %v825, %v825
      %v1212 = vpack.c.bf16 %v826, %v826
      %v1213 = vpack.c.bf16 %v827, %v827
      %v1214 = vpack.c.bf16 %v828, %v828
      %v1215 = vpack.c.bf16 %v829, %v829
      %v1216 = vpack.c.bf16 %v830, %v830
      %v1217 = vpack.c.bf16 %v831, %v831
      %v1218 = vpack.c.bf16 %v832, %v832
      %v1219 = vpack.c.bf16 %v833, %v833
      %v1220 = vpack.c.bf16 %v834, %v834
      %v1221 = vpack.c.bf16 %v835, %v835
      %v1222 = vpack.c.bf16 %v836, %v836
      %v1223 = vpack.c.bf16 %v837, %v837
      %v1224 = vpack.c.bf16 %v838, %v838
      %v1225 = vpack.c.bf16 %v839, %v839
      %v1226 = vpack.c.bf16 %v840, %v840
      %v1227 = vpack.c.bf16 %v841, %v841
      %v1228 = vpack.c.bf16 %v842, %v842
      %v1229 = vpack.c.bf16 %v843, %v843
      %v1230 = vpack.c.bf16 %v844, %v844
      %v1231 = vpack.c.bf16 %v845, %v845
      %v1232 = vpack.c.bf16 %v846, %v846
      %v1233 = vpack.c.bf16 %v847, %v847
      %v1234 = vpack.c.bf16 %v848, %v848
      %v1235 = vpack.c.bf16 %v849, %v849
      %v1236 = vpack.c.bf16 %v850, %v850
      %v1237 = vpack.c.bf16 %v851, %v851
      %v1238 = vpack.c.bf16 %v852, %v852
      %v1239 = vpack.c.bf16 %v853, %v853
      %v1240 = vpack.c.bf16 %v854, %v854
      %v1241 = vpack.c.bf16 %v855, %v855
      %v1242 = vpack.c.bf16 %v1146, %v1146
      %v1243 = vpack.c.bf16 %v1147, %v1147
      %v1244 = vpack.c.bf16 %v1148, %v1148
      %v1245 = vpack.c.bf16 %v1149, %v1149
      %v1246 = vpack.c.bf16 %v1150, %v1150
      %v1247 = vpack.c.bf16 %v1151, %v1151
      %v1248 = vpack.c.bf16 %v1152, %v1152
      %v1249 = vpack.c.bf16 %v1153, %v1153
      %v1250 = vpack.c.bf16 %v1154, %v1154
      %v1251 = vpack.c.bf16 %v1155, %v1155
      %v1252 = vpack.c.bf16 %v1156, %v1156
      %v1253 = vpack.c.bf16 %v1157, %v1157
      %v1254 = vpack.c.bf16 %v1158, %v1158
      %v1255 = vpack.c.bf16 %v1159, %v1159
      %v1256 = vpack.c.bf16 %v1160, %v1160
      %v1257 = vpack.c.bf16 %v1161, %v1161
      %v1258 = vpack.c.bf16 %v1162, %v1162
      %v1259 = vpack.c.bf16 %v1163, %v1163
      %v1260 = vpack.c.bf16 %v1164, %v1164
      %v1261 = vpack.c.bf16 %v1165, %v1165
      %v1262 = vpack.c.bf16 %v1166, %v1166
      %v1263 = vpack.c.bf16 %v1167, %v1167
      %v1264 = vpack.c.bf16 %v1168, %v1168
      %v1265 = vpack.c.bf16 %v1169, %v1169
      %v1266 = vpack.c.bf16 %v1170, %v1170
      %v1267 = vpack.c.bf16 %v1171, %v1171
      %v1268 = vpack.c.bf16 %v1172, %v1172
      %v1269 = vpack.c.bf16 %v1173, %v1173
      %v1270 = vpack.c.bf16 %v1174, %v1174
      %v1271 = vpack.c.bf16 %v1175, %v1175
      %v1272 = vpack.c.bf16 %v1176, %v1176
      %v1273 = vpack.c.bf16 %v1177, %v1177
      %v1306 = vunpack.c.l.b16 %v1178
      %v1307 = vunpack.c.l.b16 %v1179
      %v1308 = vunpack.c.l.b16 %v1180
      %v1309 = vunpack.c.l.b16 %v1181
      %v1310 = vunpack.c.l.b16 %v1182
      %v1311 = vunpack.c.l.b16 %v1183
      %v1312 = vunpack.c.l.b16 %v1184
      %v1313 = vunpack.c.l.b16 %v1185
      %v1314 = vunpack.c.l.b16 %v1186
      %v1315 = vunpack.c.l.b16 %v1187
      %v1316 = vunpack.c.l.b16 %v1188
      %v1317 = vunpack.c.l.b16 %v1189
      %v1318 = vunpack.c.l.b16 %v1190
      %v1319 = vunpack.c.l.b16 %v1191
      %v1320 = vunpack.c.l.b16 %v1192
      %v1321 = vunpack.c.l.b16 %v1193
      %v1322 = vunpack.c.l.b16 %v1194
      %v1323 = vunpack.c.l.b16 %v1195
      %v1324 = vunpack.c.l.b16 %v1196
      %v1325 = vunpack.c.l.b16 %v1197
      %v1326 = vunpack.c.l.b16 %v1198
      %v1327 = vunpack.c.l.b16 %v1199
      %v1328 = vunpack.c.l.b16 %v1200
      %v1329 = vunpack.c.l.b16 %v1201
      %v1330 = vunpack.c.l.b16 %v1202
      %v1331 = vunpack.c.l.b16 %v1203
      %v1332 = vunpack.c.l.b16 %v1204
      %v1333 = vunpack.c.l.b16 %v1205
      %v1334 = vunpack.c.l.b16 %v1206
      %v1335 = vunpack.c.l.b16 %v1207
      %v1336 = vunpack.c.l.b16 %v1208
      %v1337 = vunpack.c.l.b16 %v1209
      %v1338 = vpack.c.b16 %v1307, %v1306
      %v1339 = vpack.c.b16 %v1309, %v1308
      %v1340 = vpack.c.b16 %v1311, %v1310
      %v1341 = vpack.c.b16 %v1313, %v1312
      %v1342 = vpack.c.b16 %v1315, %v1314
      %v1343 = vpack.c.b16 %v1317, %v1316
      %v1344 = vpack.c.b16 %v1319, %v1318
      %v1345 = vpack.c.b16 %v1321, %v1320
      %v1346 = vpack.c.b16 %v1323, %v1322
      %v1347 = vpack.c.b16 %v1325, %v1324
      %v1348 = vpack.c.b16 %v1327, %v1326
      %v1349 = vpack.c.b16 %v1329, %v1328
      %v1350 = vpack.c.b16 %v1331, %v1330
      %v1351 = vpack.c.b16 %v1333, %v1332
      %v1352 = vpack.c.b16 %v1335, %v1334
      %v1353 = vpack.c.b16 %v1337, %v1336
      %v1402 = vunpack.c.l.b16 %v1210
      %v1403 = vunpack.c.l.b16 %v1211
      %v1404 = vunpack.c.l.b16 %v1212
      %v1405 = vunpack.c.l.b16 %v1213
      %v1406 = vunpack.c.l.b16 %v1214
      %v1407 = vunpack.c.l.b16 %v1215
      %v1408 = vunpack.c.l.b16 %v1216
      %v1409 = vunpack.c.l.b16 %v1217
      %v1410 = vunpack.c.l.b16 %v1218
      %v1411 = vunpack.c.l.b16 %v1219
      %v1412 = vunpack.c.l.b16 %v1220
      %v1413 = vunpack.c.l.b16 %v1221
      %v1414 = vunpack.c.l.b16 %v1222
      %v1415 = vunpack.c.l.b16 %v1223
      %v1416 = vunpack.c.l.b16 %v1224
      %v1417 = vunpack.c.l.b16 %v1225
      %v1418 = vunpack.c.l.b16 %v1226
      %v1419 = vunpack.c.l.b16 %v1227
      %v1420 = vunpack.c.l.b16 %v1228
      %v1421 = vunpack.c.l.b16 %v1229
      %v1422 = vunpack.c.l.b16 %v1230
      %v1423 = vunpack.c.l.b16 %v1231
      %v1424 = vunpack.c.l.b16 %v1232
      %v1425 = vunpack.c.l.b16 %v1233
      %v1426 = vunpack.c.l.b16 %v1234
      %v1427 = vunpack.c.l.b16 %v1235
      %v1428 = vunpack.c.l.b16 %v1236
      %v1429 = vunpack.c.l.b16 %v1237
      %v1430 = vunpack.c.l.b16 %v1238
      %v1431 = vunpack.c.l.b16 %v1239
      %v1432 = vunpack.c.l.b16 %v1240
      %v1433 = vunpack.c.l.b16 %v1241
      %v1434 = vpack.c.b16 %v1403, %v1402
      %v1435 = vpack.c.b16 %v1405, %v1404
      %v1436 = vpack.c.b16 %v1407, %v1406
      %v1437 = vpack.c.b16 %v1409, %v1408
      %v1438 = vpack.c.b16 %v1411, %v1410
      %v1439 = vpack.c.b16 %v1413, %v1412
      %v1440 = vpack.c.b16 %v1415, %v1414
      %v1441 = vpack.c.b16 %v1417, %v1416
      %v1442 = vpack.c.b16 %v1419, %v1418
      %v1443 = vpack.c.b16 %v1421, %v1420
      %v1444 = vpack.c.b16 %v1423, %v1422
      %v1445 = vpack.c.b16 %v1425, %v1424
      %v1446 = vpack.c.b16 %v1427, %v1426
      %v1447 = vpack.c.b16 %v1429, %v1428
      %v1448 = vpack.c.b16 %v1431, %v1430
      %v1449 = vpack.c.b16 %v1433, %v1432
      %v1498 = vunpack.c.l.b16 %v1242
      %v1499 = vunpack.c.l.b16 %v1243
      %v1500 = vunpack.c.l.b16 %v1244
      %v1501 = vunpack.c.l.b16 %v1245
      %v1502 = vunpack.c.l.b16 %v1246
      %v1503 = vunpack.c.l.b16 %v1247
      %v1504 = vunpack.c.l.b16 %v1248
      %v1505 = vunpack.c.l.b16 %v1249
      %v1506 = vunpack.c.l.b16 %v1250
      %v1507 = vunpack.c.l.b16 %v1251
      %v1508 = vunpack.c.l.b16 %v1252
      %v1509 = vunpack.c.l.b16 %v1253
      %v1510 = vunpack.c.l.b16 %v1254
      %v1511 = vunpack.c.l.b16 %v1255
      %v1512 = vunpack.c.l.b16 %v1256
      %v1513 = vunpack.c.l.b16 %v1257
      %v1514 = vunpack.c.l.b16 %v1258
      %v1515 = vunpack.c.l.b16 %v1259
      %v1516 = vunpack.c.l.b16 %v1260
      %v1517 = vunpack.c.l.b16 %v1261
      %v1518 = vunpack.c.l.b16 %v1262
      %v1519 = vunpack.c.l.b16 %v1263
      %v1520 = vunpack.c.l.b16 %v1264
      %v1521 = vunpack.c.l.b16 %v1265
      %v1522 = vunpack.c.l.b16 %v1266
      %v1523 = vunpack.c.l.b16 %v1267
      %v1524 = vunpack.c.l.b16 %v1268
      %v1525 = vunpack.c.l.b16 %v1269
      %v1526 = vunpack.c.l.b16 %v1270
      %v1527 = vunpack.c.l.b16 %v1271
      %v1528 = vunpack.c.l.b16 %v1272
      %v1529 = vunpack.c.l.b16 %v1273
      %v1530 = vpack.c.b16 %v1499, %v1498
      %v1531 = vpack.c.b16 %v1501, %v1500
      %v1532 = vpack.c.b16 %v1503, %v1502
      %v1533 = vpack.c.b16 %v1505, %v1504
      %v1534 = vpack.c.b16 %v1507, %v1506
      %v1535 = vpack.c.b16 %v1509, %v1508
      %v1536 = vpack.c.b16 %v1511, %v1510
      %v1537 = vpack.c.b16 %v1513, %v1512
      %v1538 = vpack.c.b16 %v1515, %v1514
      %v1539 = vpack.c.b16 %v1517, %v1516
      %v1540 = vpack.c.b16 %v1519, %v1518
      %v1541 = vpack.c.b16 %v1521, %v1520
      %v1542 = vpack.c.b16 %v1523, %v1522
      %v1543 = vpack.c.b16 %v1525, %v1524
      %v1544 = vpack.c.b16 %v1527, %v1526
      %v1545 = vpack.c.b16 %v1529, %v1528
      %v1562 = vld [vmem:[%s3] sm:$0xf]
      %v1563 = vld [vmem:[%s3 + $0x4] sm:$0xf]
      %v1564 = vld [vmem:[%s3 + $0x8] sm:$0xf]
      %v1565 = vld [vmem:[%s3 + $0xc] sm:$0xf]
      %v1566 = vld [vmem:[%s3 + $0x10] sm:$0xf]
      %v1567 = vld [vmem:[%s3 + $0x14] sm:$0xf]
      %v1568 = vld [vmem:[%s3 + $0x18] sm:$0xf]
      %v1569 = vld [vmem:[%s3 + $0x1c] sm:$0xf]
      %v1570 = vld [vmem:[%s3 + $0x20] sm:$0xf]
      %v1571 = vld [vmem:[%s3 + $0x24] sm:$0xf]
      %v1572 = vld [vmem:[%s3 + $0x28] sm:$0xf]
      %v1573 = vld [vmem:[%s3 + $0x2c] sm:$0xf]
      %v1574 = vld [vmem:[%s3 + $0x30] sm:$0xf]
      %v1575 = vld [vmem:[%s3 + $0x34] sm:$0xf]
      %v1576 = vld [vmem:[%s3 + $0x38] sm:$0xf]
      %v1577 = vld [vmem:[%s3 + $0x3c] sm:$0xf]
      %v1578 = vld [vmem:[%s3 + $0x40] sm:$0xf]
      %v1579 = vld [vmem:[%s3 + $0x44] sm:$0xf]
      %v1580 = vld [vmem:[%s3 + $0x48] sm:$0xf]
      %v1581 = vld [vmem:[%s3 + $0x4c] sm:$0xf]
      %v1582 = vld [vmem:[%s3 + $0x50] sm:$0xf]
      %v1583 = vld [vmem:[%s3 + $0x54] sm:$0xf]
      %v1584 = vld [vmem:[%s3 + $0x58] sm:$0xf]
      %v1585 = vld [vmem:[%s3 + $0x5c] sm:$0xf]
      %v1586 = vld [vmem:[%s3 + $0x60] sm:$0xf]
      %v1587 = vld [vmem:[%s3 + $0x64] sm:$0xf]
      %v1588 = vld [vmem:[%s3 + $0x68] sm:$0xf]
      %v1589 = vld [vmem:[%s3 + $0x6c] sm:$0xf]
      %v1590 = vld [vmem:[%s3 + $0x70] sm:$0xf]
      %v1591 = vld [vmem:[%s3 + $0x74] sm:$0xf]
      %v1592 = vld [vmem:[%s3 + $0x78] sm:$0xf]
      %v1593 = vld [vmem:[%s3 + $0x7c] sm:$0xf]
      %v1594 = vld [vmem:[%s3 + $0x80] sm:$0xf]
      %v1595 = vld [vmem:[%s3 + $0x84] sm:$0xf]
      %v1596 = vld [vmem:[%s3 + $0x88] sm:$0xf]
      %v1597 = vld [vmem:[%s3 + $0x8c] sm:$0xf]
      %v1598 = vld [vmem:[%s3 + $0x90] sm:$0xf]
      %v1599 = vld [vmem:[%s3 + $0x94] sm:$0xf]
      %v1600 = vld [vmem:[%s3 + $0x98] sm:$0xf]
      %v1601 = vld [vmem:[%s3 + $0x9c] sm:$0xf]
      %v1602 = vld [vmem:[%s3 + $0xa0] sm:$0xf]
      %v1603 = vld [vmem:[%s3 + $0xa4] sm:$0xf]
      %v1604 = vld [vmem:[%s3 + $0xa8] sm:$0xf]
      %v1605 = vld [vmem:[%s3 + $0xac] sm:$0xf]
      %v1606 = vld [vmem:[%s3 + $0xb0] sm:$0xf]
      %v1607 = vld [vmem:[%s3 + $0xb4] sm:$0xf]
      %v1608 = vld [vmem:[%s3 + $0xb8] sm:$0xf]
      %v1609 = vld [vmem:[%s3 + $0xbc] sm:$0xf]
      %v1658 = vunpack.c.l.b16 %v1562
      %v1659 = vunpack.c.l.b16 %v1563
      %v1660 = vunpack.c.l.b16 %v1564
      %v1661 = vunpack.c.l.b16 %v1565
      %v1662 = vunpack.c.l.b16 %v1566
      %v1663 = vunpack.c.l.b16 %v1567
      %v1664 = vunpack.c.l.b16 %v1568
      %v1665 = vunpack.c.l.b16 %v1569
      %v1666 = vunpack.c.l.b16 %v1570
      %v1667 = vunpack.c.l.b16 %v1571
      %v1668 = vunpack.c.l.b16 %v1572
      %v1669 = vunpack.c.l.b16 %v1573
      %v1670 = vunpack.c.l.b16 %v1574
      %v1671 = vunpack.c.l.b16 %v1575
      %v1672 = vunpack.c.l.b16 %v1576
      %v1673 = vunpack.c.l.b16 %v1577
      %v1674 = vunpack.c.l.b16 %v1578
      %v1675 = vunpack.c.l.b16 %v1579
      %v1676 = vunpack.c.l.b16 %v1580
      %v1677 = vunpack.c.l.b16 %v1581
      %v1678 = vunpack.c.l.b16 %v1582
      %v1679 = vunpack.c.l.b16 %v1583
      %v1680 = vunpack.c.l.b16 %v1584
      %v1681 = vunpack.c.l.b16 %v1585
      %v1682 = vunpack.c.l.b16 %v1586
      %v1683 = vunpack.c.l.b16 %v1587
      %v1684 = vunpack.c.l.b16 %v1588
      %v1685 = vunpack.c.l.b16 %v1589
      %v1686 = vunpack.c.l.b16 %v1590
      %v1687 = vunpack.c.l.b16 %v1591
      %v1688 = vunpack.c.l.b16 %v1592
      %v1689 = vunpack.c.l.b16 %v1593
      %v1690 = vunpack.c.l.b16 %v1594
      %v1691 = vunpack.c.l.b16 %v1595
      %v1692 = vunpack.c.l.b16 %v1596
      %v1693 = vunpack.c.l.b16 %v1597
      %v1694 = vunpack.c.l.b16 %v1598
      %v1695 = vunpack.c.l.b16 %v1599
      %v1696 = vunpack.c.l.b16 %v1600
      %v1697 = vunpack.c.l.b16 %v1601
      %v1698 = vunpack.c.l.b16 %v1602
      %v1699 = vunpack.c.l.b16 %v1603
      %v1700 = vunpack.c.l.b16 %v1604
      %v1701 = vunpack.c.l.b16 %v1605
      %v1702 = vunpack.c.l.b16 %v1606
      %v1703 = vunpack.c.l.b16 %v1607
      %v1704 = vunpack.c.l.b16 %v1608
      %v1705 = vunpack.c.l.b16 %v1609
      %v1706 = vpack.c.b16 %v1659, %v1658
      %v1707 = vpack.c.b16 %v1661, %v1660
      %v1708 = vpack.c.b16 %v1663, %v1662
      %v1709 = vpack.c.b16 %v1665, %v1664
      %v1710 = vpack.c.b16 %v1667, %v1666
      %v1711 = vpack.c.b16 %v1669, %v1668
      %v1712 = vpack.c.b16 %v1671, %v1670
      %v1713 = vpack.c.b16 %v1673, %v1672
      %v1714 = vpack.c.b16 %v1675, %v1674
      %v1715 = vpack.c.b16 %v1677, %v1676
      %v1716 = vpack.c.b16 %v1679, %v1678
      %v1717 = vpack.c.b16 %v1681, %v1680
      %v1718 = vpack.c.b16 %v1683, %v1682
      %v1719 = vpack.c.b16 %v1685, %v1684
      %v1720 = vpack.c.b16 %v1687, %v1686
      %v1721 = vpack.c.b16 %v1689, %v1688
      %v1722 = vpack.c.b16 %v1691, %v1690
      %v1723 = vpack.c.b16 %v1693, %v1692
      %v1724 = vpack.c.b16 %v1695, %v1694
      %v1725 = vpack.c.b16 %v1697, %v1696
      %v1726 = vpack.c.b16 %v1699, %v1698
      %v1727 = vpack.c.b16 %v1701, %v1700
      %v1728 = vpack.c.b16 %v1703, %v1702
      %v1729 = vpack.c.b16 %v1705, %v1704
      %1754 = vmatpush.bf16.msra.mxu0 %v1713
      %1755 = vmatpush.bf16.msra.mxu0 %v1712
      %1756 = vmatpush.bf16.msra.mxu0 %v1711
      %1757 = vmatpush.bf16.msra.mxu0 %v1710
      %1758 = vmatpush.bf16.msra.mxu0 %v1709
      %1759 = vmatpush.bf16.msra.mxu0 %v1708
      %1760 = vmatpush.bf16.msra.mxu0 %v1707
      %1761 = vmatpush.bf16.msra.mxu0 %v1706
      %1762 = vmatmul.bf16.gmra.mxu0 %v1338
      %v1763 = vpop.f32.mrf.mxu0
      %v1764 = vadd.f32 0.0, %v1763
      %v1765 = vpop.f32.mrf.mxu0
      %v1766 = vadd.f32 0.0, %v1765
      %1767 = vmatmul.bf16.gmra.mxu0 %v1339
      %v1768 = vpop.f32.mrf.mxu0
      %v1769 = vadd.f32 0.0, %v1768
      %v1770 = vpop.f32.mrf.mxu0
      %v1771 = vadd.f32 0.0, %v1770
      %1772 = vmatmul.bf16.gmra.mxu0 %v1340
      %v1773 = vpop.f32.mrf.mxu0
      %v1774 = vadd.f32 0.0, %v1773
      %v1775 = vpop.f32.mrf.mxu0
      %v1776 = vadd.f32 0.0, %v1775
      %1777 = vmatmul.bf16.gmra.mxu0 %v1341
      %v1778 = vpop.f32.mrf.mxu0
      %v1779 = vadd.f32 0.0, %v1778
      %v1780 = vpop.f32.mrf.mxu0
      %v1781 = vadd.f32 0.0, %v1780
      %1782 = vmatmul.bf16.gmra.mxu0 %v1342
      %v1783 = vpop.f32.mrf.mxu0
      %v1784 = vadd.f32 0.0, %v1783
      %v1785 = vpop.f32.mrf.mxu0
      %v1786 = vadd.f32 0.0, %v1785
      %1787 = vmatmul.bf16.gmra.mxu0 %v1343
      %v1788 = vpop.f32.mrf.mxu0
      %v1789 = vadd.f32 0.0, %v1788
      %v1790 = vpop.f32.mrf.mxu0
      %v1791 = vadd.f32 0.0, %v1790
      %1792 = vmatmul.bf16.gmra.mxu0 %v1344
      %v1793 = vpop.f32.mrf.mxu0
      %v1794 = vadd.f32 0.0, %v1793
      %v1795 = vpop.f32.mrf.mxu0
      %v1796 = vadd.f32 0.0, %v1795
      %1797 = vmatmul.bf16.gmra.mxu0 %v1345
      %v1798 = vpop.f32.mrf.mxu0
      %v1799 = vadd.f32 0.0, %v1798
      %v1800 = vpop.f32.mrf.mxu0
      %v1801 = vadd.f32 0.0, %v1800
      %1802 = vmatmul.bf16.gmra.mxu0 %v1346
      %v1803 = vpop.f32.mrf.mxu0
      %v1804 = vadd.f32 0.0, %v1803
      %v1805 = vpop.f32.mrf.mxu0
      %v1806 = vadd.f32 0.0, %v1805
      %1807 = vmatmul.bf16.gmra.mxu0 %v1347
      %v1808 = vpop.f32.mrf.mxu0
      %v1809 = vadd.f32 0.0, %v1808
      %v1810 = vpop.f32.mrf.mxu0
      %v1811 = vadd.f32 0.0, %v1810
      %1812 = vmatmul.bf16.gmra.mxu0 %v1348
      %v1813 = vpop.f32.mrf.mxu0
      %v1814 = vadd.f32 0.0, %v1813
      %v1815 = vpop.f32.mrf.mxu0
      %v1816 = vadd.f32 0.0, %v1815
      %1817 = vmatmul.bf16.gmra.mxu0 %v1349
      %v1818 = vpop.f32.mrf.mxu0
      %v1819 = vadd.f32 0.0, %v1818
      %v1820 = vpop.f32.mrf.mxu0
      %v1821 = vadd.f32 0.0, %v1820
      %1822 = vmatmul.bf16.gmra.mxu0 %v1350
      %v1823 = vpop.f32.mrf.mxu0
      %v1824 = vadd.f32 0.0, %v1823
      %v1825 = vpop.f32.mrf.mxu0
      %v1826 = vadd.f32 0.0, %v1825
      %1827 = vmatmul.bf16.gmra.mxu0 %v1351
      %v1828 = vpop.f32.mrf.mxu0
      %v1829 = vadd.f32 0.0, %v1828
      %v1830 = vpop.f32.mrf.mxu0
      %v1831 = vadd.f32 0.0, %v1830
      %1832 = vmatmul.bf16.gmra.mxu0 %v1352
      %v1833 = vpop.f32.mrf.mxu0
      %v1834 = vadd.f32 0.0, %v1833
      %v1835 = vpop.f32.mrf.mxu0
      %v1836 = vadd.f32 0.0, %v1835
      %1837 = vmatmul.bf16.gmra.mxu0 %v1353
      %v1838 = vpop.f32.mrf.mxu0
      %v1839 = vadd.f32 0.0, %v1838
      %v1840 = vpop.f32.mrf.mxu0
      %v1841 = vadd.f32 0.0, %v1840
      %1842 = vdwg.mxu0
      %1843 = vmatpush.bf16.msra.mxu0 %v1721
      %1844 = vmatpush.bf16.msra.mxu0 %v1720
      %1845 = vmatpush.bf16.msra.mxu0 %v1719
      %1846 = vmatpush.bf16.msra.mxu0 %v1718
      %1847 = vmatpush.bf16.msra.mxu0 %v1717
      %1848 = vmatpush.bf16.msra.mxu0 %v1716
      %1849 = vmatpush.bf16.msra.mxu0 %v1715
      %1850 = vmatpush.bf16.msra.mxu0 %v1714
      %1851 = vmatmul.bf16.gmra.mxu0 %v1434
      %v1852 = vpop.f32.mrf.mxu0
      %v1853 = vadd.f32 %v1764, %v1852
      %v1854 = vpop.f32.mrf.mxu0
      %v1855 = vadd.f32 %v1766, %v1854
      %1856 = vmatmul.bf16.gmra.mxu0 %v1435
      %v1857 = vpop.f32.mrf.mxu0
      %v1858 = vadd.f32 %v1769, %v1857
      %v1859 = vpop.f32.mrf.mxu0
      %v1860 = vadd.f32 %v1771, %v1859
      %1861 = vmatmul.bf16.gmra.mxu0 %v1436
      %v1862 = vpop.f32.mrf.mxu0
      %v1863 = vadd.f32 %v1774, %v1862
      %v1864 = vpop.f32.mrf.mxu0
      %v1865 = vadd.f32 %v1776, %v1864
      %1866 = vmatmul.bf16.gmra.mxu0 %v1437
      %v1867 = vpop.f32.mrf.mxu0
      %v1868 = vadd.f32 %v1779, %v1867
      %v1869 = vpop.f32.mrf.mxu0
      %v1870 = vadd.f32 %v1781, %v1869
      %1871 = vmatmul.bf16.gmra.mxu0 %v1438
      %v1872 = vpop.f32.mrf.mxu0
      %v1873 = vadd.f32 %v1784, %v1872
      %v1874 = vpop.f32.mrf.mxu0
      %v1875 = vadd.f32 %v1786, %v1874
      %1876 = vmatmul.bf16.gmra.mxu0 %v1439
      %v1877 = vpop.f32.mrf.mxu0
      %v1878 = vadd.f32 %v1789, %v1877
      %v1879 = vpop.f32.mrf.mxu0
      %v1880 = vadd.f32 %v1791, %v1879
      %1881 = vmatmul.bf16.gmra.mxu0 %v1440
      %v1882 = vpop.f32.mrf.mxu0
      %v1883 = vadd.f32 %v1794, %v1882
      %v1884 = vpop.f32.mrf.mxu0
      %v1885 = vadd.f32 %v1796, %v1884
      %1886 = vmatmul.bf16.gmra.mxu0 %v1441
      %v1887 = vpop.f32.mrf.mxu0
      %v1888 = vadd.f32 %v1799, %v1887
      %v1889 = vpop.f32.mrf.mxu0
      %v1890 = vadd.f32 %v1801, %v1889
      %1891 = vmatmul.bf16.gmra.mxu0 %v1442
      %v1892 = vpop.f32.mrf.mxu0
      %v1893 = vadd.f32 %v1804, %v1892
      %v1894 = vpop.f32.mrf.mxu0
      %v1895 = vadd.f32 %v1806, %v1894
      %1896 = vmatmul.bf16.gmra.mxu0 %v1443
      %v1897 = vpop.f32.mrf.mxu0
      %v1898 = vadd.f32 %v1809, %v1897
      %v1899 = vpop.f32.mrf.mxu0
      %v1900 = vadd.f32 %v1811, %v1899
      %1901 = vmatmul.bf16.gmra.mxu0 %v1444
      %v1902 = vpop.f32.mrf.mxu0
      %v1903 = vadd.f32 %v1814, %v1902
      %v1904 = vpop.f32.mrf.mxu0
      %v1905 = vadd.f32 %v1816, %v1904
      %1906 = vmatmul.bf16.gmra.mxu0 %v1445
      %v1907 = vpop.f32.mrf.mxu0
      %v1908 = vadd.f32 %v1819, %v1907
      %v1909 = vpop.f32.mrf.mxu0
      %v1910 = vadd.f32 %v1821, %v1909
      %1911 = vmatmul.bf16.gmra.mxu0 %v1446
      %v1912 = vpop.f32.mrf.mxu0
      %v1913 = vadd.f32 %v1824, %v1912
      %v1914 = vpop.f32.mrf.mxu0
      %v1915 = vadd.f32 %v1826, %v1914
      %1916 = vmatmul.bf16.gmra.mxu0 %v1447
      %v1917 = vpop.f32.mrf.mxu0
      %v1918 = vadd.f32 %v1829, %v1917
      %v1919 = vpop.f32.mrf.mxu0
      %v1920 = vadd.f32 %v1831, %v1919
      %1921 = vmatmul.bf16.gmra.mxu0 %v1448
      %v1922 = vpop.f32.mrf.mxu0
      %v1923 = vadd.f32 %v1834, %v1922
      %v1924 = vpop.f32.mrf.mxu0
      %v1925 = vadd.f32 %v1836, %v1924
      %1926 = vmatmul.bf16.gmra.mxu0 %v1449
      %v1927 = vpop.f32.mrf.mxu0
      %v1928 = vadd.f32 %v1839, %v1927
      %v1929 = vpop.f32.mrf.mxu0
      %v1930 = vadd.f32 %v1841, %v1929
      %1931 = vdwg.mxu0
      %1932 = vmatpush.bf16.msra.mxu0 %v1729
      %1933 = vmatpush.bf16.msra.mxu0 %v1728
      %1934 = vmatpush.bf16.msra.mxu0 %v1727
      %1935 = vmatpush.bf16.msra.mxu0 %v1726
      %1936 = vmatpush.bf16.msra.mxu0 %v1725
      %1937 = vmatpush.bf16.msra.mxu0 %v1724
      %1938 = vmatpush.bf16.msra.mxu0 %v1723
      %1939 = vmatpush.bf16.msra.mxu0 %v1722
      %1940 = vmatmul.bf16.gmra.mxu0 %v1530
      %v1941 = vpop.f32.mrf.mxu0
      %v1942 = vadd.f32 %v1853, %v1941
      %v1943 = vpop.f32.mrf.mxu0
      %v1944 = vadd.f32 %v1855, %v1943
      %1945 = vmatmul.bf16.gmra.mxu0 %v1531
      %v1946 = vpop.f32.mrf.mxu0
      %v1947 = vadd.f32 %v1858, %v1946
      %v1948 = vpop.f32.mrf.mxu0
      %v1949 = vadd.f32 %v1860, %v1948
      %1950 = vmatmul.bf16.gmra.mxu0 %v1532
      %v1951 = vpop.f32.mrf.mxu0
      %v1952 = vadd.f32 %v1863, %v1951
      %v1953 = vpop.f32.mrf.mxu0
      %v1954 = vadd.f32 %v1865, %v1953
      %1955 = vmatmul.bf16.gmra.mxu0 %v1533
      %v1956 = vpop.f32.mrf.mxu0
      %v1957 = vadd.f32 %v1868, %v1956
      %v1958 = vpop.f32.mrf.mxu0
      %v1959 = vadd.f32 %v1870, %v1958
      %1960 = vmatmul.bf16.gmra.mxu0 %v1534
      %v1961 = vpop.f32.mrf.mxu0
      %v1962 = vadd.f32 %v1873, %v1961
      %v1963 = vpop.f32.mrf.mxu0
      %v1964 = vadd.f32 %v1875, %v1963
      %1965 = vmatmul.bf16.gmra.mxu0 %v1535
      %v1966 = vpop.f32.mrf.mxu0
      %v1967 = vadd.f32 %v1878, %v1966
      %v1968 = vpop.f32.mrf.mxu0
      %v1969 = vadd.f32 %v1880, %v1968
      %1970 = vmatmul.bf16.gmra.mxu0 %v1536
      %v1971 = vpop.f32.mrf.mxu0
      %v1972 = vadd.f32 %v1883, %v1971
      %v1973 = vpop.f32.mrf.mxu0
      %v1974 = vadd.f32 %v1885, %v1973
      %1975 = vmatmul.bf16.gmra.mxu0 %v1537
      %v1976 = vpop.f32.mrf.mxu0
      %v1977 = vadd.f32 %v1888, %v1976
      %v1978 = vpop.f32.mrf.mxu0
      %v1979 = vadd.f32 %v1890, %v1978
      %1980 = vmatmul.bf16.gmra.mxu0 %v1538
      %v1981 = vpop.f32.mrf.mxu0
      %v1982 = vadd.f32 %v1893, %v1981
      %v1983 = vpop.f32.mrf.mxu0
      %v1984 = vadd.f32 %v1895, %v1983
      %1985 = vmatmul.bf16.gmra.mxu0 %v1539
      %v1986 = vpop.f32.mrf.mxu0
      %v1987 = vadd.f32 %v1898, %v1986
      %v1988 = vpop.f32.mrf.mxu0
      %v1989 = vadd.f32 %v1900, %v1988
      %1990 = vmatmul.bf16.gmra.mxu0 %v1540
      %v1991 = vpop.f32.mrf.mxu0
      %v1992 = vadd.f32 %v1903, %v1991
      %v1993 = vpop.f32.mrf.mxu0
      %v1994 = vadd.f32 %v1905, %v1993
      %1995 = vmatmul.bf16.gmra.mxu0 %v1541
      %v1996 = vpop.f32.mrf.mxu0
      %v1997 = vadd.f32 %v1908, %v1996
      %v1998 = vpop.f32.mrf.mxu0
      %v1999 = vadd.f32 %v1910, %v1998
      %2000 = vmatmul.bf16.gmra.mxu0 %v1542
      %v2001 = vpop.f32.mrf.mxu0
      %v2002 = vadd.f32 %v1913, %v2001
      %v2003 = vpop.f32.mrf.mxu0
      %v2004 = vadd.f32 %v1915, %v2003
      %2005 = vmatmul.bf16.gmra.mxu0 %v1543
      %v2006 = vpop.f32.mrf.mxu0
      %v2007 = vadd.f32 %v1918, %v2006
      %v2008 = vpop.f32.mrf.mxu0
      %v2009 = vadd.f32 %v1920, %v2008
      %2010 = vmatmul.bf16.gmra.mxu0 %v1544
      %v2011 = vpop.f32.mrf.mxu0
      %v2012 = vadd.f32 %v1923, %v2011
      %v2013 = vpop.f32.mrf.mxu0
      %v2014 = vadd.f32 %v1925, %v2013
      %2015 = vmatmul.bf16.gmra.mxu0 %v1545
      %v2016 = vpop.f32.mrf.mxu0
      %v2017 = vadd.f32 %v1928, %v2016
      %v2018 = vpop.f32.mrf.mxu0
      %v2019 = vadd.f32 %v1930, %v2018
      %2020 = vdwg.mxu0
      %2021 = vst [vmem:[%s233] sm:$0xff] %v1942
      %2022 = vst [vmem:[%s233 + $0x8] sm:$0xff] %v1944
      %2023 = vst [vmem:[%s233 + $0x10] sm:$0xff] %v1947
      %2024 = vst [vmem:[%s233 + $0x18] sm:$0xff] %v1949
      %2025 = vst [vmem:[%s233 + $0x20] sm:$0xff] %v1952
      %2026 = vst [vmem:[%s233 + $0x28] sm:$0xff] %v1954
      %2027 = vst [vmem:[%s233 + $0x30] sm:$0xff] %v1957
      %2028 = vst [vmem:[%s233 + $0x38] sm:$0xff] %v1959
      %2029 = vst [vmem:[%s233 + $0x40] sm:$0xff] %v1962
      %2030 = vst [vmem:[%s233 + $0x48] sm:$0xff] %v1964
      %2031 = vst [vmem:[%s233 + $0x50] sm:$0xff] %v1967
      %2032 = vst [vmem:[%s233 + $0x58] sm:$0xff] %v1969
      %2033 = vst [vmem:[%s233 + $0x60] sm:$0xff] %v1972
      %2034 = vst [vmem:[%s233 + $0x68] sm:$0xff] %v1974
      %2035 = vst [vmem:[%s233 + $0x70] sm:$0xff] %v1977
      %2036 = vst [vmem:[%s233 + $0x78] sm:$0xff] %v1979
      %2037 = vst [vmem:[%s233 + $0x80] sm:$0xff] %v1982
      %2038 = vst [vmem:[%s233 + $0x88] sm:$0xff] %v1984
      %2039 = vst [vmem:[%s233 + $0x90] sm:$0xff] %v1987
      %2040 = vst [vmem:[%s233 + $0x98] sm:$0xff] %v1989
      %2041 = vst [vmem:[%s233 + $0xa0] sm:$0xff] %v1992
      %2042 = vst [vmem:[%s233 + $0xa8] sm:$0xff] %v1994
      %2043 = vst [vmem:[%s233 + $0xb0] sm:$0xff] %v1997
      %2044 = vst [vmem:[%s233 + $0xb8] sm:$0xff] %v1999
      %2045 = vst [vmem:[%s233 + $0xc0] sm:$0xff] %v2002
      %2046 = vst [vmem:[%s233 + $0xc8] sm:$0xff] %v2004
      %2047 = vst [vmem:[%s233 + $0xd0] sm:$0xff] %v2007
      %2048 = vst [vmem:[%s233 + $0xd8] sm:$0xff] %v2009
      %2049 = vst [vmem:[%s233 + $0xe0] sm:$0xff] %v2012
      %2050 = vst [vmem:[%s233 + $0xe8] sm:$0xff] %v2014
      %2051 = vst [vmem:[%s233 + $0xf0] sm:$0xff] %v2017
      %2052 = vst [vmem:[%s233 + $0xf8] sm:$0xff] %v2019
      %v2053 = vadd.f32 %v1942, %v1944
      %v2054 = vadd.f32 %v2053, %v1947
      %v2055 = vadd.f32 %v2054, %v1949
      %v2056 = vadd.f32 %v2055, %v1952
      %v2057 = vadd.f32 %v2056, %v1954
      %v2058 = vadd.f32 %v2057, %v1957
      %v2059 = vadd.f32 %v2058, %v1959
      %v2060 = vadd.f32 %v2059, %v1962
      %v2061 = vadd.f32 %v2060, %v1964
      %v2062 = vadd.f32 %v2061, %v1967
      %v2063 = vadd.f32 %v2062, %v1969
      %v2064 = vadd.f32 %v2063, %v1972
      %v2065 = vadd.f32 %v2064, %v1974
      %v2066 = vadd.f32 %v2065, %v1977
      %v2067 = vadd.f32 %v2066, %v1979
      %v2068 = vadd.f32 %v2067, %v1982
      %v2069 = vadd.f32 %v2068, %v1984
      %v2070 = vadd.f32 %v2069, %v1987
      %v2071 = vadd.f32 %v2070, %v1989
      %v2072 = vadd.f32 %v2071, %v1992
      %v2073 = vadd.f32 %v2072, %v1994
      %v2074 = vadd.f32 %v2073, %v1997
      %v2075 = vadd.f32 %v2074, %v1999
      %v2076 = vadd.f32 %v2075, %v2002
      %v2077 = vadd.f32 %v2076, %v2004
      %v2078 = vadd.f32 %v2077, %v2007
      %v2079 = vadd.f32 %v2078, %v2009
      %v2080 = vadd.f32 %v2079, %v2012
      %v2081 = vadd.f32 %v2080, %v2014
      %v2082 = vadd.f32 %v2081, %v2017
      %v2083 = vadd.f32 %v2082, %v2019
      %v2084 = vrot.slane %v2083, 4
      %v2085 = vadd.f32 %v2083, %v2084
      %v2086 = vrot.slane %v2085, 2
      %v2087 = vadd.f32 %v2085, %v2086
      %v2088 = vrot.slane %v2087, 1
      %v2089 = vadd.f32 %v2087, %v2088
      %v2090 = vmul.f32 %v1942, %v1942
      %v2091 = vmul.f32 %v1944, %v1944
      %v2092 = vmul.f32 %v1947, %v1947
      %v2093 = vmul.f32 %v1949, %v1949
      %v2094 = vmul.f32 %v1952, %v1952
      %v2095 = vmul.f32 %v1954, %v1954
      %v2096 = vmul.f32 %v1957, %v1957
      %v2097 = vmul.f32 %v1959, %v1959
      %v2098 = vmul.f32 %v1962, %v1962
      %v2099 = vmul.f32 %v1964, %v1964
      %v2100 = vmul.f32 %v1967, %v1967
      %v2101 = vmul.f32 %v1969, %v1969
      %v2102 = vmul.f32 %v1972, %v1972
      %v2103 = vmul.f32 %v1974, %v1974
      %v2104 = vmul.f32 %v1977, %v1977
      %v2105 = vmul.f32 %v1979, %v1979
      %v2106 = vmul.f32 %v1982, %v1982
      %v2107 = vmul.f32 %v1984, %v1984
      %v2108 = vmul.f32 %v1987, %v1987
      %v2109 = vmul.f32 %v1989, %v1989
      %v2110 = vmul.f32 %v1992, %v1992
      %v2111 = vmul.f32 %v1994, %v1994
      %v2112 = vmul.f32 %v1997, %v1997
      %v2113 = vmul.f32 %v1999, %v1999
      %v2114 = vmul.f32 %v2002, %v2002
      %v2115 = vmul.f32 %v2004, %v2004
      %v2116 = vmul.f32 %v2007, %v2007
      %v2117 = vmul.f32 %v2009, %v2009
      %v2118 = vmul.f32 %v2012, %v2012
      %v2119 = vmul.f32 %v2014, %v2014
      %v2120 = vmul.f32 %v2017, %v2017
      %v2121 = vmul.f32 %v2019, %v2019
      %v2122 = vadd.f32 %v2090, %v2091
      %v2123 = vadd.f32 %v2122, %v2092
      %v2124 = vadd.f32 %v2123, %v2093
      %v2125 = vadd.f32 %v2124, %v2094
      %v2126 = vadd.f32 %v2125, %v2095
      %v2127 = vadd.f32 %v2126, %v2096
      %v2128 = vadd.f32 %v2127, %v2097
      %v2129 = vadd.f32 %v2128, %v2098
      %v2130 = vadd.f32 %v2129, %v2099
      %v2131 = vadd.f32 %v2130, %v2100
      %v2132 = vadd.f32 %v2131, %v2101
      %v2133 = vadd.f32 %v2132, %v2102
      %v2134 = vadd.f32 %v2133, %v2103
      %v2135 = vadd.f32 %v2134, %v2104
      %v2136 = vadd.f32 %v2135, %v2105
      %v2137 = vadd.f32 %v2136, %v2106
      %v2138 = vadd.f32 %v2137, %v2107
      %v2139 = vadd.f32 %v2138, %v2108
      %v2140 = vadd.f32 %v2139, %v2109
      %v2141 = vadd.f32 %v2140, %v2110
      %v2142 = vadd.f32 %v2141, %v2111
      %v2143 = vadd.f32 %v2142, %v2112
      %v2144 = vadd.f32 %v2143, %v2113
      %v2145 = vadd.f32 %v2144, %v2114
      %v2146 = vadd.f32 %v2145, %v2115
      %v2147 = vadd.f32 %v2146, %v2116
      %v2148 = vadd.f32 %v2147, %v2117
      %v2149 = vadd.f32 %v2148, %v2118
      %v2150 = vadd.f32 %v2149, %v2119
      %v2151 = vadd.f32 %v2150, %v2120
      %v2152 = vadd.f32 %v2151, %v2121
      %v2153 = vrot.slane %v2152, 4
      %v2154 = vadd.f32 %v2152, %v2153
      %v2155 = vrot.slane %v2154, 2
      %v2156 = vadd.f32 %v2154, %v2155
      %v2157 = vrot.slane %v2156, 1
      %v2158 = vadd.f32 %v2156, %v2157
      %vm2159 = vcmask 1040384
      %v2160 = vsel %vm2159, %v2089, %v2158
      %2161 = vst [vmem:[%s238] sm:$0x3] %v2160
      %s2162 = smul.u32 32, %s17
      %p2163 = scmp.lt.s32.totalorder %s2162, 63
      %s2164 = scalar_select %p2163, %s2162, 63
      %s2165 = smul.addr %s2164, 8
      %s2166 = scalar_lea.vmem %s4, %s2165
      %p2167 = scmp.lt.s32.totalorder %s17, 1
      %s2168 = scalar_select %p2167, %s17, 1
      %s2169 = smul.addr %s2168, 2
      %s2170 = scalar_lea.vmem %s5, %s2169
      // Predicated region
      $region37: #{basic_block.4} parent=35 // pred_check
        %p2171 = pneg %p124
      $region38: #{basic_block.4} parent=35 // pred_check_branch
        %2173 = sbr.rel (%p2171) target = $region40
      $region39: #{basic_block.4} parent=35 // pred_region
        %s2174 = smul.u32 32, %s17
      $region40: #{basic_block.4} parent=35 // pred_fallthru
        _
      // Predicated region
      $region41: #{basic_block.4} parent=35 // pred_check
        %p2175 = pneg %p150
      $region42: #{basic_block.4} parent=35 // pred_check_branch
        %2177 = sbr.rel (%p2175) target = $region44
      $region43: #{basic_block.4} parent=35 // pred_region
        _
      $region44: #{basic_block.4} parent=35 // pred_fallthru
        _
    $region36: #{basic_block.4} parent=5 // pred_fallthru
      _
    %p2178 = scmp.le.s32.totalorder 2, %s12
    // Predicated region
    $region45: #{basic_block.4} parent=5 // pred_check
      %p2179 = pneg %p2178
    $region46: #{basic_block.4} parent=5 // pred_check_branch
      %2181 = sbr.rel (%p2179) target = $region48
    $region47: #{basic_block.4} parent=5 // pred_region
      %s2182 = ssub.s32 %s12, 2
      // Predicated region
      $region49: #{basic_block.4} parent=47 // pred_check
        %p2183 = pneg %p130
      $region50: #{basic_block.4} parent=47 // pred_check_branch
        %2185 = sbr.rel (%p2183) target = $region52
      $region51: #{basic_block.4} parent=47 // pred_region
        %s2186 = smul.u32 32, %s18
        %p2187 = scmp.lt.s32.totalorder %s2186, 63
        %s2188 = scalar_select %p2187, %s2186, 63
        %s2189 = smul.addr %s2188, 8
        %s2190 = scalar_lea.vmem %s4, %s2189
      $region52: #{basic_block.4} parent=47 // pred_fallthru
        _
      // Predicated region
      $region53: #{basic_block.4} parent=47 // pred_check
        %p2191 = pneg %p156
      $region54: #{basic_block.4} parent=47 // pred_check_branch
        %2193 = sbr.rel (%p2191) target = $region56
      $region55: #{basic_block.4} parent=47 // pred_region
        %p2194 = scmp.lt.s32.totalorder %s18, 1
        %s2195 = scalar_select %p2194, %s18, 1
        %s2196 = smul.addr %s2195, 2
        %s2197 = scalar_lea.vmem %s5, %s2196
      $region56: #{basic_block.4} parent=47 // pred_fallthru
        _
    $region48: #{basic_block.4} parent=5 // pred_fallthru
      _
  $region6: #{basic_block.4} parent=0 // loop_footer
    %s16 = sadd.s32 1, %s12
  $region7: #{basic_block.4} parent=0 // loop_footer_branch
    %11 = sbr.rel target = $region3
  $region8: #{basic_block.4} parent=0 // loop_exit
    _

</llo_original>
